<compile_context>
chip_gen: v7x
topology: tpu7x:2x2x1
jax: 0.10.0
libtpu: 0.0.40
codegen_flags: <defaults>
</compile_context>

<pallas_src>
import itertools
import functools

import jax
import jax.numpy as jnp
from jax.experimental import pallas as pl
from jax.experimental.pallas import tpu as pltpu


def _mlp_mean_kernel(x_ref, w1_ref, b1_ref, w2_ref, b2_ref, w3_ref, b3_ref,
                     o_ref, *, group_size):
    """One grid step = Bt batch elements, lane-dense (batch on the lane axis).

    x_ref  : (G, F, Bt)  permuted flattened points, transposed (batch minor)
    w*_ref : transposed weights  w1:(H1,F)  w2:(H2,H1)  w3:(C,H2) pre-scaled 1/G
    b*_ref : biases as columns   b1:(H1,1)  b2:(H2,1)   b3:(C,1)  (always f32)
    o_ref  : (C, Bt)     mean-over-permutations logits (transposed)
    """
    G = group_size
    Bt = o_ref.shape[-1]
    H1 = w1_ref.shape[0]
    H2 = w2_ref.shape[0]

    # Weights resident for the whole step; bias broadcasts hoisted out of the
    # per-permutation loop (JAX does not CSE broadcast_in_dim).
    w1 = w1_ref[...]
    w2 = w2_ref[...]
    b1 = jnp.broadcast_to(b1_ref[...], (H1, Bt))
    b2 = jnp.broadcast_to(b2_ref[...], (H2, Bt))

    # Sum of layer-2 activations over the permutation group.  G is a
    # trace-time constant, so this fully unrolls into 2*G small 2-D MXU dots
    # (definitely supported shapes); each iteration's temporaries are consumed
    # immediately so register pressure stays low.
    h2_sum = jnp.zeros((H2, Bt), jnp.float32)
    for g in range(G):
        xg = x_ref[g]                                            # (F, Bt)
        h1 = jnp.dot(w1, xg, preferred_element_type=jnp.float32)
        h1 = jnp.maximum(h1 + b1, 0.0)                           # (H1, Bt) f32
        h2 = jnp.dot(w2, h1.astype(w2.dtype),
                     preferred_element_type=jnp.float32)
        h2 = jnp.maximum(h2 + b2, 0.0)                           # (H2, Bt) f32
        h2_sum = h2_sum + h2

    # Linear head on the G-times-smaller tensor.  w3 is pre-scaled by 1/G in
    # the wrapper, so sum-then-matmul == mean after the (linear) last layer.
    y = jnp.dot(w3_ref[...], h2_sum.astype(w3_ref.dtype),
                preferred_element_type=jnp.float32) + b3_ref[...]
    o_ref[...] = y.astype(o_ref.dtype)                           # dense (C, Bt) store


def _round_up(x, m):
    return (x + m - 1) // m * m


def symmetrization_mlp_pallas(xp, w1, b1, w2, b2, w3, b3, *, block_batch=128):
    """xp: (B, G, F) permuted flattened points -> (B, C) logits."""
    B, G, F = xp.shape
    H1 = w1.shape[1]
    H2 = w2.shape[1]
    C = w3.shape[1]

    LANE = 128
    if B > LANE:
        # Lane-aligned batch tile (multiple of 128 so the last block dim is
        # 128-divisible), capped so the grid keeps >= 2 steps when possible
        # (v7x: 2 TensorCores share the "parallel" axis; a 1-step grid idles
        # one of them).  Sweep block_batch in {128, 256, 512} for real loads.
        Bt = max(LANE, (int(block_batch) // LANE) * LANE)
        Bt = min(Bt, max(LANE, _round_up((B + 1) // 2, LANE)))
        B_pad = _round_up(B, Bt)
    else:
        # Tiny batch: one block covering the whole (8-padded) batch; the last
        # block dim then equals the full array dim, which Mosaic allows.
        B_pad = _round_up(B, 8)
        Bt = B_pad

    # Lane-dense layout: batch on the minor axis.  (For production, build the
    # permuted features directly in this layout to skip the transpose pass.)
    xp_t = jnp.transpose(xp, (1, 2, 0))                    # (G, F, B)
    if B_pad != B:
        xp_t = jnp.pad(xp_t, ((0, 0), (0, 0), (0, B_pad - B)))

    # Transposed weights; the 1/G mean factor is folded into the linear head.
    inv_g = 1.0 / G
    w1_t = w1.T                                            # (H1, F)
    w2_t = w2.T                                            # (H2, H1)
    w3_t = (w3.T * inv_g).astype(w3.dtype)                 # (C, H2), pre-scaled
    b1_t = b1.reshape(H1, 1)
    b2_t = b2.reshape(H2, 1)
    b3_t = b3.reshape(C, 1)

    grid = (B_pad // Bt,)
    out_t = pl.pallas_call(
        functools.partial(_mlp_mean_kernel, group_size=G),
        out_shape=jax.ShapeDtypeStruct((C, B_pad), jnp.float32),
        grid_spec=pltpu.PrefetchScalarGridSpec(
            num_scalar_prefetch=0,
            grid=grid,
            in_specs=[
                pl.BlockSpec((G, F, Bt), lambda i: (0, 0, i)),
                pl.BlockSpec((H1, F), lambda i: (0, 0)),
                pl.BlockSpec((H1, 1), lambda i: (0, 0)),
                pl.BlockSpec((H2, H1), lambda i: (0, 0)),
                pl.BlockSpec((H2, 1), lambda i: (0, 0)),
                pl.BlockSpec((C, H2), lambda i: (0, 0)),
                pl.BlockSpec((C, 1), lambda i: (0, 0)),
            ],
            out_specs=pl.BlockSpec((C, Bt), lambda i: (0, i)),
        ),
        # Batch tiles are independent -> shard the grid across v7x's 2 TCs.
        compiler_params=pltpu.CompilerParams(
            dimension_semantics=("parallel",)),
    )(xp_t, w1_t, b1_t, w2_t, b2_t, w3_t, b3_t)

    return out_t[:, :B].T                                  # (B, C)


def cast_mxu_operands(xp, params, dtype):
    """Cast the HBM-heavy tensors (xp + weight matrices) to `dtype` (e.g. bf16
    on v5e/v6e/v7x); biases stay f32 so all elementwise math stays f32."""
    w1, b1, w2, b2, w3, b3 = params
    return (xp.astype(dtype),
            [w1.astype(dtype), b1, w2.astype(dtype), b2, w3.astype(dtype), b3])


def build_permuted_features(x, key, K, perms):
    """JAX glue replicating the PyTorch forward's indexing.

    x     : (B, N, 3)
    perms : (G, K) all permutations of range(K)
    returns xp : (B, G, K*3)
    """
    B, N, _ = x.shape
    G = perms.shape[0]
    keys = jax.random.split(key, B)

    def per_batch(xb, kb):
        idx = jax.random.permutation(kb, N)[:K]   # random subsample (≙ torch.randperm)
        pts = xb[idx]                             # (K, 3)
        perm_pts = pts[perms]                     # (G, K, 3)
        return perm_pts.reshape(G, K * 3)

    return jax.vmap(per_batch)(x, keys)           # (B, G, K*3)


def init_params(key, in_features, hidden_dims, n_classes):
    """Deterministic synthetic init (PyTorch-Linear-like uniform fan-in)."""
    dims = [in_features] + list(hidden_dims) + [n_classes]
    params = []
    for i in range(len(dims) - 1):
        fan_in, fan_out = dims[i], dims[i + 1]
        key, kw, kb = jax.random.split(key, 3)
        bound = 1.0 / (fan_in ** 0.5)
        # Stored as (in, out): transpose of torch's (out, in) layout.
        w = jax.random.uniform(kw, (fan_in, fan_out), jnp.float32, -bound, bound)
        b = jax.random.uniform(kb, (1, fan_out), jnp.float32, -bound, bound)
        params.extend([w, b])
    return params


def reference_forward(xp, w1, b1, w2, b2, w3, b3):
    """Pure-JAX reference: MLP per permutation, mean over the group (module
    semantics), f32 accumulation, same operand-cast points as the kernel."""
    h1 = jnp.maximum(jnp.einsum('bgf,fh->bgh', xp, w1,
                                preferred_element_type=jnp.float32) + b1, 0.0)
    h2 = jnp.maximum(jnp.einsum('bgh,hk->bgk', h1.astype(w2.dtype), w2,
                                preferred_element_type=jnp.float32) + b2, 0.0)
    y = jnp.einsum('bgk,kc->bgc', h2.astype(w3.dtype), w3,
                   preferred_element_type=jnp.float32) + b3
    return y.mean(axis=1)


if __name__ == "__main__":
    # Shapes consistent with the module's forward, kept small:
    #   N=16 points, K=4 sampled points -> G = 4! = 24 perms,
    #   in_features = K*3 = 12, hidden_dims = (32, 16), n_classes = 10.
    K, N = 4, 16
    hidden_dims = (32, 16)
    n_classes = 10
    in_features = K * 3

    perms = jnp.array(list(itertools.permutations(range(K))), dtype=jnp.int32)  # (24, 4)

    root = jax.random.PRNGKey(0)
    k_x, k_sample, k_params = jax.random.split(root, 3)
    params = init_params(k_params, in_features, hidden_dims, n_classes)

    # --- Multi-tile path: B=200 -> Bt=128, B_pad=256, 2 grid steps (one per
    # --- v7x TensorCore) and exercises B % Bt != 0 padding.
    B = 200
    x = jax.random.normal(k_x, (B, N, 3), dtype=jnp.float32)
    # TODO(synk): per-batch torch.randperm subsampling has no in-kernel
    # equivalent; it stays as JAX index shuffling outside the kernel.
    xp = build_permuted_features(x, k_sample, K, perms)        # (200, 24, 12)

    out = jax.block_until_ready(
        symmetrization_mlp_pallas(xp, *params, block_batch=128))
    ref = reference_forward(xp, *params)
    assert out.shape == (B, n_classes)
    assert jnp.allclose(out, ref, atol=1e-4, rtol=1e-4)

    # --- bf16 MXU-operand path (halves the dominant xp HBM read on all
    # --- generations; accumulation / bias / ReLU stay f32).
    xp_bf, params_bf = cast_mxu_operands(xp, params, jnp.bfloat16)
    out_bf = jax.block_until_ready(
        symmetrization_mlp_pallas(xp_bf, *params_bf, block_batch=128))
    ref_bf = reference_forward(xp_bf, *params_bf)
    assert out_bf.shape == (B, n_classes)
    assert jnp.allclose(out_bf, ref_bf, atol=2e-2, rtol=2e-2)   # kernel parity
    assert jnp.allclose(out_bf, ref, atol=5e-2, rtol=5e-2)      # vs f32 ground truth

    # --- Tiny-batch path: single full-batch block (Bt == padded B).
    B2 = 6
    x2 = jax.random.normal(jax.random.PRNGKey(7), (B2, N, 3), dtype=jnp.float32)
    xp2 = build_permuted_features(x2, jax.random.PRNGKey(8), K, perms)
    out2 = jax.block_until_ready(symmetrization_mlp_pallas(xp2, *params))
    assert out2.shape == (B2, n_classes)
    assert jnp.allclose(out2, reference_forward(xp2, *params), atol=1e-4, rtol=1e-4)

    print("KERNEL_OK")
</pallas_src>

<mosaic_0001>
module attributes {stable_mosaic.version = 11 : i64} {
  func.func @_mlp_mean_kernel(%arg0: i32, %arg1: memref<24x12x128xf32, #tpu.memory_space<vmem>>, %arg2: memref<32x12xf32, #tpu.memory_space<vmem>>, %arg3: memref<32x1xf32, #tpu.memory_space<vmem>>, %arg4: memref<16x32xf32, #tpu.memory_space<vmem>>, %arg5: memref<16x1xf32, #tpu.memory_space<vmem>>, %arg6: memref<10x16xf32, #tpu.memory_space<vmem>>, %arg7: memref<10x1xf32, #tpu.memory_space<vmem>>, %arg8: memref<10x128xf32, #tpu.memory_space<vmem>>) attributes {dimension_semantics = [#tpu.dimension_semantics<parallel>], iteration_bounds = array<i64: 2>, scalar_prefetch = 0 : i64, scratch_operands = 0 : i64, tpu.core_type = #tpu.core_type<tc>, window_params = [{transform_indices = @transform_0, window_bounds = array<i64: 24, 12, 128>}, {pipeline_mode = #tpu.pipeline_mode<synchronous>, transform_indices = @transform_1, window_bounds = array<i64: 32, 12>}, {pipeline_mode = #tpu.pipeline_mode<synchronous>, transform_indices = @transform_2, window_bounds = array<i64: 32, 1>}, {pipeline_mode = #tpu.pipeline_mode<synchronous>, transform_indices = @transform_3, window_bounds = array<i64: 16, 32>}, {pipeline_mode = #tpu.pipeline_mode<synchronous>, transform_indices = @transform_4, window_bounds = array<i64: 16, 1>}, {pipeline_mode = #tpu.pipeline_mode<synchronous>, transform_indices = @transform_5, window_bounds = array<i64: 10, 16>}, {pipeline_mode = #tpu.pipeline_mode<synchronous>, transform_indices = @transform_6, window_bounds = array<i64: 10, 1>}, {transform_indices = @transform_7, window_bounds = array<i64: 10, 128>}]} {
    %c0 = arith.constant 0 : index
    %c0_0 = arith.constant 0 : index
    %0 = vector.load %arg2[%c0, %c0_0] : memref<32x12xf32, #tpu.memory_space<vmem>>, vector<32x12xf32>
    %c0_1 = arith.constant 0 : index
    %c0_2 = arith.constant 0 : index
    %1 = vector.load %arg4[%c0_1, %c0_2] : memref<16x32xf32, #tpu.memory_space<vmem>>, vector<16x32xf32>
    %c0_3 = arith.constant 0 : index
    %c0_4 = arith.constant 0 : index
    %2 = vector.load %arg3[%c0_3, %c0_4] : memref<32x1xf32, #tpu.memory_space<vmem>>, vector<32x1xf32>
    %3 = vector.shape_cast %2 : vector<32x1xf32> to vector<32x1xf32>
    %4 = vector.broadcast %3 : vector<32x1xf32> to vector<32x128xf32>
    %c0_5 = arith.constant 0 : index
    %c0_6 = arith.constant 0 : index
    %5 = vector.load %arg5[%c0_5, %c0_6] : memref<16x1xf32, #tpu.memory_space<vmem>>, vector<16x1xf32>
    %6 = vector.shape_cast %5 : vector<16x1xf32> to vector<16x1xf32>
    %7 = vector.broadcast %6 : vector<16x1xf32> to vector<16x128xf32>
    %cst = arith.constant 0.000000e+00 : f32
    %8 = vector.broadcast %cst : f32 to vector<16x128xf32>
    %c0_7 = arith.constant 0 : index
    %c0_8 = arith.constant 0 : index
    %c0_9 = arith.constant 0 : index
    %9 = vector.load %arg1[%c0_7, %c0_8, %c0_9] : memref<24x12x128xf32, #tpu.memory_space<vmem>>, vector<1x12x128xf32>
    %10 = vector.shape_cast %9 : vector<1x12x128xf32> to vector<12x128xf32>
    %cst_10 = arith.constant dense<0.000000e+00> : vector<32x128xf32>
    %11 = tpu.matmul %0, %10, %cst_10 {dimension_numbers = #tpu.dot_dimension_numbers<[1], [0], [0], [1], [0, 0, 1, 1], [], []>} : vector<32x12xf32>, vector<12x128xf32>, vector<32x128xf32> -> vector<32x128xf32>
    %12 = arith.addf %11, %4 : vector<32x128xf32>
    %cst_11 = arith.constant 0.000000e+00 : f32
    %13 = vector.broadcast %cst_11 : f32 to vector<32x128xf32>
    %14 = arith.maximumf %12, %13 : vector<32x128xf32>
    %cst_12 = arith.constant dense<0.000000e+00> : vector<16x128xf32>
    %15 = tpu.matmul %1, %14, %cst_12 {dimension_numbers = #tpu.dot_dimension_numbers<[1], [0], [0], [1], [0, 0, 1, 1], [], []>} : vector<16x32xf32>, vector<32x128xf32>, vector<16x128xf32> -> vector<16x128xf32>
    %16 = arith.addf %15, %7 : vector<16x128xf32>
    %cst_13 = arith.constant 0.000000e+00 : f32
    %17 = vector.broadcast %cst_13 : f32 to vector<16x128xf32>
    %18 = arith.maximumf %16, %17 : vector<16x128xf32>
    %19 = arith.addf %8, %18 : vector<16x128xf32>
    %c1 = arith.constant 1 : index
    %c0_14 = arith.constant 0 : index
    %c0_15 = arith.constant 0 : index
    %20 = vector.load %arg1[%c1, %c0_14, %c0_15] : memref<24x12x128xf32, #tpu.memory_space<vmem>>, vector<1x12x128xf32>
    %21 = vector.shape_cast %20 : vector<1x12x128xf32> to vector<12x128xf32>
    %cst_16 = arith.constant dense<0.000000e+00> : vector<32x128xf32>
    %22 = tpu.matmul %0, %21, %cst_16 {dimension_numbers = #tpu.dot_dimension_numbers<[1], [0], [0], [1], [0, 0, 1, 1], [], []>} : vector<32x12xf32>, vector<12x128xf32>, vector<32x128xf32> -> vector<32x128xf32>
    %23 = arith.addf %22, %4 : vector<32x128xf32>
    %cst_17 = arith.constant 0.000000e+00 : f32
    %24 = vector.broadcast %cst_17 : f32 to vector<32x128xf32>
    %25 = arith.maximumf %23, %24 : vector<32x128xf32>
    %cst_18 = arith.constant dense<0.000000e+00> : vector<16x128xf32>
    %26 = tpu.matmul %1, %25, %cst_18 {dimension_numbers = #tpu.dot_dimension_numbers<[1], [0], [0], [1], [0, 0, 1, 1], [], []>} : vector<16x32xf32>, vector<32x128xf32>, vector<16x128xf32> -> vector<16x128xf32>
    %27 = arith.addf %26, %7 : vector<16x128xf32>
    %cst_19 = arith.constant 0.000000e+00 : f32
    %28 = vector.broadcast %cst_19 : f32 to vector<16x128xf32>
    %29 = arith.maximumf %27, %28 : vector<16x128xf32>
    %30 = arith.addf %19, %29 : vector<16x128xf32>
    %c2 = arith.constant 2 : index
    %c0_20 = arith.constant 0 : index
    %c0_21 = arith.constant 0 : index
    %31 = vector.load %arg1[%c2, %c0_20, %c0_21] : memref<24x12x128xf32, #tpu.memory_space<vmem>>, vector<1x12x128xf32>
    %32 = vector.shape_cast %31 : vector<1x12x128xf32> to vector<12x128xf32>
    %cst_22 = arith.constant dense<0.000000e+00> : vector<32x128xf32>
    %33 = tpu.matmul %0, %32, %cst_22 {dimension_numbers = #tpu.dot_dimension_numbers<[1], [0], [0], [1], [0, 0, 1, 1], [], []>} : vector<32x12xf32>, vector<12x128xf32>, vector<32x128xf32> -> vector<32x128xf32>
    %34 = arith.addf %33, %4 : vector<32x128xf32>
    %cst_23 = arith.constant 0.000000e+00 : f32
    %35 = vector.broadcast %cst_23 : f32 to vector<32x128xf32>
    %36 = arith.maximumf %34, %35 : vector<32x128xf32>
    %cst_24 = arith.constant dense<0.000000e+00> : vector<16x128xf32>
    %37 = tpu.matmul %1, %36, %cst_24 {dimension_numbers = #tpu.dot_dimension_numbers<[1], [0], [0], [1], [0, 0, 1, 1], [], []>} : vector<16x32xf32>, vector<32x128xf32>, vector<16x128xf32> -> vector<16x128xf32>
    %38 = arith.addf %37, %7 : vector<16x128xf32>
    %cst_25 = arith.constant 0.000000e+00 : f32
    %39 = vector.broadcast %cst_25 : f32 to vector<16x128xf32>
    %40 = arith.maximumf %38, %39 : vector<16x128xf32>
    %41 = arith.addf %30, %40 : vector<16x128xf32>
    %c3 = arith.constant 3 : index
    %c0_26 = arith.constant 0 : index
    %c0_27 = arith.constant 0 : index
    %42 = vector.load %arg1[%c3, %c0_26, %c0_27] : memref<24x12x128xf32, #tpu.memory_space<vmem>>, vector<1x12x128xf32>
    %43 = vector.shape_cast %42 : vector<1x12x128xf32> to vector<12x128xf32>
    %cst_28 = arith.constant dense<0.000000e+00> : vector<32x128xf32>
    %44 = tpu.matmul %0, %43, %cst_28 {dimension_numbers = #tpu.dot_dimension_numbers<[1], [0], [0], [1], [0, 0, 1, 1], [], []>} : vector<32x12xf32>, vector<12x128xf32>, vector<32x128xf32> -> vector<32x128xf32>
    %45 = arith.addf %44, %4 : vector<32x128xf32>
    %cst_29 = arith.constant 0.000000e+00 : f32
    %46 = vector.broadcast %cst_29 : f32 to vector<32x128xf32>
    %47 = arith.maximumf %45, %46 : vector<32x128xf32>
    %cst_30 = arith.constant dense<0.000000e+00> : vector<16x128xf32>
    %48 = tpu.matmul %1, %47, %cst_30 {dimension_numbers = #tpu.dot_dimension_numbers<[1], [0], [0], [1], [0, 0, 1, 1], [], []>} : vector<16x32xf32>, vector<32x128xf32>, vector<16x128xf32> -> vector<16x128xf32>
    %49 = arith.addf %48, %7 : vector<16x128xf32>
    %cst_31 = arith.constant 0.000000e+00 : f32
    %50 = vector.broadcast %cst_31 : f32 to vector<16x128xf32>
    %51 = arith.maximumf %49, %50 : vector<16x128xf32>
    %52 = arith.addf %41, %51 : vector<16x128xf32>
    %c4 = arith.constant 4 : index
    %c0_32 = arith.constant 0 : index
    %c0_33 = arith.constant 0 : index
    %53 = vector.load %arg1[%c4, %c0_32, %c0_33] : memref<24x12x128xf32, #tpu.memory_space<vmem>>, vector<1x12x128xf32>
    %54 = vector.shape_cast %53 : vector<1x12x128xf32> to vector<12x128xf32>
    %cst_34 = arith.constant dense<0.000000e+00> : vector<32x128xf32>
    %55 = tpu.matmul %0, %54, %cst_34 {dimension_numbers = #tpu.dot_dimension_numbers<[1], [0], [0], [1], [0, 0, 1, 1], [], []>} : vector<32x12xf32>, vector<12x128xf32>, vector<32x128xf32> -> vector<32x128xf32>
    %56 = arith.addf %55, %4 : vector<32x128xf32>
    %cst_35 = arith.constant 0.000000e+00 : f32
    %57 = vector.broadcast %cst_35 : f32 to vector<32x128xf32>
    %58 = arith.maximumf %56, %57 : vector<32x128xf32>
    %cst_36 = arith.constant dense<0.000000e+00> : vector<16x128xf32>
    %59 = tpu.matmul %1, %58, %cst_36 {dimension_numbers = #tpu.dot_dimension_numbers<[1], [0], [0], [1], [0, 0, 1, 1], [], []>} : vector<16x32xf32>, vector<32x128xf32>, vector<16x128xf32> -> vector<16x128xf32>
    %60 = arith.addf %59, %7 : vector<16x128xf32>
    %cst_37 = arith.constant 0.000000e+00 : f32
    %61 = vector.broadcast %cst_37 : f32 to vector<16x128xf32>
    %62 = arith.maximumf %60, %61 : vector<16x128xf32>
    %63 = arith.addf %52, %62 : vector<16x128xf32>
    %c5 = arith.constant 5 : index
    %c0_38 = arith.constant 0 : index
    %c0_39 = arith.constant 0 : index
    %64 = vector.load %arg1[%c5, %c0_38, %c0_39] : memref<24x12x128xf32, #tpu.memory_space<vmem>>, vector<1x12x128xf32>
    %65 = vector.shape_cast %64 : vector<1x12x128xf32> to vector<12x128xf32>
    %cst_40 = arith.constant dense<0.000000e+00> : vector<32x128xf32>
    %66 = tpu.matmul %0, %65, %cst_40 {dimension_numbers = #tpu.dot_dimension_numbers<[1], [0], [0], [1], [0, 0, 1, 1], [], []>} : vector<32x12xf32>, vector<12x128xf32>, vector<32x128xf32> -> vector<32x128xf32>
    %67 = arith.addf %66, %4 : vector<32x128xf32>
    %cst_41 = arith.constant 0.000000e+00 : f32
    %68 = vector.broadcast %cst_41 : f32 to vector<32x128xf32>
    %69 = arith.maximumf %67, %68 : vector<32x128xf32>
    %cst_42 = arith.constant dense<0.000000e+00> : vector<16x128xf32>
    %70 = tpu.matmul %1, %69, %cst_42 {dimension_numbers = #tpu.dot_dimension_numbers<[1], [0], [0], [1], [0, 0, 1, 1], [], []>} : vector<16x32xf32>, vector<32x128xf32>, vector<16x128xf32> -> vector<16x128xf32>
    %71 = arith.addf %70, %7 : vector<16x128xf32>
    %cst_43 = arith.constant 0.000000e+00 : f32
    %72 = vector.broadcast %cst_43 : f32 to vector<16x128xf32>
    %73 = arith.maximumf %71, %72 : vector<16x128xf32>
    %74 = arith.addf %63, %73 : vector<16x128xf32>
    %c6 = arith.constant 6 : index
    %c0_44 = arith.constant 0 : index
    %c0_45 = arith.constant 0 : index
    %75 = vector.load %arg1[%c6, %c0_44, %c0_45] : memref<24x12x128xf32, #tpu.memory_space<vmem>>, vector<1x12x128xf32>
    %76 = vector.shape_cast %75 : vector<1x12x128xf32> to vector<12x128xf32>
    %cst_46 = arith.constant dense<0.000000e+00> : vector<32x128xf32>
    %77 = tpu.matmul %0, %76, %cst_46 {dimension_numbers = #tpu.dot_dimension_numbers<[1], [0], [0], [1], [0, 0, 1, 1], [], []>} : vector<32x12xf32>, vector<12x128xf32>, vector<32x128xf32> -> vector<32x128xf32>
    %78 = arith.addf %77, %4 : vector<32x128xf32>
    %cst_47 = arith.constant 0.000000e+00 : f32
    %79 = vector.broadcast %cst_47 : f32 to vector<32x128xf32>
    %80 = arith.maximumf %78, %79 : vector<32x128xf32>
    %cst_48 = arith.constant dense<0.000000e+00> : vector<16x128xf32>
    %81 = tpu.matmul %1, %80, %cst_48 {dimension_numbers = #tpu.dot_dimension_numbers<[1], [0], [0], [1], [0, 0, 1, 1], [], []>} : vector<16x32xf32>, vector<32x128xf32>, vector<16x128xf32> -> vector<16x128xf32>
    %82 = arith.addf %81, %7 : vector<16x128xf32>
    %cst_49 = arith.constant 0.000000e+00 : f32
    %83 = vector.broadcast %cst_49 : f32 to vector<16x128xf32>
    %84 = arith.maximumf %82, %83 : vector<16x128xf32>
    %85 = arith.addf %74, %84 : vector<16x128xf32>
    %c7 = arith.constant 7 : index
    %c0_50 = arith.constant 0 : index
    %c0_51 = arith.constant 0 : index
    %86 = vector.load %arg1[%c7, %c0_50, %c0_51] : memref<24x12x128xf32, #tpu.memory_space<vmem>>, vector<1x12x128xf32>
    %87 = vector.shape_cast %86 : vector<1x12x128xf32> to vector<12x128xf32>
    %cst_52 = arith.constant dense<0.000000e+00> : vector<32x128xf32>
    %88 = tpu.matmul %0, %87, %cst_52 {dimension_numbers = #tpu.dot_dimension_numbers<[1], [0], [0], [1], [0, 0, 1, 1], [], []>} : vector<32x12xf32>, vector<12x128xf32>, vector<32x128xf32> -> vector<32x128xf32>
    %89 = arith.addf %88, %4 : vector<32x128xf32>
    %cst_53 = arith.constant 0.000000e+00 : f32
    %90 = vector.broadcast %cst_53 : f32 to vector<32x128xf32>
    %91 = arith.maximumf %89, %90 : vector<32x128xf32>
    %cst_54 = arith.constant dense<0.000000e+00> : vector<16x128xf32>
    %92 = tpu.matmul %1, %91, %cst_54 {dimension_numbers = #tpu.dot_dimension_numbers<[1], [0], [0], [1], [0, 0, 1, 1], [], []>} : vector<16x32xf32>, vector<32x128xf32>, vector<16x128xf32> -> vector<16x128xf32>
    %93 = arith.addf %92, %7 : vector<16x128xf32>
    %cst_55 = arith.constant 0.000000e+00 : f32
    %94 = vector.broadcast %cst_55 : f32 to vector<16x128xf32>
    %95 = arith.maximumf %93, %94 : vector<16x128xf32>
    %96 = arith.addf %85, %95 : vector<16x128xf32>
    %c8 = arith.constant 8 : index
    %c0_56 = arith.constant 0 : index
    %c0_57 = arith.constant 0 : index
    %97 = vector.load %arg1[%c8, %c0_56, %c0_57] : memref<24x12x128xf32, #tpu.memory_space<vmem>>, vector<1x12x128xf32>
    %98 = vector.shape_cast %97 : vector<1x12x128xf32> to vector<12x128xf32>
    %cst_58 = arith.constant dense<0.000000e+00> : vector<32x128xf32>
    %99 = tpu.matmul %0, %98, %cst_58 {dimension_numbers = #tpu.dot_dimension_numbers<[1], [0], [0], [1], [0, 0, 1, 1], [], []>} : vector<32x12xf32>, vector<12x128xf32>, vector<32x128xf32> -> vector<32x128xf32>
    %100 = arith.addf %99, %4 : vector<32x128xf32>
    %cst_59 = arith.constant 0.000000e+00 : f32
    %101 = vector.broadcast %cst_59 : f32 to vector<32x128xf32>
    %102 = arith.maximumf %100, %101 : vector<32x128xf32>
    %cst_60 = arith.constant dense<0.000000e+00> : vector<16x128xf32>
    %103 = tpu.matmul %1, %102, %cst_60 {dimension_numbers = #tpu.dot_dimension_numbers<[1], [0], [0], [1], [0, 0, 1, 1], [], []>} : vector<16x32xf32>, vector<32x128xf32>, vector<16x128xf32> -> vector<16x128xf32>
    %104 = arith.addf %103, %7 : vector<16x128xf32>
    %cst_61 = arith.constant 0.000000e+00 : f32
    %105 = vector.broadcast %cst_61 : f32 to vector<16x128xf32>
    %106 = arith.maximumf %104, %105 : vector<16x128xf32>
    %107 = arith.addf %96, %106 : vector<16x128xf32>
    %c9 = arith.constant 9 : index
    %c0_62 = arith.constant 0 : index
    %c0_63 = arith.constant 0 : index
    %108 = vector.load %arg1[%c9, %c0_62, %c0_63] : memref<24x12x128xf32, #tpu.memory_space<vmem>>, vector<1x12x128xf32>
    %109 = vector.shape_cast %108 : vector<1x12x128xf32> to vector<12x128xf32>
    %cst_64 = arith.constant dense<0.000000e+00> : vector<32x128xf32>
    %110 = tpu.matmul %0, %109, %cst_64 {dimension_numbers = #tpu.dot_dimension_numbers<[1], [0], [0], [1], [0, 0, 1, 1], [], []>} : vector<32x12xf32>, vector<12x128xf32>, vector<32x128xf32> -> vector<32x128xf32>
    %111 = arith.addf %110, %4 : vector<32x128xf32>
    %cst_65 = arith.constant 0.000000e+00 : f32
    %112 = vector.broadcast %cst_65 : f32 to vector<32x128xf32>
    %113 = arith.maximumf %111, %112 : vector<32x128xf32>
    %cst_66 = arith.constant dense<0.000000e+00> : vector<16x128xf32>
    %114 = tpu.matmul %1, %113, %cst_66 {dimension_numbers = #tpu.dot_dimension_numbers<[1], [0], [0], [1], [0, 0, 1, 1], [], []>} : vector<16x32xf32>, vector<32x128xf32>, vector<16x128xf32> -> vector<16x128xf32>
    %115 = arith.addf %114, %7 : vector<16x128xf32>
    %cst_67 = arith.constant 0.000000e+00 : f32
    %116 = vector.broadcast %cst_67 : f32 to vector<16x128xf32>
    %117 = arith.maximumf %115, %116 : vector<16x128xf32>
    %118 = arith.addf %107, %117 : vector<16x128xf32>
    %c10 = arith.constant 10 : index
    %c0_68 = arith.constant 0 : index
    %c0_69 = arith.constant 0 : index
    %119 = vector.load %arg1[%c10, %c0_68, %c0_69] : memref<24x12x128xf32, #tpu.memory_space<vmem>>, vector<1x12x128xf32>
    %120 = vector.shape_cast %119 : vector<1x12x128xf32> to vector<12x128xf32>
    %cst_70 = arith.constant dense<0.000000e+00> : vector<32x128xf32>
    %121 = tpu.matmul %0, %120, %cst_70 {dimension_numbers = #tpu.dot_dimension_numbers<[1], [0], [0], [1], [0, 0, 1, 1], [], []>} : vector<32x12xf32>, vector<12x128xf32>, vector<32x128xf32> -> vector<32x128xf32>
    %122 = arith.addf %121, %4 : vector<32x128xf32>
    %cst_71 = arith.constant 0.000000e+00 : f32
    %123 = vector.broadcast %cst_71 : f32 to vector<32x128xf32>
    %124 = arith.maximumf %122, %123 : vector<32x128xf32>
    %cst_72 = arith.constant dense<0.000000e+00> : vector<16x128xf32>
    %125 = tpu.matmul %1, %124, %cst_72 {dimension_numbers = #tpu.dot_dimension_numbers<[1], [0], [0], [1], [0, 0, 1, 1], [], []>} : vector<16x32xf32>, vector<32x128xf32>, vector<16x128xf32> -> vector<16x128xf32>
    %126 = arith.addf %125, %7 : vector<16x128xf32>
    %cst_73 = arith.constant 0.000000e+00 : f32
    %127 = vector.broadcast %cst_73 : f32 to vector<16x128xf32>
    %128 = arith.maximumf %126, %127 : vector<16x128xf32>
    %129 = arith.addf %118, %128 : vector<16x128xf32>
    %c11 = arith.constant 11 : index
    %c0_74 = arith.constant 0 : index
    %c0_75 = arith.constant 0 : index
    %130 = vector.load %arg1[%c11, %c0_74, %c0_75] : memref<24x12x128xf32, #tpu.memory_space<vmem>>, vector<1x12x128xf32>
    %131 = vector.shape_cast %130 : vector<1x12x128xf32> to vector<12x128xf32>
    %cst_76 = arith.constant dense<0.000000e+00> : vector<32x128xf32>
    %132 = tpu.matmul %0, %131, %cst_76 {dimension_numbers = #tpu.dot_dimension_numbers<[1], [0], [0], [1], [0, 0, 1, 1], [], []>} : vector<32x12xf32>, vector<12x128xf32>, vector<32x128xf32> -> vector<32x128xf32>
    %133 = arith.addf %132, %4 : vector<32x128xf32>
    %cst_77 = arith.constant 0.000000e+00 : f32
    %134 = vector.broadcast %cst_77 : f32 to vector<32x128xf32>
    %135 = arith.maximumf %133, %134 : vector<32x128xf32>
    %cst_78 = arith.constant dense<0.000000e+00> : vector<16x128xf32>
    %136 = tpu.matmul %1, %135, %cst_78 {dimension_numbers = #tpu.dot_dimension_numbers<[1], [0], [0], [1], [0, 0, 1, 1], [], []>} : vector<16x32xf32>, vector<32x128xf32>, vector<16x128xf32> -> vector<16x128xf32>
    %137 = arith.addf %136, %7 : vector<16x128xf32>
    %cst_79 = arith.constant 0.000000e+00 : f32
    %138 = vector.broadcast %cst_79 : f32 to vector<16x128xf32>
    %139 = arith.maximumf %137, %138 : vector<16x128xf32>
    %140 = arith.addf %129, %139 : vector<16x128xf32>
    %c12 = arith.constant 12 : index
    %c0_80 = arith.constant 0 : index
    %c0_81 = arith.constant 0 : index
    %141 = vector.load %arg1[%c12, %c0_80, %c0_81] : memref<24x12x128xf32, #tpu.memory_space<vmem>>, vector<1x12x128xf32>
    %142 = vector.shape_cast %141 : vector<1x12x128xf32> to vector<12x128xf32>
    %cst_82 = arith.constant dense<0.000000e+00> : vector<32x128xf32>
    %143 = tpu.matmul %0, %142, %cst_82 {dimension_numbers = #tpu.dot_dimension_numbers<[1], [0], [0], [1], [0, 0, 1, 1], [], []>} : vector<32x12xf32>, vector<12x128xf32>, vector<32x128xf32> -> vector<32x128xf32>
    %144 = arith.addf %143, %4 : vector<32x128xf32>
    %cst_83 = arith.constant 0.000000e+00 : f32
    %145 = vector.broadcast %cst_83 : f32 to vector<32x128xf32>
    %146 = arith.maximumf %144, %145 : vector<32x128xf32>
    %cst_84 = arith.constant dense<0.000000e+00> : vector<16x128xf32>
    %147 = tpu.matmul %1, %146, %cst_84 {dimension_numbers = #tpu.dot_dimension_numbers<[1], [0], [0], [1], [0, 0, 1, 1], [], []>} : vector<16x32xf32>, vector<32x128xf32>, vector<16x128xf32> -> vector<16x128xf32>
    %148 = arith.addf %147, %7 : vector<16x128xf32>
    %cst_85 = arith.constant 0.000000e+00 : f32
    %149 = vector.broadcast %cst_85 : f32 to vector<16x128xf32>
    %150 = arith.maximumf %148, %149 : vector<16x128xf32>
    %151 = arith.addf %140, %150 : vector<16x128xf32>
    %c13 = arith.constant 13 : index
    %c0_86 = arith.constant 0 : index
    %c0_87 = arith.constant 0 : index
    %152 = vector.load %arg1[%c13, %c0_86, %c0_87] : memref<24x12x128xf32, #tpu.memory_space<vmem>>, vector<1x12x128xf32>
    %153 = vector.shape_cast %152 : vector<1x12x128xf32> to vector<12x128xf32>
    %cst_88 = arith.constant dense<0.000000e+00> : vector<32x128xf32>
    %154 = tpu.matmul %0, %153, %cst_88 {dimension_numbers = #tpu.dot_dimension_numbers<[1], [0], [0], [1], [0, 0, 1, 1], [], []>} : vector<32x12xf32>, vector<12x128xf32>, vector<32x128xf32> -> vector<32x128xf32>
    %155 = arith.addf %154, %4 : vector<32x128xf32>
    %cst_89 = arith.constant 0.000000e+00 : f32
    %156 = vector.broadcast %cst_89 : f32 to vector<32x128xf32>
    %157 = arith.maximumf %155, %156 : vector<32x128xf32>
    %cst_90 = arith.constant dense<0.000000e+00> : vector<16x128xf32>
    %158 = tpu.matmul %1, %157, %cst_90 {dimension_numbers = #tpu.dot_dimension_numbers<[1], [0], [0], [1], [0, 0, 1, 1], [], []>} : vector<16x32xf32>, vector<32x128xf32>, vector<16x128xf32> -> vector<16x128xf32>
    %159 = arith.addf %158, %7 : vector<16x128xf32>
    %cst_91 = arith.constant 0.000000e+00 : f32
    %160 = vector.broadcast %cst_91 : f32 to vector<16x128xf32>
    %161 = arith.maximumf %159, %160 : vector<16x128xf32>
    %162 = arith.addf %151, %161 : vector<16x128xf32>
    %c14 = arith.constant 14 : index
    %c0_92 = arith.constant 0 : index
    %c0_93 = arith.constant 0 : index
    %163 = vector.load %arg1[%c14, %c0_92, %c0_93] : memref<24x12x128xf32, #tpu.memory_space<vmem>>, vector<1x12x128xf32>
    %164 = vector.shape_cast %163 : vector<1x12x128xf32> to vector<12x128xf32>
    %cst_94 = arith.constant dense<0.000000e+00> : vector<32x128xf32>
    %165 = tpu.matmul %0, %164, %cst_94 {dimension_numbers = #tpu.dot_dimension_numbers<[1], [0], [0], [1], [0, 0, 1, 1], [], []>} : vector<32x12xf32>, vector<12x128xf32>, vector<32x128xf32> -> vector<32x128xf32>
    %166 = arith.addf %165, %4 : vector<32x128xf32>
    %cst_95 = arith.constant 0.000000e+00 : f32
    %167 = vector.broadcast %cst_95 : f32 to vector<32x128xf32>
    %168 = arith.maximumf %166, %167 : vector<32x128xf32>
    %cst_96 = arith.constant dense<0.000000e+00> : vector<16x128xf32>
    %169 = tpu.matmul %1, %168, %cst_96 {dimension_numbers = #tpu.dot_dimension_numbers<[1], [0], [0], [1], [0, 0, 1, 1], [], []>} : vector<16x32xf32>, vector<32x128xf32>, vector<16x128xf32> -> vector<16x128xf32>
    %170 = arith.addf %169, %7 : vector<16x128xf32>
    %cst_97 = arith.constant 0.000000e+00 : f32
    %171 = vector.broadcast %cst_97 : f32 to vector<16x128xf32>
    %172 = arith.maximumf %170, %171 : vector<16x128xf32>
    %173 = arith.addf %162, %172 : vector<16x128xf32>
    %c15 = arith.constant 15 : index
    %c0_98 = arith.constant 0 : index
    %c0_99 = arith.constant 0 : index
    %174 = vector.load %arg1[%c15, %c0_98, %c0_99] : memref<24x12x128xf32, #tpu.memory_space<vmem>>, vector<1x12x128xf32>
    %175 = vector.shape_cast %174 : vector<1x12x128xf32> to vector<12x128xf32>
    %cst_100 = arith.constant dense<0.000000e+00> : vector<32x128xf32>
    %176 = tpu.matmul %0, %175, %cst_100 {dimension_numbers = #tpu.dot_dimension_numbers<[1], [0], [0], [1], [0, 0, 1, 1], [], []>} : vector<32x12xf32>, vector<12x128xf32>, vector<32x128xf32> -> vector<32x128xf32>
    %177 = arith.addf %176, %4 : vector<32x128xf32>
    %cst_101 = arith.constant 0.000000e+00 : f32
    %178 = vector.broadcast %cst_101 : f32 to vector<32x128xf32>
    %179 = arith.maximumf %177, %178 : vector<32x128xf32>
    %cst_102 = arith.constant dense<0.000000e+00> : vector<16x128xf32>
    %180 = tpu.matmul %1, %179, %cst_102 {dimension_numbers = #tpu.dot_dimension_numbers<[1], [0], [0], [1], [0, 0, 1, 1], [], []>} : vector<16x32xf32>, vector<32x128xf32>, vector<16x128xf32> -> vector<16x128xf32>
    %181 = arith.addf %180, %7 : vector<16x128xf32>
    %cst_103 = arith.constant 0.000000e+00 : f32
    %182 = vector.broadcast %cst_103 : f32 to vector<16x128xf32>
    %183 = arith.maximumf %181, %182 : vector<16x128xf32>
    %184 = arith.addf %173, %183 : vector<16x128xf32>
    %c16 = arith.constant 16 : index
    %c0_104 = arith.constant 0 : index
    %c0_105 = arith.constant 0 : index
    %185 = vector.load %arg1[%c16, %c0_104, %c0_105] : memref<24x12x128xf32, #tpu.memory_space<vmem>>, vector<1x12x128xf32>
    %186 = vector.shape_cast %185 : vector<1x12x128xf32> to vector<12x128xf32>
    %cst_106 = arith.constant dense<0.000000e+00> : vector<32x128xf32>
    %187 = tpu.matmul %0, %186, %cst_106 {dimension_numbers = #tpu.dot_dimension_numbers<[1], [0], [0], [1], [0, 0, 1, 1], [], []>} : vector<32x12xf32>, vector<12x128xf32>, vector<32x128xf32> -> vector<32x128xf32>
    %188 = arith.addf %187, %4 : vector<32x128xf32>
    %cst_107 = arith.constant 0.000000e+00 : f32
    %189 = vector.broadcast %cst_107 : f32 to vector<32x128xf32>
    %190 = arith.maximumf %188, %189 : vector<32x128xf32>
    %cst_108 = arith.constant dense<0.000000e+00> : vector<16x128xf32>
    %191 = tpu.matmul %1, %190, %cst_108 {dimension_numbers = #tpu.dot_dimension_numbers<[1], [0], [0], [1], [0, 0, 1, 1], [], []>} : vector<16x32xf32>, vector<32x128xf32>, vector<16x128xf32> -> vector<16x128xf32>
    %192 = arith.addf %191, %7 : vector<16x128xf32>
    %cst_109 = arith.constant 0.000000e+00 : f32
    %193 = vector.broadcast %cst_109 : f32 to vector<16x128xf32>
    %194 = arith.maximumf %192, %193 : vector<16x128xf32>
    %195 = arith.addf %184, %194 : vector<16x128xf32>
    %c17 = arith.constant 17 : index
    %c0_110 = arith.constant 0 : index
    %c0_111 = arith.constant 0 : index
    %196 = vector.load %arg1[%c17, %c0_110, %c0_111] : memref<24x12x128xf32, #tpu.memory_space<vmem>>, vector<1x12x128xf32>
    %197 = vector.shape_cast %196 : vector<1x12x128xf32> to vector<12x128xf32>
    %cst_112 = arith.constant dense<0.000000e+00> : vector<32x128xf32>
    %198 = tpu.matmul %0, %197, %cst_112 {dimension_numbers = #tpu.dot_dimension_numbers<[1], [0], [0], [1], [0, 0, 1, 1], [], []>} : vector<32x12xf32>, vector<12x128xf32>, vector<32x128xf32> -> vector<32x128xf32>
    %199 = arith.addf %198, %4 : vector<32x128xf32>
    %cst_113 = arith.constant 0.000000e+00 : f32
    %200 = vector.broadcast %cst_113 : f32 to vector<32x128xf32>
    %201 = arith.maximumf %199, %200 : vector<32x128xf32>
    %cst_114 = arith.constant dense<0.000000e+00> : vector<16x128xf32>
    %202 = tpu.matmul %1, %201, %cst_114 {dimension_numbers = #tpu.dot_dimension_numbers<[1], [0], [0], [1], [0, 0, 1, 1], [], []>} : vector<16x32xf32>, vector<32x128xf32>, vector<16x128xf32> -> vector<16x128xf32>
    %203 = arith.addf %202, %7 : vector<16x128xf32>
    %cst_115 = arith.constant 0.000000e+00 : f32
    %204 = vector.broadcast %cst_115 : f32 to vector<16x128xf32>
    %205 = arith.maximumf %203, %204 : vector<16x128xf32>
    %206 = arith.addf %195, %205 : vector<16x128xf32>
    %c18 = arith.constant 18 : index
    %c0_116 = arith.constant 0 : index
    %c0_117 = arith.constant 0 : index
    %207 = vector.load %arg1[%c18, %c0_116, %c0_117] : memref<24x12x128xf32, #tpu.memory_space<vmem>>, vector<1x12x128xf32>
    %208 = vector.shape_cast %207 : vector<1x12x128xf32> to vector<12x128xf32>
    %cst_118 = arith.constant dense<0.000000e+00> : vector<32x128xf32>
    %209 = tpu.matmul %0, %208, %cst_118 {dimension_numbers = #tpu.dot_dimension_numbers<[1], [0], [0], [1], [0, 0, 1, 1], [], []>} : vector<32x12xf32>, vector<12x128xf32>, vector<32x128xf32> -> vector<32x128xf32>
    %210 = arith.addf %209, %4 : vector<32x128xf32>
    %cst_119 = arith.constant 0.000000e+00 : f32
    %211 = vector.broadcast %cst_119 : f32 to vector<32x128xf32>
    %212 = arith.maximumf %210, %211 : vector<32x128xf32>
    %cst_120 = arith.constant dense<0.000000e+00> : vector<16x128xf32>
    %213 = tpu.matmul %1, %212, %cst_120 {dimension_numbers = #tpu.dot_dimension_numbers<[1], [0], [0], [1], [0, 0, 1, 1], [], []>} : vector<16x32xf32>, vector<32x128xf32>, vector<16x128xf32> -> vector<16x128xf32>
    %214 = arith.addf %213, %7 : vector<16x128xf32>
    %cst_121 = arith.constant 0.000000e+00 : f32
    %215 = vector.broadcast %cst_121 : f32 to vector<16x128xf32>
    %216 = arith.maximumf %214, %215 : vector<16x128xf32>
    %217 = arith.addf %206, %216 : vector<16x128xf32>
    %c19 = arith.constant 19 : index
    %c0_122 = arith.constant 0 : index
    %c0_123 = arith.constant 0 : index
    %218 = vector.load %arg1[%c19, %c0_122, %c0_123] : memref<24x12x128xf32, #tpu.memory_space<vmem>>, vector<1x12x128xf32>
    %219 = vector.shape_cast %218 : vector<1x12x128xf32> to vector<12x128xf32>
    %cst_124 = arith.constant dense<0.000000e+00> : vector<32x128xf32>
    %220 = tpu.matmul %0, %219, %cst_124 {dimension_numbers = #tpu.dot_dimension_numbers<[1], [0], [0], [1], [0, 0, 1, 1], [], []>} : vector<32x12xf32>, vector<12x128xf32>, vector<32x128xf32> -> vector<32x128xf32>
    %221 = arith.addf %220, %4 : vector<32x128xf32>
    %cst_125 = arith.constant 0.000000e+00 : f32
    %222 = vector.broadcast %cst_125 : f32 to vector<32x128xf32>
    %223 = arith.maximumf %221, %222 : vector<32x128xf32>
    %cst_126 = arith.constant dense<0.000000e+00> : vector<16x128xf32>
    %224 = tpu.matmul %1, %223, %cst_126 {dimension_numbers = #tpu.dot_dimension_numbers<[1], [0], [0], [1], [0, 0, 1, 1], [], []>} : vector<16x32xf32>, vector<32x128xf32>, vector<16x128xf32> -> vector<16x128xf32>
    %225 = arith.addf %224, %7 : vector<16x128xf32>
    %cst_127 = arith.constant 0.000000e+00 : f32
    %226 = vector.broadcast %cst_127 : f32 to vector<16x128xf32>
    %227 = arith.maximumf %225, %226 : vector<16x128xf32>
    %228 = arith.addf %217, %227 : vector<16x128xf32>
    %c20 = arith.constant 20 : index
    %c0_128 = arith.constant 0 : index
    %c0_129 = arith.constant 0 : index
    %229 = vector.load %arg1[%c20, %c0_128, %c0_129] : memref<24x12x128xf32, #tpu.memory_space<vmem>>, vector<1x12x128xf32>
    %230 = vector.shape_cast %229 : vector<1x12x128xf32> to vector<12x128xf32>
    %cst_130 = arith.constant dense<0.000000e+00> : vector<32x128xf32>
    %231 = tpu.matmul %0, %230, %cst_130 {dimension_numbers = #tpu.dot_dimension_numbers<[1], [0], [0], [1], [0, 0, 1, 1], [], []>} : vector<32x12xf32>, vector<12x128xf32>, vector<32x128xf32> -> vector<32x128xf32>
    %232 = arith.addf %231, %4 : vector<32x128xf32>
    %cst_131 = arith.constant 0.000000e+00 : f32
    %233 = vector.broadcast %cst_131 : f32 to vector<32x128xf32>
    %234 = arith.maximumf %232, %233 : vector<32x128xf32>
    %cst_132 = arith.constant dense<0.000000e+00> : vector<16x128xf32>
    %235 = tpu.matmul %1, %234, %cst_132 {dimension_numbers = #tpu.dot_dimension_numbers<[1], [0], [0], [1], [0, 0, 1, 1], [], []>} : vector<16x32xf32>, vector<32x128xf32>, vector<16x128xf32> -> vector<16x128xf32>
    %236 = arith.addf %235, %7 : vector<16x128xf32>
    %cst_133 = arith.constant 0.000000e+00 : f32
    %237 = vector.broadcast %cst_133 : f32 to vector<16x128xf32>
    %238 = arith.maximumf %236, %237 : vector<16x128xf32>
    %239 = arith.addf %228, %238 : vector<16x128xf32>
    %c21 = arith.constant 21 : index
    %c0_134 = arith.constant 0 : index
    %c0_135 = arith.constant 0 : index
    %240 = vector.load %arg1[%c21, %c0_134, %c0_135] : memref<24x12x128xf32, #tpu.memory_space<vmem>>, vector<1x12x128xf32>
    %241 = vector.shape_cast %240 : vector<1x12x128xf32> to vector<12x128xf32>
    %cst_136 = arith.constant dense<0.000000e+00> : vector<32x128xf32>
    %242 = tpu.matmul %0, %241, %cst_136 {dimension_numbers = #tpu.dot_dimension_numbers<[1], [0], [0], [1], [0, 0, 1, 1], [], []>} : vector<32x12xf32>, vector<12x128xf32>, vector<32x128xf32> -> vector<32x128xf32>
    %243 = arith.addf %242, %4 : vector<32x128xf32>
    %cst_137 = arith.constant 0.000000e+00 : f32
    %244 = vector.broadcast %cst_137 : f32 to vector<32x128xf32>
    %245 = arith.maximumf %243, %244 : vector<32x128xf32>
    %cst_138 = arith.constant dense<0.000000e+00> : vector<16x128xf32>
    %246 = tpu.matmul %1, %245, %cst_138 {dimension_numbers = #tpu.dot_dimension_numbers<[1], [0], [0], [1], [0, 0, 1, 1], [], []>} : vector<16x32xf32>, vector<32x128xf32>, vector<16x128xf32> -> vector<16x128xf32>
    %247 = arith.addf %246, %7 : vector<16x128xf32>
    %cst_139 = arith.constant 0.000000e+00 : f32
    %248 = vector.broadcast %cst_139 : f32 to vector<16x128xf32>
    %249 = arith.maximumf %247, %248 : vector<16x128xf32>
    %250 = arith.addf %239, %249 : vector<16x128xf32>
    %c22 = arith.constant 22 : index
    %c0_140 = arith.constant 0 : index
    %c0_141 = arith.constant 0 : index
    %251 = vector.load %arg1[%c22, %c0_140, %c0_141] : memref<24x12x128xf32, #tpu.memory_space<vmem>>, vector<1x12x128xf32>
    %252 = vector.shape_cast %251 : vector<1x12x128xf32> to vector<12x128xf32>
    %cst_142 = arith.constant dense<0.000000e+00> : vector<32x128xf32>
    %253 = tpu.matmul %0, %252, %cst_142 {dimension_numbers = #tpu.dot_dimension_numbers<[1], [0], [0], [1], [0, 0, 1, 1], [], []>} : vector<32x12xf32>, vector<12x128xf32>, vector<32x128xf32> -> vector<32x128xf32>
    %254 = arith.addf %253, %4 : vector<32x128xf32>
    %cst_143 = arith.constant 0.000000e+00 : f32
    %255 = vector.broadcast %cst_143 : f32 to vector<32x128xf32>
    %256 = arith.maximumf %254, %255 : vector<32x128xf32>
    %cst_144 = arith.constant dense<0.000000e+00> : vector<16x128xf32>
    %257 = tpu.matmul %1, %256, %cst_144 {dimension_numbers = #tpu.dot_dimension_numbers<[1], [0], [0], [1], [0, 0, 1, 1], [], []>} : vector<16x32xf32>, vector<32x128xf32>, vector<16x128xf32> -> vector<16x128xf32>
    %258 = arith.addf %257, %7 : vector<16x128xf32>
    %cst_145 = arith.constant 0.000000e+00 : f32
    %259 = vector.broadcast %cst_145 : f32 to vector<16x128xf32>
    %260 = arith.maximumf %258, %259 : vector<16x128xf32>
    %261 = arith.addf %250, %260 : vector<16x128xf32>
    %c23 = arith.constant 23 : index
    %c0_146 = arith.constant 0 : index
    %c0_147 = arith.constant 0 : index
    %262 = vector.load %arg1[%c23, %c0_146, %c0_147] : memref<24x12x128xf32, #tpu.memory_space<vmem>>, vector<1x12x128xf32>
    %263 = vector.shape_cast %262 : vector<1x12x128xf32> to vector<12x128xf32>
    %cst_148 = arith.constant dense<0.000000e+00> : vector<32x128xf32>
    %264 = tpu.matmul %0, %263, %cst_148 {dimension_numbers = #tpu.dot_dimension_numbers<[1], [0], [0], [1], [0, 0, 1, 1], [], []>} : vector<32x12xf32>, vector<12x128xf32>, vector<32x128xf32> -> vector<32x128xf32>
    %265 = arith.addf %264, %4 : vector<32x128xf32>
    %cst_149 = arith.constant 0.000000e+00 : f32
    %266 = vector.broadcast %cst_149 : f32 to vector<32x128xf32>
    %267 = arith.maximumf %265, %266 : vector<32x128xf32>
    %cst_150 = arith.constant dense<0.000000e+00> : vector<16x128xf32>
    %268 = tpu.matmul %1, %267, %cst_150 {dimension_numbers = #tpu.dot_dimension_numbers<[1], [0], [0], [1], [0, 0, 1, 1], [], []>} : vector<16x32xf32>, vector<32x128xf32>, vector<16x128xf32> -> vector<16x128xf32>
    %269 = arith.addf %268, %7 : vector<16x128xf32>
    %cst_151 = arith.constant 0.000000e+00 : f32
    %270 = vector.broadcast %cst_151 : f32 to vector<16x128xf32>
    %271 = arith.maximumf %269, %270 : vector<16x128xf32>
    %272 = arith.addf %261, %271 : vector<16x128xf32>
    %c0_152 = arith.constant 0 : index
    %c0_153 = arith.constant 0 : index
    %273 = vector.load %arg6[%c0_152, %c0_153] : memref<10x16xf32, #tpu.memory_space<vmem>>, vector<10x16xf32>
    %cst_154 = arith.constant dense<0.000000e+00> : vector<10x128xf32>
    %274 = tpu.matmul %273, %272, %cst_154 {dimension_numbers = #tpu.dot_dimension_numbers<[1], [0], [0], [1], [0, 0, 1, 1], [], []>} : vector<10x16xf32>, vector<16x128xf32>, vector<10x128xf32> -> vector<10x128xf32>
    %c0_155 = arith.constant 0 : index
    %c0_156 = arith.constant 0 : index
    %275 = vector.load %arg7[%c0_155, %c0_156] : memref<10x1xf32, #tpu.memory_space<vmem>>, vector<10x1xf32>
    %276 = vector.broadcast %275 : vector<10x1xf32> to vector<10x128xf32>
    %277 = arith.addf %274, %276 : vector<10x128xf32>
    %c0_157 = arith.constant 0 : index
    %c0_158 = arith.constant 0 : index
    %278 = vector.load %arg8[%c0_157, %c0_158] : memref<10x128xf32, #tpu.memory_space<vmem>>, vector<10x128xf32>
    tpu.vector_store %arg8[%c0_157, %c0_158], %277 {strides = array<i32>} : memref<10x128xf32, #tpu.memory_space<vmem>>, vector<10x128xf32>,
    return
  }
  func.func @transform_0(%arg0: i32) -> (i32, i32, i32) {
    %c0_i32 = arith.constant 0 : i32
    %c0_i32_0 = arith.constant 0 : i32
    %c0_i32_1 = arith.constant 0 : i32
    return %c0_i32, %c0_i32_0, %arg0 : i32, i32, i32
  }
  func.func @transform_1(%arg0: i32) -> (i32, i32) {
    %c0_i32 = arith.constant 0 : i32
    %c0_i32_0 = arith.constant 0 : i32
    %c0_i32_1 = arith.constant 0 : i32
    return %c0_i32, %c0_i32_0 : i32, i32
  }
  func.func @transform_2(%arg0: i32) -> (i32, i32) {
    %c0_i32 = arith.constant 0 : i32
    %c0_i32_0 = arith.constant 0 : i32
    %c0_i32_1 = arith.constant 0 : i32
    return %c0_i32, %c0_i32_0 : i32, i32
  }
  func.func @transform_3(%arg0: i32) -> (i32, i32) {
    %c0_i32 = arith.constant 0 : i32
    %c0_i32_0 = arith.constant 0 : i32
    %c0_i32_1 = arith.constant 0 : i32
    return %c0_i32, %c0_i32_0 : i32, i32
  }
  func.func @transform_4(%arg0: i32) -> (i32, i32) {
    %c0_i32 = arith.constant 0 : i32
    %c0_i32_0 = arith.constant 0 : i32
    %c0_i32_1 = arith.constant 0 : i32
    return %c0_i32, %c0_i32_0 : i32, i32
  }
  func.func @transform_5(%arg0: i32) -> (i32, i32) {
    %c0_i32 = arith.constant 0 : i32
    %c0_i32_0 = arith.constant 0 : i32
    %c0_i32_1 = arith.constant 0 : i32
    return %c0_i32, %c0_i32_0 : i32, i32
  }
  func.func @transform_6(%arg0: i32) -> (i32, i32) {
    %c0_i32 = arith.constant 0 : i32
    %c0_i32_0 = arith.constant 0 : i32
    %c0_i32_1 = arith.constant 0 : i32
    return %c0_i32, %c0_i32_0 : i32, i32
  }
  func.func @transform_7(%arg0: i32) -> (i32, i32) {
    %c0_i32 = arith.constant 0 : i32
    %c0_i32_0 = arith.constant 0 : i32
    return %c0_i32, %arg0 : i32, i32
  }
}

</mosaic_0001>

<llo_original>
// kernel: tpu_custom_call.1
$region0: #{tpu_custom_call.1}
  #allocation0 [shape = 'u32[]', space=smem, size = 0x4, offset = 0x4, fixed_abs, tag = 'smem constant byte address 0x4 - core index']
  #allocation1 [shape = 'u32[144,128]{1,0:T(1,128)}', space=vmem, size = 0x12000, scoped, tag = 'internal scratch']
  %s0 = inlined_call_operand.vmem [shape: f32[24,12,256], index: 0, kind: input, shape index: {}]
  %s1 = inlined_call_operand.vmem [shape: f32[32,12], index: 1, kind: input, shape index: {}]
  %s2 = inlined_call_operand.vmem [shape: f32[32,1], index: 2, kind: input, shape index: {}]
  %s3 = inlined_call_operand.vmem [shape: f32[16,32], index: 3, kind: input, shape index: {}]
  %s4 = inlined_call_operand.vmem [shape: f32[16,1], index: 4, kind: input, shape index: {}]
  %s5 = inlined_call_operand.vmem [shape: f32[10,16], index: 5, kind: input, shape index: {}]
  %s6 = inlined_call_operand.vmem [shape: f32[10,1], index: 6, kind: input, shape index: {}]
  %s7 = inlined_call_operand.hbm [shape: f32[10,256], index: 7, kind: output, shape index: {}]
  %s8 = sld [smem:[#allocation0]]
  $region99: #{tpu_custom_call.1} parent=0
    _
  %s10 = ssub.s32 1, %s8
  %s11 = scalar_select 0, %s10, %s8
  $region1: #{tpu_custom_call.1} parent=0
    #allocation2 [shape = 'u8[393216]{0}', space=vmem, size = 0x60000, scoped, tag = 'input window, operand 0']
    #allocation3 [shape = 'u8[16384]{0}', space=vmem, size = 0x4000, scoped, tag = 'output window, operand 0']
    #allocation4 [shape = 's32[2]{0}', space=sflag, size = 0x8, scoped, tag = 'scoped memory for tpu_custom_call.1']
    %12 = vsyncpa [#allocation4], 0
    %s13 = scalar_lea.sflag [#allocation4], 1
    %14 = vsyncpa %s13, 0
    loop: start=0, step=1, limit=4
    $region2: #{tpu_custom_call.1} parent=1 // loop_pre_header
      _
    $region3: #{tpu_custom_call.1} parent=1 // loop_header
      %s16 = sphi 0, %s20
      %p17 = scmp.ge.s32.totalorder %s16, 4
      %s26 = sphi 0, %s28
      %s29 = sphi 0, %s26
      %s30 = sphi 0, %s29
      %s46 = sphi 0, %s30
      %s50 = sphi 0, %s50
      %s52 = sphi 0, %s50
      %s53 = sphi 0, %s52
      %s67 = sphi 0, %s53
      %s71 = sphi 0, %s71
      %s73 = sphi 0, %s71
      %s74 = sphi 0, %s73
      %s88 = sphi 0, %s74
      %s92 = sphi 0, %s92
      %s94 = sphi 0, %s92
      %s95 = sphi 0, %s94
      %s109 = sphi 0, %s95
      %s113 = sphi 0, %s113
      %s115 = sphi 0, %s113
      %s116 = sphi 0, %s115
      %s130 = sphi 0, %s116
      %s134 = sphi 0, %s134
      %s136 = sphi 0, %s134
      %s137 = sphi 0, %s136
      %s151 = sphi 0, %s137
      %s155 = sphi 0, %s155
      %s157 = sphi 0, %s155
      %s158 = sphi 0, %s157
      %s172 = sphi 0, %s158
      %s178 = sphi 0, %s180
      %s181 = sphi 0, %s178
      %s182 = sphi 0, %s181
      %s198 = sphi 0, %s182
    $region4: #{tpu_custom_call.1} parent=1 // loop_header_branch
      %19 = sbr.rel (%p17) target = $region8
    $region5: #{tpu_custom_call.1} parent=1 // loop_body
      %s21 = ssub.s32 %s16, 1
      %s22 = ssub.s32 %s16, 2
      %s23 = sadd.s32 %s16, 1
      %s24 = ssub.s32 %s16, %s23
      %p25 = scmp.eq.s32.totalorder %s24, 0
      %s27 = sadd.s32 %s26, 1
      %s28 = scalar_select %p25, %s26, %s27
      %p31 = pneg %p25
      %p32 = scmp.eq.s32.totalorder %s16, 1
      %p33 = por %p31, %p32
      %p34 = scmp.ne.s32.totalorder %s26, %s29
      %p35 = scmp.eq.s32.totalorder %s16, 0
      %p36 = por %p34, %p35
      %p37 = scmp.ne.s32.totalorder %s26, %s29
      %p38 = scmp.eq.s32.totalorder %s21, 1
      %p39 = por %p37, %p38
      %p40 = scmp.ne.s32.totalorder %s29, %s30
      %p41 = scmp.eq.s32.totalorder %s21, 0
      %p42 = por %p40, %p41
      %p43 = scmp.ne.s32.totalorder %s29, %s30
      %p44 = scmp.eq.s32.totalorder %s22, 1
      %p45 = por %p43, %p44
      %p47 = scmp.ne.s32.totalorder %s30, %s46
      %p48 = scmp.eq.s32.totalorder %s22, 0
      %p49 = por %p47, %p48
      %s51 = sadd.s32 %s50, 1
      %p54 = scmp.eq.s32.totalorder %s16, 1
      %p55 = scmp.ne.s32.totalorder %s50, %s52
      %p56 = scmp.eq.s32.totalorder %s16, 0
      %p57 = por %p55, %p56
      %p58 = scmp.ne.s32.totalorder %s50, %s52
      %p59 = scmp.eq.s32.totalorder %s21, 1
      %p60 = por %p58, %p59
      %p61 = scmp.ne.s32.totalorder %s52, %s53
      %p62 = scmp.eq.s32.totalorder %s21, 0
      %p63 = por %p61, %p62
      %p64 = scmp.ne.s32.totalorder %s52, %s53
      %p65 = scmp.eq.s32.totalorder %s22, 1
      %p66 = por %p64, %p65
      %p68 = scmp.ne.s32.totalorder %s53, %s67
      %p69 = scmp.eq.s32.totalorder %s22, 0
      %p70 = por %p68, %p69
      %s72 = sadd.s32 %s71, 1
      %p75 = scmp.eq.s32.totalorder %s16, 1
      %p76 = scmp.ne.s32.totalorder %s71, %s73
      %p77 = scmp.eq.s32.totalorder %s16, 0
      %p78 = por %p76, %p77
      %p79 = scmp.ne.s32.totalorder %s71, %s73
      %p80 = scmp.eq.s32.totalorder %s21, 1
      %p81 = por %p79, %p80
      %p82 = scmp.ne.s32.totalorder %s73, %s74
      %p83 = scmp.eq.s32.totalorder %s21, 0
      %p84 = por %p82, %p83
      %p85 = scmp.ne.s32.totalorder %s73, %s74
      %p86 = scmp.eq.s32.totalorder %s22, 1
      %p87 = por %p85, %p86
      %p89 = scmp.ne.s32.totalorder %s74, %s88
      %p90 = scmp.eq.s32.totalorder %s22, 0
      %p91 = por %p89, %p90
      %s93 = sadd.s32 %s92, 1
      %p96 = scmp.eq.s32.totalorder %s16, 1
      %p97 = scmp.ne.s32.totalorder %s92, %s94
      %p98 = scmp.eq.s32.totalorder %s16, 0
      %p99 = por %p97, %p98
      %p100 = scmp.ne.s32.totalorder %s92, %s94
      %p101 = scmp.eq.s32.totalorder %s21, 1
      %p102 = por %p100, %p101
      %p103 = scmp.ne.s32.totalorder %s94, %s95
      %p104 = scmp.eq.s32.totalorder %s21, 0
      %p105 = por %p103, %p104
      %p106 = scmp.ne.s32.totalorder %s94, %s95
      %p107 = scmp.eq.s32.totalorder %s22, 1
      %p108 = por %p106, %p107
      %p110 = scmp.ne.s32.totalorder %s95, %s109
      %p111 = scmp.eq.s32.totalorder %s22, 0
      %p112 = por %p110, %p111
      %s114 = sadd.s32 %s113, 1
      %p117 = scmp.eq.s32.totalorder %s16, 1
      %p118 = scmp.ne.s32.totalorder %s113, %s115
      %p119 = scmp.eq.s32.totalorder %s16, 0
      %p120 = por %p118, %p119
      %p121 = scmp.ne.s32.totalorder %s113, %s115
      %p122 = scmp.eq.s32.totalorder %s21, 1
      %p123 = por %p121, %p122
      %p124 = scmp.ne.s32.totalorder %s115, %s116
      %p125 = scmp.eq.s32.totalorder %s21, 0
      %p126 = por %p124, %p125
      %p127 = scmp.ne.s32.totalorder %s115, %s116
      %p128 = scmp.eq.s32.totalorder %s22, 1
      %p129 = por %p127, %p128
      %p131 = scmp.ne.s32.totalorder %s116, %s130
      %p132 = scmp.eq.s32.totalorder %s22, 0
      %p133 = por %p131, %p132
      %s135 = sadd.s32 %s134, 1
      %p138 = scmp.eq.s32.totalorder %s16, 1
      %p139 = scmp.ne.s32.totalorder %s134, %s136
      %p140 = scmp.eq.s32.totalorder %s16, 0
      %p141 = por %p139, %p140
      %p142 = scmp.ne.s32.totalorder %s134, %s136
      %p143 = scmp.eq.s32.totalorder %s21, 1
      %p144 = por %p142, %p143
      %p145 = scmp.ne.s32.totalorder %s136, %s137
      %p146 = scmp.eq.s32.totalorder %s21, 0
      %p147 = por %p145, %p146
      %p148 = scmp.ne.s32.totalorder %s136, %s137
      %p149 = scmp.eq.s32.totalorder %s22, 1
      %p150 = por %p148, %p149
      %p152 = scmp.ne.s32.totalorder %s137, %s151
      %p153 = scmp.eq.s32.totalorder %s22, 0
      %p154 = por %p152, %p153
      %s156 = sadd.s32 %s155, 1
      %p159 = scmp.eq.s32.totalorder %s16, 1
      %p160 = scmp.ne.s32.totalorder %s155, %s157
      %p161 = scmp.eq.s32.totalorder %s16, 0
      %p162 = por %p160, %p161
      %p163 = scmp.ne.s32.totalorder %s155, %s157
      %p164 = scmp.eq.s32.totalorder %s21, 1
      %p165 = por %p163, %p164
      %p166 = scmp.ne.s32.totalorder %s157, %s158
      %p167 = scmp.eq.s32.totalorder %s21, 0
      %p168 = por %p166, %p167
      %p169 = scmp.ne.s32.totalorder %s157, %s158
      %p170 = scmp.eq.s32.totalorder %s22, 1
      %p171 = por %p169, %p170
      %p173 = scmp.ne.s32.totalorder %s158, %s172
      %p174 = scmp.eq.s32.totalorder %s22, 0
      %p175 = por %p173, %p174
      %s176 = ssub.s32 %s16, %s23
      %p177 = scmp.eq.s32.totalorder %s176, 0
      %s179 = sadd.s32 %s178, 1
      %s180 = scalar_select %p177, %s178, %s179
      %p183 = pneg %p177
      %p184 = scmp.eq.s32.totalorder %s16, 1
      %p185 = por %p183, %p184
      %p186 = scmp.ne.s32.totalorder %s178, %s181
      %p187 = scmp.eq.s32.totalorder %s16, 0
      %p188 = por %p186, %p187
      %p189 = scmp.ne.s32.totalorder %s178, %s181
      %p190 = scmp.eq.s32.totalorder %s21, 1
      %p191 = por %p189, %p190
      %p192 = scmp.ne.s32.totalorder %s181, %s182
      %p193 = scmp.eq.s32.totalorder %s21, 0
      %p194 = por %p192, %p193
      %p195 = scmp.ne.s32.totalorder %s181, %s182
      %p196 = scmp.eq.s32.totalorder %s22, 1
      %p197 = por %p195, %p196
      %p199 = scmp.ne.s32.totalorder %s182, %s198
      %p200 = scmp.eq.s32.totalorder %s22, 0
      %p201 = por %p199, %p200
      %p202 = scmp.le.s32.totalorder 1, %s16
      %p203 = scmp.lt.s32.totalorder %s16, 3
      %p204 = pnand %p202, %p203
      %p205 = pneg %p204
      // Predicated region
      $region9: #{tpu_custom_call.1} parent=5 // pred_check
        _
      $region10: #{tpu_custom_call.1} parent=5 // pred_check_branch
        %207 = sbr.rel (%p204) target = $region12
      $region11: #{tpu_custom_call.1} parent=5 // pred_region
        %s208 = ssub.s32 %s16, 1
        // Predicated region
        $region13: #{tpu_custom_call.1} parent=11 // pred_check
          %p209 = pneg %p63
        $region14: #{tpu_custom_call.1} parent=11 // pred_check_branch
          %211 = sbr.rel (%p209) target = $region16
        $region15: #{tpu_custom_call.1} parent=11 // pred_region
          _
        $region16: #{tpu_custom_call.1} parent=11 // pred_fallthru
          _
        // Predicated region
        $region17: #{tpu_custom_call.1} parent=11 // pred_check
          %p212 = pneg %p84
        $region18: #{tpu_custom_call.1} parent=11 // pred_check_branch
          %214 = sbr.rel (%p212) target = $region20
        $region19: #{tpu_custom_call.1} parent=11 // pred_region
          _
        $region20: #{tpu_custom_call.1} parent=11 // pred_fallthru
          _
        // Predicated region
        $region21: #{tpu_custom_call.1} parent=11 // pred_check
          %p215 = pneg %p105
        $region22: #{tpu_custom_call.1} parent=11 // pred_check_branch
          %217 = sbr.rel (%p215) target = $region24
        $region23: #{tpu_custom_call.1} parent=11 // pred_region
          _
        $region24: #{tpu_custom_call.1} parent=11 // pred_fallthru
          _
        // Predicated region
        $region25: #{tpu_custom_call.1} parent=11 // pred_check
          %p218 = pneg %p126
        $region26: #{tpu_custom_call.1} parent=11 // pred_check_branch
          %220 = sbr.rel (%p218) target = $region28
        $region27: #{tpu_custom_call.1} parent=11 // pred_region
          _
        $region28: #{tpu_custom_call.1} parent=11 // pred_fallthru
          _
        // Predicated region
        $region29: #{tpu_custom_call.1} parent=11 // pred_check
          %p221 = pneg %p147
        $region30: #{tpu_custom_call.1} parent=11 // pred_check_branch
          %223 = sbr.rel (%p221) target = $region32
        $region31: #{tpu_custom_call.1} parent=11 // pred_region
          _
        $region32: #{tpu_custom_call.1} parent=11 // pred_fallthru
          _
        // Predicated region
        $region33: #{tpu_custom_call.1} parent=11 // pred_check
          %p224 = pneg %p168
        $region34: #{tpu_custom_call.1} parent=11 // pred_check_branch
          %226 = sbr.rel (%p224) target = $region36
        $region35: #{tpu_custom_call.1} parent=11 // pred_region
          _
        $region36: #{tpu_custom_call.1} parent=11 // pred_fallthru
          _
      $region12: #{tpu_custom_call.1} parent=5 // pred_fallthru
        _
      %p227 = scmp.lt.s32.totalorder %s16, 2
      // Predicated region
      $region37: #{tpu_custom_call.1} parent=5 // pred_check
        %p228 = pneg %p227
      $region38: #{tpu_custom_call.1} parent=5 // pred_check_branch
        %230 = sbr.rel (%p228) target = $region40
      $region39: #{tpu_custom_call.1} parent=5 // pred_region
        // Predicated region
        $region41: #{tpu_custom_call.1} parent=39 // pred_check
          %p231 = pneg %p36
        $region42: #{tpu_custom_call.1} parent=39 // pred_check_branch
          %233 = sbr.rel (%p231) target = $region44
        $region43: #{tpu_custom_call.1} parent=39 // pred_region
          %s234 = sand.u32 %s26, 1
          %s235 = sand.u32 %s26, 1
          %s236 = smul.addr %s235, 384
          %s237 = scalar_lea.vmem [#allocation2], %s236
          %s238 = smul.addr %s16, 8
          %s239 = scalar_lea.vmem %s0, %s238
          // Predicated region
          $region45: #{tpu_custom_call.1} parent=43 // pred_check
            _
          $region46: #{tpu_custom_call.1} parent=43 // pred_check_branch
            %241 = sbr.rel (0) target = $region48
          $region47: #{tpu_custom_call.1} parent=43 // pred_region
            // Predicated region
            $region49: #{tpu_custom_call.1} parent=47 // pred_check
              _
            $region50: #{tpu_custom_call.1} parent=47 // pred_check_branch
              %243 = sbr.rel (0) target = $region52
            $region51: #{tpu_custom_call.1} parent=47 // pred_region
              // Predicated region
              $region64: #{tpu_custom_call.1} parent=51 // pred_check
                _
              $region65: #{tpu_custom_call.1} parent=51 // pred_check_branch
                %352 = sbr.rel (0) target = $region67
              $region66: #{tpu_custom_call.1} parent=51 // pred_region
                loop: start=0, step=1, limit=1
                $region68: #{tpu_custom_call.1} parent=66 // loop_pre_header
                  _
                $region69: #{tpu_custom_call.1} parent=66 // loop_header
                  %s354 = sphi 0, %s358
                  %p355 = scmp.ge.s32.totalorder %s354, 1
                  %s359 = sphi %s239, %s239
                  %s360 = sphi %s237, %s237
                $region70: #{tpu_custom_call.1} parent=66 // loop_header_branch
                  %357 = sbr.rel (%p355) target = $region74
                $region71: #{tpu_custom_call.1} parent=66 // loop_body
                  %v361 = vld [vmem:[%s359] sm:$0xff]
                  %362 = vst [vmem:[%s360] sm:$0xff] %v361
                  %v363 = vld [vmem:[%s359 + $0x10] sm:$0xff]
                  %364 = vst [vmem:[%s360 + $0x8] sm:$0xff] %v363
                  %v365 = vld [vmem:[%s359 + $0x20] sm:$0xff]
                  %366 = vst [vmem:[%s360 + $0x10] sm:$0xff] %v365
                  %v367 = vld [vmem:[%s359 + $0x30] sm:$0xff]
                  %368 = vst [vmem:[%s360 + $0x18] sm:$0xff] %v367
                  %v369 = vld [vmem:[%s359 + $0x40] sm:$0xff]
                  %370 = vst [vmem:[%s360 + $0x20] sm:$0xff] %v369
                  %v371 = vld [vmem:[%s359 + $0x50] sm:$0xff]
                  %372 = vst [vmem:[%s360 + $0x28] sm:$0xff] %v371
                  %v373 = vld [vmem:[%s359 + $0x60] sm:$0xff]
                  %374 = vst [vmem:[%s360 + $0x30] sm:$0xff] %v373
                  %v375 = vld [vmem:[%s359 + $0x70] sm:$0xff]
                  %376 = vst [vmem:[%s360 + $0x38] sm:$0xff] %v375
                  %v377 = vld [vmem:[%s359 + $0x80] sm:$0xff]
                  %378 = vst [vmem:[%s360 + $0x40] sm:$0xff] %v377
                  %v379 = vld [vmem:[%s359 + $0x90] sm:$0xff]
                  %380 = vst [vmem:[%s360 + $0x48] sm:$0xff] %v379
                  %v381 = vld [vmem:[%s359 + $0xa0] sm:$0xff]
                  %382 = vst [vmem:[%s360 + $0x50] sm:$0xff] %v381
                  %v383 = vld [vmem:[%s359 + $0xb0] sm:$0xff]
                  %384 = vst [vmem:[%s360 + $0x58] sm:$0xff] %v383
                  %v385 = vld [vmem:[%s359 + $0xc0] sm:$0xff]
                  %386 = vst [vmem:[%s360 + $0x60] sm:$0xff] %v385
                  %v387 = vld [vmem:[%s359 + $0xd0] sm:$0xff]
                  %388 = vst [vmem:[%s360 + $0x68] sm:$0xff] %v387
                  %v389 = vld [vmem:[%s359 + $0xe0] sm:$0xff]
                  %390 = vst [vmem:[%s360 + $0x70] sm:$0xff] %v389
                  %v391 = vld [vmem:[%s359 + $0xf0] sm:$0xff]
                  %392 = vst [vmem:[%s360 + $0x78] sm:$0xff] %v391
                  %v393 = vld [vmem:[%s359 + $0x100] sm:$0xff]
                  %394 = vst [vmem:[%s360 + $0x80] sm:$0xff] %v393
                  %v395 = vld [vmem:[%s359 + $0x110] sm:$0xff]
                  %396 = vst [vmem:[%s360 + $0x88] sm:$0xff] %v395
                  %v397 = vld [vmem:[%s359 + $0x120] sm:$0xff]
                  %398 = vst [vmem:[%s360 + $0x90] sm:$0xff] %v397
                  %v399 = vld [vmem:[%s359 + $0x130] sm:$0xff]
                  %400 = vst [vmem:[%s360 + $0x98] sm:$0xff] %v399
                  %v401 = vld [vmem:[%s359 + $0x140] sm:$0xff]
                  %402 = vst [vmem:[%s360 + $0xa0] sm:$0xff] %v401
                  %v403 = vld [vmem:[%s359 + $0x150] sm:$0xff]
                  %404 = vst [vmem:[%s360 + $0xa8] sm:$0xff] %v403
                  %v405 = vld [vmem:[%s359 + $0x160] sm:$0xff]
                  %406 = vst [vmem:[%s360 + $0xb0] sm:$0xff] %v405
                  %v407 = vld [vmem:[%s359 + $0x170] sm:$0xff]
                  %408 = vst [vmem:[%s360 + $0xb8] sm:$0xff] %v407
                  %v409 = vld [vmem:[%s359 + $0x180] sm:$0xff]
                  %410 = vst [vmem:[%s360 + $0xc0] sm:$0xff] %v409
                  %v411 = vld [vmem:[%s359 + $0x190] sm:$0xff]
                  %412 = vst [vmem:[%s360 + $0xc8] sm:$0xff] %v411
                  %v413 = vld [vmem:[%s359 + $0x1a0] sm:$0xff]
                  %414 = vst [vmem:[%s360 + $0xd0] sm:$0xff] %v413
                  %v415 = vld [vmem:[%s359 + $0x1b0] sm:$0xff]
                  %416 = vst [vmem:[%s360 + $0xd8] sm:$0xff] %v415
                  %v417 = vld [vmem:[%s359 + $0x1c0] sm:$0xff]
                  %418 = vst [vmem:[%s360 + $0xe0] sm:$0xff] %v417
                  %v419 = vld [vmem:[%s359 + $0x1d0] sm:$0xff]
                  %420 = vst [vmem:[%s360 + $0xe8] sm:$0xff] %v419
                  %v421 = vld [vmem:[%s359 + $0x1e0] sm:$0xff]
                  %422 = vst [vmem:[%s360 + $0xf0] sm:$0xff] %v421
                  %v423 = vld [vmem:[%s359 + $0x1f0] sm:$0xff]
                  %424 = vst [vmem:[%s360 + $0xf8] sm:$0xff] %v423
                  %v425 = vld [vmem:[%s359 + $0x200] sm:$0xff]
                  %426 = vst [vmem:[%s360 + $0x100] sm:$0xff] %v425
                  %v427 = vld [vmem:[%s359 + $0x210] sm:$0xff]
                  %428 = vst [vmem:[%s360 + $0x108] sm:$0xff] %v427
                  %v429 = vld [vmem:[%s359 + $0x220] sm:$0xff]
                  %430 = vst [vmem:[%s360 + $0x110] sm:$0xff] %v429
                  %v431 = vld [vmem:[%s359 + $0x230] sm:$0xff]
                  %432 = vst [vmem:[%s360 + $0x118] sm:$0xff] %v431
                  %v433 = vld [vmem:[%s359 + $0x240] sm:$0xff]
                  %434 = vst [vmem:[%s360 + $0x120] sm:$0xff] %v433
                  %v435 = vld [vmem:[%s359 + $0x250] sm:$0xff]
                  %436 = vst [vmem:[%s360 + $0x128] sm:$0xff] %v435
                  %v437 = vld [vmem:[%s359 + $0x260] sm:$0xff]
                  %438 = vst [vmem:[%s360 + $0x130] sm:$0xff] %v437
                  %v439 = vld [vmem:[%s359 + $0x270] sm:$0xff]
                  %440 = vst [vmem:[%s360 + $0x138] sm:$0xff] %v439
                  %v441 = vld [vmem:[%s359 + $0x280] sm:$0xff]
                  %442 = vst [vmem:[%s360 + $0x140] sm:$0xff] %v441
                  %v443 = vld [vmem:[%s359 + $0x290] sm:$0xff]
                  %444 = vst [vmem:[%s360 + $0x148] sm:$0xff] %v443
                  %v445 = vld [vmem:[%s359 + $0x2a0] sm:$0xff]
                  %446 = vst [vmem:[%s360 + $0x150] sm:$0xff] %v445
                  %v447 = vld [vmem:[%s359 + $0x2b0] sm:$0xff]
                  %448 = vst [vmem:[%s360 + $0x158] sm:$0xff] %v447
                  %v449 = vld [vmem:[%s359 + $0x2c0] sm:$0xff]
                  %450 = vst [vmem:[%s360 + $0x160] sm:$0xff] %v449
                  %v451 = vld [vmem:[%s359 + $0x2d0] sm:$0xff]
                  %452 = vst [vmem:[%s360 + $0x168] sm:$0xff] %v451
                  %v453 = vld [vmem:[%s359 + $0x2e0] sm:$0xff]
                  %454 = vst [vmem:[%s360 + $0x170] sm:$0xff] %v453
                  %v455 = vld [vmem:[%s359 + $0x2f0] sm:$0xff]
                  %456 = vst [vmem:[%s360 + $0x178] sm:$0xff] %v455
                $region72: #{tpu_custom_call.1} parent=66 // loop_footer
                  %s358 = sadd.s32 1, %s354
                $region73: #{tpu_custom_call.1} parent=66 // loop_footer_branch
                  %353 = sbr.rel target = $region69
                $region74: #{tpu_custom_call.1} parent=66 // loop_exit
                  _
              $region67: #{tpu_custom_call.1} parent=51 // pred_fallthru
                _
              // Predicated region
              $region75: #{tpu_custom_call.1} parent=51 // pred_check
                _
              $region76: #{tpu_custom_call.1} parent=51 // pred_check_branch
                %458 = sbr.rel target = $region78
              $region77: #{tpu_custom_call.1} parent=51 // pred_region
                _
              $region78: #{tpu_custom_call.1} parent=51 // pred_fallthru
                _
            $region52: #{tpu_custom_call.1} parent=47 // pred_fallthru
              _
            // Predicated region
            $region53: #{tpu_custom_call.1} parent=47 // pred_check
              _
            $region54: #{tpu_custom_call.1} parent=47 // pred_check_branch
              %245 = sbr.rel target = $region56
            $region55: #{tpu_custom_call.1} parent=47 // pred_region
              loop: start=0, step=1, limit=1
              $region57: #{tpu_custom_call.1} parent=55 // loop_pre_header
                _
              $region58: #{tpu_custom_call.1} parent=55 // loop_header
                %s248 = sphi 0, %s252
                %p249 = scmp.ge.s32.totalorder %s248, 1
                %s253 = sphi %s239, %s239
                %s254 = sphi %s237, %s237
              $region59: #{tpu_custom_call.1} parent=55 // loop_header_branch
                %251 = sbr.rel (%p249) target = $region63
              $region60: #{tpu_custom_call.1} parent=55 // loop_body
                %v255 = vld [vmem:[%s253] sm:$0xff]
                %256 = vst [vmem:[%s254] sm:$0xff] %v255
                %v257 = vld [vmem:[%s253 + $0x10] sm:$0xff]
                %258 = vst [vmem:[%s254 + $0x8] sm:$0xff] %v257
                %v259 = vld [vmem:[%s253 + $0x20] sm:$0xff]
                %260 = vst [vmem:[%s254 + $0x10] sm:$0xff] %v259
                %v261 = vld [vmem:[%s253 + $0x30] sm:$0xff]
                %262 = vst [vmem:[%s254 + $0x18] sm:$0xff] %v261
                %v263 = vld [vmem:[%s253 + $0x40] sm:$0xff]
                %264 = vst [vmem:[%s254 + $0x20] sm:$0xff] %v263
                %v265 = vld [vmem:[%s253 + $0x50] sm:$0xff]
                %266 = vst [vmem:[%s254 + $0x28] sm:$0xff] %v265
                %v267 = vld [vmem:[%s253 + $0x60] sm:$0xff]
                %268 = vst [vmem:[%s254 + $0x30] sm:$0xff] %v267
                %v269 = vld [vmem:[%s253 + $0x70] sm:$0xff]
                %270 = vst [vmem:[%s254 + $0x38] sm:$0xff] %v269
                %v271 = vld [vmem:[%s253 + $0x80] sm:$0xff]
                %272 = vst [vmem:[%s254 + $0x40] sm:$0xff] %v271
                %v273 = vld [vmem:[%s253 + $0x90] sm:$0xff]
                %274 = vst [vmem:[%s254 + $0x48] sm:$0xff] %v273
                %v275 = vld [vmem:[%s253 + $0xa0] sm:$0xff]
                %276 = vst [vmem:[%s254 + $0x50] sm:$0xff] %v275
                %v277 = vld [vmem:[%s253 + $0xb0] sm:$0xff]
                %278 = vst [vmem:[%s254 + $0x58] sm:$0xff] %v277
                %v279 = vld [vmem:[%s253 + $0xc0] sm:$0xff]
                %280 = vst [vmem:[%s254 + $0x60] sm:$0xff] %v279
                %v281 = vld [vmem:[%s253 + $0xd0] sm:$0xff]
                %282 = vst [vmem:[%s254 + $0x68] sm:$0xff] %v281
                %v283 = vld [vmem:[%s253 + $0xe0] sm:$0xff]
                %284 = vst [vmem:[%s254 + $0x70] sm:$0xff] %v283
                %v285 = vld [vmem:[%s253 + $0xf0] sm:$0xff]
                %286 = vst [vmem:[%s254 + $0x78] sm:$0xff] %v285
                %v287 = vld [vmem:[%s253 + $0x100] sm:$0xff]
                %288 = vst [vmem:[%s254 + $0x80] sm:$0xff] %v287
                %v289 = vld [vmem:[%s253 + $0x110] sm:$0xff]
                %290 = vst [vmem:[%s254 + $0x88] sm:$0xff] %v289
                %v291 = vld [vmem:[%s253 + $0x120] sm:$0xff]
                %292 = vst [vmem:[%s254 + $0x90] sm:$0xff] %v291
                %v293 = vld [vmem:[%s253 + $0x130] sm:$0xff]
                %294 = vst [vmem:[%s254 + $0x98] sm:$0xff] %v293
                %v295 = vld [vmem:[%s253 + $0x140] sm:$0xff]
                %296 = vst [vmem:[%s254 + $0xa0] sm:$0xff] %v295
                %v297 = vld [vmem:[%s253 + $0x150] sm:$0xff]
                %298 = vst [vmem:[%s254 + $0xa8] sm:$0xff] %v297
                %v299 = vld [vmem:[%s253 + $0x160] sm:$0xff]
                %300 = vst [vmem:[%s254 + $0xb0] sm:$0xff] %v299
                %v301 = vld [vmem:[%s253 + $0x170] sm:$0xff]
                %302 = vst [vmem:[%s254 + $0xb8] sm:$0xff] %v301
                %v303 = vld [vmem:[%s253 + $0x180] sm:$0xff]
                %304 = vst [vmem:[%s254 + $0xc0] sm:$0xff] %v303
                %v305 = vld [vmem:[%s253 + $0x190] sm:$0xff]
                %306 = vst [vmem:[%s254 + $0xc8] sm:$0xff] %v305
                %v307 = vld [vmem:[%s253 + $0x1a0] sm:$0xff]
                %308 = vst [vmem:[%s254 + $0xd0] sm:$0xff] %v307
                %v309 = vld [vmem:[%s253 + $0x1b0] sm:$0xff]
                %310 = vst [vmem:[%s254 + $0xd8] sm:$0xff] %v309
                %v311 = vld [vmem:[%s253 + $0x1c0] sm:$0xff]
                %312 = vst [vmem:[%s254 + $0xe0] sm:$0xff] %v311
                %v313 = vld [vmem:[%s253 + $0x1d0] sm:$0xff]
                %314 = vst [vmem:[%s254 + $0xe8] sm:$0xff] %v313
                %v315 = vld [vmem:[%s253 + $0x1e0] sm:$0xff]
                %316 = vst [vmem:[%s254 + $0xf0] sm:$0xff] %v315
                %v317 = vld [vmem:[%s253 + $0x1f0] sm:$0xff]
                %318 = vst [vmem:[%s254 + $0xf8] sm:$0xff] %v317
                %v319 = vld [vmem:[%s253 + $0x200] sm:$0xff]
                %320 = vst [vmem:[%s254 + $0x100] sm:$0xff] %v319
                %v321 = vld [vmem:[%s253 + $0x210] sm:$0xff]
                %322 = vst [vmem:[%s254 + $0x108] sm:$0xff] %v321
                %v323 = vld [vmem:[%s253 + $0x220] sm:$0xff]
                %324 = vst [vmem:[%s254 + $0x110] sm:$0xff] %v323
                %v325 = vld [vmem:[%s253 + $0x230] sm:$0xff]
                %326 = vst [vmem:[%s254 + $0x118] sm:$0xff] %v325
                %v327 = vld [vmem:[%s253 + $0x240] sm:$0xff]
                %328 = vst [vmem:[%s254 + $0x120] sm:$0xff] %v327
                %v329 = vld [vmem:[%s253 + $0x250] sm:$0xff]
                %330 = vst [vmem:[%s254 + $0x128] sm:$0xff] %v329
                %v331 = vld [vmem:[%s253 + $0x260] sm:$0xff]
                %332 = vst [vmem:[%s254 + $0x130] sm:$0xff] %v331
                %v333 = vld [vmem:[%s253 + $0x270] sm:$0xff]
                %334 = vst [vmem:[%s254 + $0x138] sm:$0xff] %v333
                %v335 = vld [vmem:[%s253 + $0x280] sm:$0xff]
                %336 = vst [vmem:[%s254 + $0x140] sm:$0xff] %v335
                %v337 = vld [vmem:[%s253 + $0x290] sm:$0xff]
                %338 = vst [vmem:[%s254 + $0x148] sm:$0xff] %v337
                %v339 = vld [vmem:[%s253 + $0x2a0] sm:$0xff]
                %340 = vst [vmem:[%s254 + $0x150] sm:$0xff] %v339
                %v341 = vld [vmem:[%s253 + $0x2b0] sm:$0xff]
                %342 = vst [vmem:[%s254 + $0x158] sm:$0xff] %v341
                %v343 = vld [vmem:[%s253 + $0x2c0] sm:$0xff]
                %344 = vst [vmem:[%s254 + $0x160] sm:$0xff] %v343
                %v345 = vld [vmem:[%s253 + $0x2d0] sm:$0xff]
                %346 = vst [vmem:[%s254 + $0x168] sm:$0xff] %v345
                %v347 = vld [vmem:[%s253 + $0x2e0] sm:$0xff]
                %348 = vst [vmem:[%s254 + $0x170] sm:$0xff] %v347
                %v349 = vld [vmem:[%s253 + $0x2f0] sm:$0xff]
                %350 = vst [vmem:[%s254 + $0x178] sm:$0xff] %v349
              $region61: #{tpu_custom_call.1} parent=55 // loop_footer
                %s252 = sadd.s32 1, %s248
              $region62: #{tpu_custom_call.1} parent=55 // loop_footer_branch
                %247 = sbr.rel target = $region58
              $region63: #{tpu_custom_call.1} parent=55 // loop_exit
                _
            $region56: #{tpu_custom_call.1} parent=47 // pred_fallthru
              _
          $region48: #{tpu_custom_call.1} parent=43 // pred_fallthru
            _
          %459 = vnop
        $region44: #{tpu_custom_call.1} parent=39 // pred_fallthru
          _
      $region40: #{tpu_custom_call.1} parent=5 // pred_fallthru
        _
      %p460 = scmp.le.s32.totalorder 1, %s16
      %p461 = scmp.lt.s32.totalorder %s16, 3
      %p462 = pnand %p460, %p461
      %p463 = pneg %p462
      // Predicated region
      $region79: #{tpu_custom_call.1} parent=5 // pred_check
        _
      $region80: #{tpu_custom_call.1} parent=5 // pred_check_branch
        %465 = sbr.rel (%p462) target = $region82
      $region81: #{tpu_custom_call.1} parent=5 // pred_region
        %s466 = ssub.s32 %s16, 1
        %s467 = sand.u32 %s29, 1
        %s468 = sand.u32 %s29, 1
        %s469 = smul.addr %s468, 384
        %s470 = scalar_lea.vmem [#allocation2], %s469
        // Predicated region
        $region83: #{tpu_custom_call.1} parent=81 // pred_check
          %p471 = pneg %p42
        $region84: #{tpu_custom_call.1} parent=81 // pred_check_branch
          %473 = sbr.rel (%p471) target = $region86
        $region85: #{tpu_custom_call.1} parent=81 // pred_region
          _
        $region86: #{tpu_custom_call.1} parent=81 // pred_fallthru
          _
        %s474 = sand.u32 %s29, 1
        %s475 = sand.u32 %s29, 1
        %s476 = smul.addr %s475, 384
        %s477 = scalar_lea.vmem [#allocation2], %s476
        %p478 = pneg %p42
        %p479 = pneg %p39
        %p480 = pneg %p63
        %p481 = pneg %p60
        %p482 = pneg %p84
        %p483 = pneg %p81
        %p484 = pneg %p105
        %p485 = pneg %p102
        %p486 = pneg %p126
        %p487 = pneg %p123
        %p488 = pneg %p147
        %p489 = pneg %p144
        %p490 = pneg %p168
        %p491 = pneg %p165
        %p492 = pneg %p194
        %p493 = pneg %p191
        %s494 = sand.u32 %s181, 1
        %s495 = scalar_lea.sflag [#allocation4], %s494
        %s496 = sand.u32 %s181, 1
        %s497 = smul.addr %s496, 16
        %s498 = scalar_lea.vmem [#allocation3], %s497
        %v499 = vld [vmem:[%s1] sm:$0xff]
        %v500 = vld [vmem:[%s1 + $0x8] sm:$0xff]
        %v501 = vld [vmem:[%s1 + $0x10] sm:$0xff]
        %v502 = vld [vmem:[%s1 + $0x18] sm:$0xff]
        %v503 = vld [vmem:[%s3] sm:$0xff]
        %v504 = vld [vmem:[%s3 + $0x8] sm:$0xff]
        %v505 = vld [vmem:[%s2] sm:$0xff]
        %v506 = vld [vmem:[%s2 + $0x8] sm:$0xff]
        %v507 = vld [vmem:[%s2 + $0x10] sm:$0xff]
        %v508 = vld [vmem:[%s2 + $0x18] sm:$0xff]
        %510 = vset.pattern.permute.xlu0 0
        %511 = vperm.xlu0 %510, %v505
        %v512 = vpop.permute.xlu0 %511
        %515 = vset.pattern.permute.xlu0 0
        %516 = vperm.xlu0 %515, %v506
        %v517 = vpop.permute.xlu0 %516
        %520 = vset.pattern.permute.xlu0 0
        %521 = vperm.xlu0 %520, %v507
        %v522 = vpop.permute.xlu0 %521
        %525 = vset.pattern.permute.xlu0 0
        %526 = vperm.xlu0 %525, %v508
        %v527 = vpop.permute.xlu0 %526
        %v529 = vld [vmem:[%s4] sm:$0xff]
        %v530 = vld [vmem:[%s4 + $0x8] sm:$0xff]
        %532 = vset.pattern.permute.xlu0 0
        %533 = vperm.xlu0 %532, %v529
        %v534 = vpop.permute.xlu0 %533
        %537 = vset.pattern.permute.xlu0 0
        %538 = vperm.xlu0 %537, %v530
        %v539 = vpop.permute.xlu0 %538
        %v541 = vld [vmem:[%s470] sm:$0xff]
        %v542 = vld [vmem:[%s470 + $0x8] sm:$0xf]
        %vm543 = vcmask 97280
        %v545 = vsel %vm543, %v499, 0
        %v548 = vsel %vm543, %v500, 0
        %v551 = vsel %vm543, %v501, 0
        %v554 = vsel %vm543, %v502, 0
        %vm556 = vcmask 1043456
        %v558 = vsel %vm556, %v542, 0
        %560 = vmatprep.subr.mxu0 0.0
        %561 = vmatpush1.msra.mxu0 %v541
        %562 = vmatprep.subr.mxu0 0.0
        %563 = vmatpush1.msra.mxu0 %v558
        %564 = vmatprep.subr.mxu0 0.0
        %565 = vmatpush1.msra.mxu0 0.0
        %566 = vmatprep.subr.mxu0 0.0
        %567 = vmatpush1.msra.mxu0 0.0
        %568 = vmatprep.subr.mxu0 0.0
        %569 = vmatpush1.msra.mxu0 0.0
        %570 = vmatprep.subr.mxu0 0.0
        %571 = vmatpush1.msra.mxu0 0.0
        %572 = vmatprep.subr.mxu0 0.0
        %573 = vmatpush1.msra.mxu0 0.0
        %574 = vmatprep.subr.mxu0 0.0
        %575 = vmatpush1.msra.mxu0 0.0
        %576 = vmatprep.subr.mxu0 0.0
        %577 = vmatpush1.msra.mxu0 0.0
        %578 = vmatprep.subr.mxu0 0.0
        %579 = vmatpush1.msra.mxu0 0.0
        %580 = vmatprep.subr.mxu0 0.0
        %581 = vmatpush1.msra.mxu0 0.0
        %582 = vmatprep.subr.mxu0 0.0
        %583 = vmatpush1.msra.mxu0 0.0
        %584 = vmatprep.subr.mxu0 0.0
        %585 = vmatpush1.msra.mxu0 0.0
        %586 = vmatprep.subr.mxu0 0.0
        %587 = vmatpush1.msra.mxu0 0.0
        %588 = vmatprep.subr.mxu0 0.0
        %589 = vmatpush1.msra.mxu0 0.0
        %590 = vmatprep.subr.mxu0 0.0
        %591 = vmatpush1.msra.mxu0 0.0
        %592 = vmatprep.subr.mxu0 0.0
        %593 = vmatpush1.msra.mxu0 0.0
        %594 = vmatprep.subr.mxu0 0.0
        %595 = vmatpush1.msra.mxu0 0.0
        %596 = vmatprep.subr.mxu0 0.0
        %597 = vmatpush1.msra.mxu0 0.0
        %598 = vmatprep.subr.mxu0 0.0
        %599 = vmatpush1.msra.mxu0 0.0
        %600 = vmatprep.subr.mxu0 0.0
        %601 = vmatpush1.msra.mxu0 0.0
        %602 = vmatprep.subr.mxu0 0.0
        %603 = vmatpush1.msra.mxu0 0.0
        %604 = vmatprep.subr.mxu0 0.0
        %605 = vmatpush1.msra.mxu0 0.0
        %606 = vmatprep.subr.mxu0 0.0
        %607 = vmatpush1.msra.mxu0 0.0
        %608 = vmatprep.subr.mxu0 0.0
        %609 = vmatpush1.msra.mxu0 0.0
        %610 = vmatprep.subr.mxu0 0.0
        %611 = vmatpush1.msra.mxu0 0.0
        %612 = vmatprep.subr.mxu0 0.0
        %613 = vmatpush1.msra.mxu0 0.0
        %614 = vmatprep.subr.mxu0 0.0
        %615 = vmatpush1.msra.mxu0 0.0
        %616 = vmatprep.subr.mxu0 0.0
        %617 = vmatpush1.msra.mxu0 0.0
        %618 = vmatprep.subr.mxu0 0.0
        %619 = vmatpush1.msra.mxu0 0.0
        %620 = vmatprep.subr.mxu0 0.0
        %621 = vmatpush1.msra.mxu0 0.0
        %622 = vmatprep.subr.mxu0 0.0
        %623 = vmatpush1.msra.mxu0 0.0
        %624 = vmatprep.mubr.f32.mxu0 0.0
        %625 = vmatmul.mubr.f32.gmra.mrb[0].mxu0 %v545
        %v626 = vpop.f32.mrb[0].mxu0
        %v627 = vadd.f32 %v512, %v626
        %v628 = vpop.f32.mrb[0].mxu0
        %629 = vmatprep.mubr.f32.mxu0 0.0
        %630 = vmatmul.mubr.f32.gmra.mrb[0].mxu0 %v548
        %v631 = vpop.f32.mrb[0].mxu0
        %v632 = vadd.f32 %v517, %v631
        %v633 = vpop.f32.mrb[0].mxu0
        %634 = vmatprep.mubr.f32.mxu0 0.0
        %635 = vmatmul.mubr.f32.gmra.mrb[0].mxu0 %v551
        %v636 = vpop.f32.mrb[0].mxu0
        %v637 = vadd.f32 %v522, %v636
        %v638 = vpop.f32.mrb[0].mxu0
        %639 = vmatprep.mubr.f32.mxu0 0.0
        %640 = vmatmul.mubr.f32.gmra.mrb[0].mxu0 %v554
        %v641 = vpop.f32.mrb[0].mxu0
        %v642 = vadd.f32 %v527, %v641
        %v643 = vpop.f32.mrb[0].mxu0
        %644 = vdwg.mxu0
        %v645 = vmax.f32 %v627, 0.0
        %v646 = vmax.f32 %v632, 0.0
        %v647 = vmax.f32 %v637, 0.0
        %v648 = vmax.f32 %v642, 0.0
        %vm649 = vcmask 261120
        %v651 = vsel %vm649, %v503, 0
        %v654 = vsel %vm649, %v504, 0
        %656 = vmatprep.subr.mxu0 0.0
        %657 = vmatpush1.msra.mxu0 %v645
        %658 = vmatprep.subr.mxu0 0.0
        %659 = vmatpush1.msra.mxu0 %v646
        %660 = vmatprep.subr.mxu0 0.0
        %661 = vmatpush1.msra.mxu0 %v647
        %662 = vmatprep.subr.mxu0 0.0
        %663 = vmatpush1.msra.mxu0 %v648
        %664 = vmatprep.subr.mxu0 0.0
        %665 = vmatpush1.msra.mxu0 0.0
        %666 = vmatprep.subr.mxu0 0.0
        %667 = vmatpush1.msra.mxu0 0.0
        %668 = vmatprep.subr.mxu0 0.0
        %669 = vmatpush1.msra.mxu0 0.0
        %670 = vmatprep.subr.mxu0 0.0
        %671 = vmatpush1.msra.mxu0 0.0
        %672 = vmatprep.subr.mxu0 0.0
        %673 = vmatpush1.msra.mxu0 0.0
        %674 = vmatprep.subr.mxu0 0.0
        %675 = vmatpush1.msra.mxu0 0.0
        %676 = vmatprep.subr.mxu0 0.0
        %677 = vmatpush1.msra.mxu0 0.0
        %678 = vmatprep.subr.mxu0 0.0
        %679 = vmatpush1.msra.mxu0 0.0
        %680 = vmatprep.subr.mxu0 0.0
        %681 = vmatpush1.msra.mxu0 0.0
        %682 = vmatprep.subr.mxu0 0.0
        %683 = vmatpush1.msra.mxu0 0.0
        %684 = vmatprep.subr.mxu0 0.0
        %685 = vmatpush1.msra.mxu0 0.0
        %686 = vmatprep.subr.mxu0 0.0
        %687 = vmatpush1.msra.mxu0 0.0
        %688 = vmatprep.subr.mxu0 0.0
        %689 = vmatpush1.msra.mxu0 0.0
        %690 = vmatprep.subr.mxu0 0.0
        %691 = vmatpush1.msra.mxu0 0.0
        %692 = vmatprep.subr.mxu0 0.0
        %693 = vmatpush1.msra.mxu0 0.0
        %694 = vmatprep.subr.mxu0 0.0
        %695 = vmatpush1.msra.mxu0 0.0
        %696 = vmatprep.subr.mxu0 0.0
        %697 = vmatpush1.msra.mxu0 0.0
        %698 = vmatprep.subr.mxu0 0.0
        %699 = vmatpush1.msra.mxu0 0.0
        %700 = vmatprep.subr.mxu0 0.0
        %701 = vmatpush1.msra.mxu0 0.0
        %702 = vmatprep.subr.mxu0 0.0
        %703 = vmatpush1.msra.mxu0 0.0
        %704 = vmatprep.subr.mxu0 0.0
        %705 = vmatpush1.msra.mxu0 0.0
        %706 = vmatprep.subr.mxu0 0.0
        %707 = vmatpush1.msra.mxu0 0.0
        %708 = vmatprep.subr.mxu0 0.0
        %709 = vmatpush1.msra.mxu0 0.0
        %710 = vmatprep.subr.mxu0 0.0
        %711 = vmatpush1.msra.mxu0 0.0
        %712 = vmatprep.subr.mxu0 0.0
        %713 = vmatpush1.msra.mxu0 0.0
        %714 = vmatprep.subr.mxu0 0.0
        %715 = vmatpush1.msra.mxu0 0.0
        %716 = vmatprep.subr.mxu0 0.0
        %717 = vmatpush1.msra.mxu0 0.0
        %718 = vmatprep.subr.mxu0 0.0
        %719 = vmatpush1.msra.mxu0 0.0
        %720 = vmatprep.mubr.f32.mxu0 0.0
        %721 = vmatmul.mubr.f32.gmra.mrb[0].mxu0 %v651
        %v722 = vpop.f32.mrb[0].mxu0
        %v723 = vadd.f32 %v534, %v722
        %v724 = vpop.f32.mrb[0].mxu0
        %725 = vmatprep.mubr.f32.mxu0 0.0
        %726 = vmatmul.mubr.f32.gmra.mrb[0].mxu0 %v654
        %v727 = vpop.f32.mrb[0].mxu0
        %v728 = vadd.f32 %v539, %v727
        %v729 = vpop.f32.mrb[0].mxu0
        %730 = vdwg.mxu0
        %v731 = vmax.f32 %v723, 0.0
        %v732 = vmax.f32 %v728, 0.0
        %v733 = vadd.f32 %v731, 0.0
        %v734 = vadd.f32 %v732, 0.0
        %s735 = scalar_lea.vmem %s470, 16 [#allocation2]
        %v736 = vld [vmem:[%s735] sm:$0xff]
        %v737 = vld [vmem:[%s735 + $0x8] sm:$0xf]
        %v739 = vsel %vm556, %v737, 0
        %741 = vmatprep.subr.mxu0 0.0
        %742 = vmatpush1.msra.mxu0 %v736
        %743 = vmatprep.subr.mxu0 0.0
        %744 = vmatpush1.msra.mxu0 %v739
        %745 = vmatprep.subr.mxu0 0.0
        %746 = vmatpush1.msra.mxu0 0.0
        %747 = vmatprep.subr.mxu0 0.0
        %748 = vmatpush1.msra.mxu0 0.0
        %749 = vmatprep.subr.mxu0 0.0
        %750 = vmatpush1.msra.mxu0 0.0
        %751 = vmatprep.subr.mxu0 0.0
        %752 = vmatpush1.msra.mxu0 0.0
        %753 = vmatprep.subr.mxu0 0.0
        %754 = vmatpush1.msra.mxu0 0.0
        %755 = vmatprep.subr.mxu0 0.0
        %756 = vmatpush1.msra.mxu0 0.0
        %757 = vmatprep.subr.mxu0 0.0
        %758 = vmatpush1.msra.mxu0 0.0
        %759 = vmatprep.subr.mxu0 0.0
        %760 = vmatpush1.msra.mxu0 0.0
        %761 = vmatprep.subr.mxu0 0.0
        %762 = vmatpush1.msra.mxu0 0.0
        %763 = vmatprep.subr.mxu0 0.0
        %764 = vmatpush1.msra.mxu0 0.0
        %765 = vmatprep.subr.mxu0 0.0
        %766 = vmatpush1.msra.mxu0 0.0
        %767 = vmatprep.subr.mxu0 0.0
        %768 = vmatpush1.msra.mxu0 0.0
        %769 = vmatprep.subr.mxu0 0.0
        %770 = vmatpush1.msra.mxu0 0.0
        %771 = vmatprep.subr.mxu0 0.0
        %772 = vmatpush1.msra.mxu0 0.0
        %773 = vmatprep.subr.mxu0 0.0
        %774 = vmatpush1.msra.mxu0 0.0
        %775 = vmatprep.subr.mxu0 0.0
        %776 = vmatpush1.msra.mxu0 0.0
        %777 = vmatprep.subr.mxu0 0.0
        %778 = vmatpush1.msra.mxu0 0.0
        %779 = vmatprep.subr.mxu0 0.0
        %780 = vmatpush1.msra.mxu0 0.0
        %781 = vmatprep.subr.mxu0 0.0
        %782 = vmatpush1.msra.mxu0 0.0
        %783 = vmatprep.subr.mxu0 0.0
        %784 = vmatpush1.msra.mxu0 0.0
        %785 = vmatprep.subr.mxu0 0.0
        %786 = vmatpush1.msra.mxu0 0.0
        %787 = vmatprep.subr.mxu0 0.0
        %788 = vmatpush1.msra.mxu0 0.0
        %789 = vmatprep.subr.mxu0 0.0
        %790 = vmatpush1.msra.mxu0 0.0
        %791 = vmatprep.subr.mxu0 0.0
        %792 = vmatpush1.msra.mxu0 0.0
        %793 = vmatprep.subr.mxu0 0.0
        %794 = vmatpush1.msra.mxu0 0.0
        %795 = vmatprep.subr.mxu0 0.0
        %796 = vmatpush1.msra.mxu0 0.0
        %797 = vmatprep.subr.mxu0 0.0
        %798 = vmatpush1.msra.mxu0 0.0
        %799 = vmatprep.subr.mxu0 0.0
        %800 = vmatpush1.msra.mxu0 0.0
        %801 = vmatprep.subr.mxu0 0.0
        %802 = vmatpush1.msra.mxu0 0.0
        %803 = vmatprep.subr.mxu0 0.0
        %804 = vmatpush1.msra.mxu0 0.0
        %805 = vmatprep.mubr.f32.mxu0 0.0
        %806 = vmatmul.mubr.f32.gmra.mrb[0].mxu0 %v545
        %v807 = vpop.f32.mrb[0].mxu0
        %v808 = vadd.f32 %v512, %v807
        %v809 = vpop.f32.mrb[0].mxu0
        %810 = vmatprep.mubr.f32.mxu0 0.0
        %811 = vmatmul.mubr.f32.gmra.mrb[0].mxu0 %v548
        %v812 = vpop.f32.mrb[0].mxu0
        %v813 = vadd.f32 %v517, %v812
        %v814 = vpop.f32.mrb[0].mxu0
        %815 = vmatprep.mubr.f32.mxu0 0.0
        %816 = vmatmul.mubr.f32.gmra.mrb[0].mxu0 %v551
        %v817 = vpop.f32.mrb[0].mxu0
        %v818 = vadd.f32 %v522, %v817
        %v819 = vpop.f32.mrb[0].mxu0
        %820 = vmatprep.mubr.f32.mxu0 0.0
        %821 = vmatmul.mubr.f32.gmra.mrb[0].mxu0 %v554
        %v822 = vpop.f32.mrb[0].mxu0
        %v823 = vadd.f32 %v527, %v822
        %v824 = vpop.f32.mrb[0].mxu0
        %825 = vdwg.mxu0
        %v826 = vmax.f32 %v808, 0.0
        %v827 = vmax.f32 %v813, 0.0
        %v828 = vmax.f32 %v818, 0.0
        %v829 = vmax.f32 %v823, 0.0
        %830 = vmatprep.subr.mxu0 0.0
        %831 = vmatpush1.msra.mxu0 %v826
        %832 = vmatprep.subr.mxu0 0.0
        %833 = vmatpush1.msra.mxu0 %v827
        %834 = vmatprep.subr.mxu0 0.0
        %835 = vmatpush1.msra.mxu0 %v828
        %836 = vmatprep.subr.mxu0 0.0
        %837 = vmatpush1.msra.mxu0 %v829
        %838 = vmatprep.subr.mxu0 0.0
        %839 = vmatpush1.msra.mxu0 0.0
        %840 = vmatprep.subr.mxu0 0.0
        %841 = vmatpush1.msra.mxu0 0.0
        %842 = vmatprep.subr.mxu0 0.0
        %843 = vmatpush1.msra.mxu0 0.0
        %844 = vmatprep.subr.mxu0 0.0
        %845 = vmatpush1.msra.mxu0 0.0
        %846 = vmatprep.subr.mxu0 0.0
        %847 = vmatpush1.msra.mxu0 0.0
        %848 = vmatprep.subr.mxu0 0.0
        %849 = vmatpush1.msra.mxu0 0.0
        %850 = vmatprep.subr.mxu0 0.0
        %851 = vmatpush1.msra.mxu0 0.0
        %852 = vmatprep.subr.mxu0 0.0
        %853 = vmatpush1.msra.mxu0 0.0
        %854 = vmatprep.subr.mxu0 0.0
        %855 = vmatpush1.msra.mxu0 0.0
        %856 = vmatprep.subr.mxu0 0.0
        %857 = vmatpush1.msra.mxu0 0.0
        %858 = vmatprep.subr.mxu0 0.0
        %859 = vmatpush1.msra.mxu0 0.0
        %860 = vmatprep.subr.mxu0 0.0
        %861 = vmatpush1.msra.mxu0 0.0
        %862 = vmatprep.subr.mxu0 0.0
        %863 = vmatpush1.msra.mxu0 0.0
        %864 = vmatprep.subr.mxu0 0.0
        %865 = vmatpush1.msra.mxu0 0.0
        %866 = vmatprep.subr.mxu0 0.0
        %867 = vmatpush1.msra.mxu0 0.0
        %868 = vmatprep.subr.mxu0 0.0
        %869 = vmatpush1.msra.mxu0 0.0
        %870 = vmatprep.subr.mxu0 0.0
        %871 = vmatpush1.msra.mxu0 0.0
        %872 = vmatprep.subr.mxu0 0.0
        %873 = vmatpush1.msra.mxu0 0.0
        %874 = vmatprep.subr.mxu0 0.0
        %875 = vmatpush1.msra.mxu0 0.0
        %876 = vmatprep.subr.mxu0 0.0
        %877 = vmatpush1.msra.mxu0 0.0
        %878 = vmatprep.subr.mxu0 0.0
        %879 = vmatpush1.msra.mxu0 0.0
        %880 = vmatprep.subr.mxu0 0.0
        %881 = vmatpush1.msra.mxu0 0.0
        %882 = vmatprep.subr.mxu0 0.0
        %883 = vmatpush1.msra.mxu0 0.0
        %884 = vmatprep.subr.mxu0 0.0
        %885 = vmatpush1.msra.mxu0 0.0
        %886 = vmatprep.subr.mxu0 0.0
        %887 = vmatpush1.msra.mxu0 0.0
        %888 = vmatprep.subr.mxu0 0.0
        %889 = vmatpush1.msra.mxu0 0.0
        %890 = vmatprep.subr.mxu0 0.0
        %891 = vmatpush1.msra.mxu0 0.0
        %892 = vmatprep.subr.mxu0 0.0
        %893 = vmatpush1.msra.mxu0 0.0
        %894 = vmatprep.mubr.f32.mxu0 0.0
        %895 = vmatmul.mubr.f32.gmra.mrb[0].mxu0 %v651
        %v896 = vpop.f32.mrb[0].mxu0
        %v897 = vadd.f32 %v534, %v896
        %v898 = vpop.f32.mrb[0].mxu0
        %899 = vmatprep.mubr.f32.mxu0 0.0
        %900 = vmatmul.mubr.f32.gmra.mrb[0].mxu0 %v654
        %v901 = vpop.f32.mrb[0].mxu0
        %v902 = vadd.f32 %v539, %v901
        %v903 = vpop.f32.mrb[0].mxu0
        %904 = vdwg.mxu0
        %v905 = vmax.f32 %v897, 0.0
        %v906 = vmax.f32 %v902, 0.0
        %v907 = vadd.f32 %v733, %v905
        %v908 = vadd.f32 %v734, %v906
        %s909 = scalar_lea.vmem %s470, 32 [#allocation2]
        %v910 = vld [vmem:[%s909] sm:$0xff]
        %v911 = vld [vmem:[%s909 + $0x8] sm:$0xf]
        %v913 = vsel %vm556, %v911, 0
        %915 = vmatprep.subr.mxu0 0.0
        %916 = vmatpush1.msra.mxu0 %v910
        %917 = vmatprep.subr.mxu0 0.0
        %918 = vmatpush1.msra.mxu0 %v913
        %919 = vmatprep.subr.mxu0 0.0
        %920 = vmatpush1.msra.mxu0 0.0
        %921 = vmatprep.subr.mxu0 0.0
        %922 = vmatpush1.msra.mxu0 0.0
        %923 = vmatprep.subr.mxu0 0.0
        %924 = vmatpush1.msra.mxu0 0.0
        %925 = vmatprep.subr.mxu0 0.0
        %926 = vmatpush1.msra.mxu0 0.0
        %927 = vmatprep.subr.mxu0 0.0
        %928 = vmatpush1.msra.mxu0 0.0
        %929 = vmatprep.subr.mxu0 0.0
        %930 = vmatpush1.msra.mxu0 0.0
        %931 = vmatprep.subr.mxu0 0.0
        %932 = vmatpush1.msra.mxu0 0.0
        %933 = vmatprep.subr.mxu0 0.0
        %934 = vmatpush1.msra.mxu0 0.0
        %935 = vmatprep.subr.mxu0 0.0
        %936 = vmatpush1.msra.mxu0 0.0
        %937 = vmatprep.subr.mxu0 0.0
        %938 = vmatpush1.msra.mxu0 0.0
        %939 = vmatprep.subr.mxu0 0.0
        %940 = vmatpush1.msra.mxu0 0.0
        %941 = vmatprep.subr.mxu0 0.0
        %942 = vmatpush1.msra.mxu0 0.0
        %943 = vmatprep.subr.mxu0 0.0
        %944 = vmatpush1.msra.mxu0 0.0
        %945 = vmatprep.subr.mxu0 0.0
        %946 = vmatpush1.msra.mxu0 0.0
        %947 = vmatprep.subr.mxu0 0.0
        %948 = vmatpush1.msra.mxu0 0.0
        %949 = vmatprep.subr.mxu0 0.0
        %950 = vmatpush1.msra.mxu0 0.0
        %951 = vmatprep.subr.mxu0 0.0
        %952 = vmatpush1.msra.mxu0 0.0
        %953 = vmatprep.subr.mxu0 0.0
        %954 = vmatpush1.msra.mxu0 0.0
        %955 = vmatprep.subr.mxu0 0.0
        %956 = vmatpush1.msra.mxu0 0.0
        %957 = vmatprep.subr.mxu0 0.0
        %958 = vmatpush1.msra.mxu0 0.0
        %959 = vmatprep.subr.mxu0 0.0
        %960 = vmatpush1.msra.mxu0 0.0
        %961 = vmatprep.subr.mxu0 0.0
        %962 = vmatpush1.msra.mxu0 0.0
        %963 = vmatprep.subr.mxu0 0.0
        %964 = vmatpush1.msra.mxu0 0.0
        %965 = vmatprep.subr.mxu0 0.0
        %966 = vmatpush1.msra.mxu0 0.0
        %967 = vmatprep.subr.mxu0 0.0
        %968 = vmatpush1.msra.mxu0 0.0
        %969 = vmatprep.subr.mxu0 0.0
        %970 = vmatpush1.msra.mxu0 0.0
        %971 = vmatprep.subr.mxu0 0.0
        %972 = vmatpush1.msra.mxu0 0.0
        %973 = vmatprep.subr.mxu0 0.0
        %974 = vmatpush1.msra.mxu0 0.0
        %975 = vmatprep.subr.mxu0 0.0
        %976 = vmatpush1.msra.mxu0 0.0
        %977 = vmatprep.subr.mxu0 0.0
        %978 = vmatpush1.msra.mxu0 0.0
        %979 = vmatprep.mubr.f32.mxu0 0.0
        %980 = vmatmul.mubr.f32.gmra.mrb[0].mxu0 %v545
        %v981 = vpop.f32.mrb[0].mxu0
        %v982 = vadd.f32 %v512, %v981
        %v983 = vpop.f32.mrb[0].mxu0
        %984 = vmatprep.mubr.f32.mxu0 0.0
        %985 = vmatmul.mubr.f32.gmra.mrb[0].mxu0 %v548
        %v986 = vpop.f32.mrb[0].mxu0
        %v987 = vadd.f32 %v517, %v986
        %v988 = vpop.f32.mrb[0].mxu0
        %989 = vmatprep.mubr.f32.mxu0 0.0
        %990 = vmatmul.mubr.f32.gmra.mrb[0].mxu0 %v551
        %v991 = vpop.f32.mrb[0].mxu0
        %v992 = vadd.f32 %v522, %v991
        %v993 = vpop.f32.mrb[0].mxu0
        %994 = vmatprep.mubr.f32.mxu0 0.0
        %995 = vmatmul.mubr.f32.gmra.mrb[0].mxu0 %v554
        %v996 = vpop.f32.mrb[0].mxu0
        %v997 = vadd.f32 %v527, %v996
        %v998 = vpop.f32.mrb[0].mxu0
        %999 = vdwg.mxu0
        %v1000 = vmax.f32 %v982, 0.0
        %v1001 = vmax.f32 %v987, 0.0
        %v1002 = vmax.f32 %v992, 0.0
        %v1003 = vmax.f32 %v997, 0.0
        %1004 = vmatprep.subr.mxu0 0.0
        %1005 = vmatpush1.msra.mxu0 %v1000
        %1006 = vmatprep.subr.mxu0 0.0
        %1007 = vmatpush1.msra.mxu0 %v1001
        %1008 = vmatprep.subr.mxu0 0.0
        %1009 = vmatpush1.msra.mxu0 %v1002
        %1010 = vmatprep.subr.mxu0 0.0
        %1011 = vmatpush1.msra.mxu0 %v1003
        %1012 = vmatprep.subr.mxu0 0.0
        %1013 = vmatpush1.msra.mxu0 0.0
        %1014 = vmatprep.subr.mxu0 0.0
        %1015 = vmatpush1.msra.mxu0 0.0
        %1016 = vmatprep.subr.mxu0 0.0
        %1017 = vmatpush1.msra.mxu0 0.0
        %1018 = vmatprep.subr.mxu0 0.0
        %1019 = vmatpush1.msra.mxu0 0.0
        %1020 = vmatprep.subr.mxu0 0.0
        %1021 = vmatpush1.msra.mxu0 0.0
        %1022 = vmatprep.subr.mxu0 0.0
        %1023 = vmatpush1.msra.mxu0 0.0
        %1024 = vmatprep.subr.mxu0 0.0
        %1025 = vmatpush1.msra.mxu0 0.0
        %1026 = vmatprep.subr.mxu0 0.0
        %1027 = vmatpush1.msra.mxu0 0.0
        %1028 = vmatprep.subr.mxu0 0.0
        %1029 = vmatpush1.msra.mxu0 0.0
        %1030 = vmatprep.subr.mxu0 0.0
        %1031 = vmatpush1.msra.mxu0 0.0
        %1032 = vmatprep.subr.mxu0 0.0
        %1033 = vmatpush1.msra.mxu0 0.0
        %1034 = vmatprep.subr.mxu0 0.0
        %1035 = vmatpush1.msra.mxu0 0.0
        %1036 = vmatprep.subr.mxu0 0.0
        %1037 = vmatpush1.msra.mxu0 0.0
        %1038 = vmatprep.subr.mxu0 0.0
        %1039 = vmatpush1.msra.mxu0 0.0
        %1040 = vmatprep.subr.mxu0 0.0
        %1041 = vmatpush1.msra.mxu0 0.0
        %1042 = vmatprep.subr.mxu0 0.0
        %1043 = vmatpush1.msra.mxu0 0.0
        %1044 = vmatprep.subr.mxu0 0.0
        %1045 = vmatpush1.msra.mxu0 0.0
        %1046 = vmatprep.subr.mxu0 0.0
        %1047 = vmatpush1.msra.mxu0 0.0
        %1048 = vmatprep.subr.mxu0 0.0
        %1049 = vmatpush1.msra.mxu0 0.0
        %1050 = vmatprep.subr.mxu0 0.0
        %1051 = vmatpush1.msra.mxu0 0.0
        %1052 = vmatprep.subr.mxu0 0.0
        %1053 = vmatpush1.msra.mxu0 0.0
        %1054 = vmatprep.subr.mxu0 0.0
        %1055 = vmatpush1.msra.mxu0 0.0
        %1056 = vmatprep.subr.mxu0 0.0
        %1057 = vmatpush1.msra.mxu0 0.0
        %1058 = vmatprep.subr.mxu0 0.0
        %1059 = vmatpush1.msra.mxu0 0.0
        %1060 = vmatprep.subr.mxu0 0.0
        %1061 = vmatpush1.msra.mxu0 0.0
        %1062 = vmatprep.subr.mxu0 0.0
        %1063 = vmatpush1.msra.mxu0 0.0
        %1064 = vmatprep.subr.mxu0 0.0
        %1065 = vmatpush1.msra.mxu0 0.0
        %1066 = vmatprep.subr.mxu0 0.0
        %1067 = vmatpush1.msra.mxu0 0.0
        %1068 = vmatprep.mubr.f32.mxu0 0.0
        %1069 = vmatmul.mubr.f32.gmra.mrb[0].mxu0 %v651
        %v1070 = vpop.f32.mrb[0].mxu0
        %v1071 = vadd.f32 %v534, %v1070
        %v1072 = vpop.f32.mrb[0].mxu0
        %1073 = vmatprep.mubr.f32.mxu0 0.0
        %1074 = vmatmul.mubr.f32.gmra.mrb[0].mxu0 %v654
        %v1075 = vpop.f32.mrb[0].mxu0
        %v1076 = vadd.f32 %v539, %v1075
        %v1077 = vpop.f32.mrb[0].mxu0
        %1078 = vdwg.mxu0
        %v1079 = vmax.f32 %v1071, 0.0
        %v1080 = vmax.f32 %v1076, 0.0
        %v1081 = vadd.f32 %v907, %v1079
        %v1082 = vadd.f32 %v908, %v1080
        %s1083 = scalar_lea.vmem %s470, 48 [#allocation2]
        %v1084 = vld [vmem:[%s1083] sm:$0xff]
        %v1085 = vld [vmem:[%s1083 + $0x8] sm:$0xf]
        %v1087 = vsel %vm556, %v1085, 0
        %1089 = vmatprep.subr.mxu0 0.0
        %1090 = vmatpush1.msra.mxu0 %v1084
        %1091 = vmatprep.subr.mxu0 0.0
        %1092 = vmatpush1.msra.mxu0 %v1087
        %1093 = vmatprep.subr.mxu0 0.0
        %1094 = vmatpush1.msra.mxu0 0.0
        %1095 = vmatprep.subr.mxu0 0.0
        %1096 = vmatpush1.msra.mxu0 0.0
        %1097 = vmatprep.subr.mxu0 0.0
        %1098 = vmatpush1.msra.mxu0 0.0
        %1099 = vmatprep.subr.mxu0 0.0
        %1100 = vmatpush1.msra.mxu0 0.0
        %1101 = vmatprep.subr.mxu0 0.0
        %1102 = vmatpush1.msra.mxu0 0.0
        %1103 = vmatprep.subr.mxu0 0.0
        %1104 = vmatpush1.msra.mxu0 0.0
        %1105 = vmatprep.subr.mxu0 0.0
        %1106 = vmatpush1.msra.mxu0 0.0
        %1107 = vmatprep.subr.mxu0 0.0
        %1108 = vmatpush1.msra.mxu0 0.0
        %1109 = vmatprep.subr.mxu0 0.0
        %1110 = vmatpush1.msra.mxu0 0.0
        %1111 = vmatprep.subr.mxu0 0.0
        %1112 = vmatpush1.msra.mxu0 0.0
        %1113 = vmatprep.subr.mxu0 0.0
        %1114 = vmatpush1.msra.mxu0 0.0
        %1115 = vmatprep.subr.mxu0 0.0
        %1116 = vmatpush1.msra.mxu0 0.0
        %1117 = vmatprep.subr.mxu0 0.0
        %1118 = vmatpush1.msra.mxu0 0.0
        %1119 = vmatprep.subr.mxu0 0.0
        %1120 = vmatpush1.msra.mxu0 0.0
        %1121 = vmatprep.subr.mxu0 0.0
        %1122 = vmatpush1.msra.mxu0 0.0
        %1123 = vmatprep.subr.mxu0 0.0
        %1124 = vmatpush1.msra.mxu0 0.0
        %1125 = vmatprep.subr.mxu0 0.0
        %1126 = vmatpush1.msra.mxu0 0.0
        %1127 = vmatprep.subr.mxu0 0.0
        %1128 = vmatpush1.msra.mxu0 0.0
        %1129 = vmatprep.subr.mxu0 0.0
        %1130 = vmatpush1.msra.mxu0 0.0
        %1131 = vmatprep.subr.mxu0 0.0
        %1132 = vmatpush1.msra.mxu0 0.0
        %1133 = vmatprep.subr.mxu0 0.0
        %1134 = vmatpush1.msra.mxu0 0.0
        %1135 = vmatprep.subr.mxu0 0.0
        %1136 = vmatpush1.msra.mxu0 0.0
        %1137 = vmatprep.subr.mxu0 0.0
        %1138 = vmatpush1.msra.mxu0 0.0
        %1139 = vmatprep.subr.mxu0 0.0
        %1140 = vmatpush1.msra.mxu0 0.0
        %1141 = vmatprep.subr.mxu0 0.0
        %1142 = vmatpush1.msra.mxu0 0.0
        %1143 = vmatprep.subr.mxu0 0.0
        %1144 = vmatpush1.msra.mxu0 0.0
        %1145 = vmatprep.subr.mxu0 0.0
        %1146 = vmatpush1.msra.mxu0 0.0
        %1147 = vmatprep.subr.mxu0 0.0
        %1148 = vmatpush1.msra.mxu0 0.0
        %1149 = vmatprep.subr.mxu0 0.0
        %1150 = vmatpush1.msra.mxu0 0.0
        %1151 = vmatprep.subr.mxu0 0.0
        %1152 = vmatpush1.msra.mxu0 0.0
        %1153 = vmatprep.mubr.f32.mxu0 0.0
        %1154 = vmatmul.mubr.f32.gmra.mrb[0].mxu0 %v545
        %v1155 = vpop.f32.mrb[0].mxu0
        %v1156 = vadd.f32 %v512, %v1155
        %v1157 = vpop.f32.mrb[0].mxu0
        %1158 = vmatprep.mubr.f32.mxu0 0.0
        %1159 = vmatmul.mubr.f32.gmra.mrb[0].mxu0 %v548
        %v1160 = vpop.f32.mrb[0].mxu0
        %v1161 = vadd.f32 %v517, %v1160
        %v1162 = vpop.f32.mrb[0].mxu0
        %1163 = vmatprep.mubr.f32.mxu0 0.0
        %1164 = vmatmul.mubr.f32.gmra.mrb[0].mxu0 %v551
        %v1165 = vpop.f32.mrb[0].mxu0
        %v1166 = vadd.f32 %v522, %v1165
        %v1167 = vpop.f32.mrb[0].mxu0
        %1168 = vmatprep.mubr.f32.mxu0 0.0
        %1169 = vmatmul.mubr.f32.gmra.mrb[0].mxu0 %v554
        %v1170 = vpop.f32.mrb[0].mxu0
        %v1171 = vadd.f32 %v527, %v1170
        %v1172 = vpop.f32.mrb[0].mxu0
        %1173 = vdwg.mxu0
        %v1174 = vmax.f32 %v1156, 0.0
        %v1175 = vmax.f32 %v1161, 0.0
        %v1176 = vmax.f32 %v1166, 0.0
        %v1177 = vmax.f32 %v1171, 0.0
        %1178 = vmatprep.subr.mxu0 0.0
        %1179 = vmatpush1.msra.mxu0 %v1174
        %1180 = vmatprep.subr.mxu0 0.0
        %1181 = vmatpush1.msra.mxu0 %v1175
        %1182 = vmatprep.subr.mxu0 0.0
        %1183 = vmatpush1.msra.mxu0 %v1176
        %1184 = vmatprep.subr.mxu0 0.0
        %1185 = vmatpush1.msra.mxu0 %v1177
        %1186 = vmatprep.subr.mxu0 0.0
        %1187 = vmatpush1.msra.mxu0 0.0
        %1188 = vmatprep.subr.mxu0 0.0
        %1189 = vmatpush1.msra.mxu0 0.0
        %1190 = vmatprep.subr.mxu0 0.0
        %1191 = vmatpush1.msra.mxu0 0.0
        %1192 = vmatprep.subr.mxu0 0.0
        %1193 = vmatpush1.msra.mxu0 0.0
        %1194 = vmatprep.subr.mxu0 0.0
        %1195 = vmatpush1.msra.mxu0 0.0
        %1196 = vmatprep.subr.mxu0 0.0
        %1197 = vmatpush1.msra.mxu0 0.0
        %1198 = vmatprep.subr.mxu0 0.0
        %1199 = vmatpush1.msra.mxu0 0.0
        %1200 = vmatprep.subr.mxu0 0.0
        %1201 = vmatpush1.msra.mxu0 0.0
        %1202 = vmatprep.subr.mxu0 0.0
        %1203 = vmatpush1.msra.mxu0 0.0
        %1204 = vmatprep.subr.mxu0 0.0
        %1205 = vmatpush1.msra.mxu0 0.0
        %1206 = vmatprep.subr.mxu0 0.0
        %1207 = vmatpush1.msra.mxu0 0.0
        %1208 = vmatprep.subr.mxu0 0.0
        %1209 = vmatpush1.msra.mxu0 0.0
        %1210 = vmatprep.subr.mxu0 0.0
        %1211 = vmatpush1.msra.mxu0 0.0
        %1212 = vmatprep.subr.mxu0 0.0
        %1213 = vmatpush1.msra.mxu0 0.0
        %1214 = vmatprep.subr.mxu0 0.0
        %1215 = vmatpush1.msra.mxu0 0.0
        %1216 = vmatprep.subr.mxu0 0.0
        %1217 = vmatpush1.msra.mxu0 0.0
        %1218 = vmatprep.subr.mxu0 0.0
        %1219 = vmatpush1.msra.mxu0 0.0
        %1220 = vmatprep.subr.mxu0 0.0
        %1221 = vmatpush1.msra.mxu0 0.0
        %1222 = vmatprep.subr.mxu0 0.0
        %1223 = vmatpush1.msra.mxu0 0.0
        %1224 = vmatprep.subr.mxu0 0.0
        %1225 = vmatpush1.msra.mxu0 0.0
        %1226 = vmatprep.subr.mxu0 0.0
        %1227 = vmatpush1.msra.mxu0 0.0
        %1228 = vmatprep.subr.mxu0 0.0
        %1229 = vmatpush1.msra.mxu0 0.0
        %1230 = vmatprep.subr.mxu0 0.0
        %1231 = vmatpush1.msra.mxu0 0.0
        %1232 = vmatprep.subr.mxu0 0.0
        %1233 = vmatpush1.msra.mxu0 0.0
        %1234 = vmatprep.subr.mxu0 0.0
        %1235 = vmatpush1.msra.mxu0 0.0
        %1236 = vmatprep.subr.mxu0 0.0
        %1237 = vmatpush1.msra.mxu0 0.0
        %1238 = vmatprep.subr.mxu0 0.0
        %1239 = vmatpush1.msra.mxu0 0.0
        %1240 = vmatprep.subr.mxu0 0.0
        %1241 = vmatpush1.msra.mxu0 0.0
        %1242 = vmatprep.mubr.f32.mxu0 0.0
        %1243 = vmatmul.mubr.f32.gmra.mrb[0].mxu0 %v651
        %v1244 = vpop.f32.mrb[0].mxu0
        %v1245 = vadd.f32 %v534, %v1244
        %v1246 = vpop.f32.mrb[0].mxu0
        %1247 = vmatprep.mubr.f32.mxu0 0.0
        %1248 = vmatmul.mubr.f32.gmra.mrb[0].mxu0 %v654
        %v1249 = vpop.f32.mrb[0].mxu0
        %v1250 = vadd.f32 %v539, %v1249
        %v1251 = vpop.f32.mrb[0].mxu0
        %1252 = vdwg.mxu0
        %v1253 = vmax.f32 %v1245, 0.0
        %v1254 = vmax.f32 %v1250, 0.0
        %v1255 = vadd.f32 %v1081, %v1253
        %v1256 = vadd.f32 %v1082, %v1254
        %s1257 = scalar_lea.vmem %s470, 64 [#allocation2]
        %v1258 = vld [vmem:[%s1257] sm:$0xff]
        %v1259 = vld [vmem:[%s1257 + $0x8] sm:$0xf]
        %v1261 = vsel %vm556, %v1259, 0
        %1263 = vmatprep.subr.mxu0 0.0
        %1264 = vmatpush1.msra.mxu0 %v1258
        %1265 = vmatprep.subr.mxu0 0.0
        %1266 = vmatpush1.msra.mxu0 %v1261
        %1267 = vmatprep.subr.mxu0 0.0
        %1268 = vmatpush1.msra.mxu0 0.0
        %1269 = vmatprep.subr.mxu0 0.0
        %1270 = vmatpush1.msra.mxu0 0.0
        %1271 = vmatprep.subr.mxu0 0.0
        %1272 = vmatpush1.msra.mxu0 0.0
        %1273 = vmatprep.subr.mxu0 0.0
        %1274 = vmatpush1.msra.mxu0 0.0
        %1275 = vmatprep.subr.mxu0 0.0
        %1276 = vmatpush1.msra.mxu0 0.0
        %1277 = vmatprep.subr.mxu0 0.0
        %1278 = vmatpush1.msra.mxu0 0.0
        %1279 = vmatprep.subr.mxu0 0.0
        %1280 = vmatpush1.msra.mxu0 0.0
        %1281 = vmatprep.subr.mxu0 0.0
        %1282 = vmatpush1.msra.mxu0 0.0
        %1283 = vmatprep.subr.mxu0 0.0
        %1284 = vmatpush1.msra.mxu0 0.0
        %1285 = vmatprep.subr.mxu0 0.0
        %1286 = vmatpush1.msra.mxu0 0.0
        %1287 = vmatprep.subr.mxu0 0.0
        %1288 = vmatpush1.msra.mxu0 0.0
        %1289 = vmatprep.subr.mxu0 0.0
        %1290 = vmatpush1.msra.mxu0 0.0
        %1291 = vmatprep.subr.mxu0 0.0
        %1292 = vmatpush1.msra.mxu0 0.0
        %1293 = vmatprep.subr.mxu0 0.0
        %1294 = vmatpush1.msra.mxu0 0.0
        %1295 = vmatprep.subr.mxu0 0.0
        %1296 = vmatpush1.msra.mxu0 0.0
        %1297 = vmatprep.subr.mxu0 0.0
        %1298 = vmatpush1.msra.mxu0 0.0
        %1299 = vmatprep.subr.mxu0 0.0
        %1300 = vmatpush1.msra.mxu0 0.0
        %1301 = vmatprep.subr.mxu0 0.0
        %1302 = vmatpush1.msra.mxu0 0.0
        %1303 = vmatprep.subr.mxu0 0.0
        %1304 = vmatpush1.msra.mxu0 0.0
        %1305 = vmatprep.subr.mxu0 0.0
        %1306 = vmatpush1.msra.mxu0 0.0
        %1307 = vmatprep.subr.mxu0 0.0
        %1308 = vmatpush1.msra.mxu0 0.0
        %1309 = vmatprep.subr.mxu0 0.0
        %1310 = vmatpush1.msra.mxu0 0.0
        %1311 = vmatprep.subr.mxu0 0.0
        %1312 = vmatpush1.msra.mxu0 0.0
        %1313 = vmatprep.subr.mxu0 0.0
        %1314 = vmatpush1.msra.mxu0 0.0
        %1315 = vmatprep.subr.mxu0 0.0
        %1316 = vmatpush1.msra.mxu0 0.0
        %1317 = vmatprep.subr.mxu0 0.0
        %1318 = vmatpush1.msra.mxu0 0.0
        %1319 = vmatprep.subr.mxu0 0.0
        %1320 = vmatpush1.msra.mxu0 0.0
        %1321 = vmatprep.subr.mxu0 0.0
        %1322 = vmatpush1.msra.mxu0 0.0
        %1323 = vmatprep.subr.mxu0 0.0
        %1324 = vmatpush1.msra.mxu0 0.0
        %1325 = vmatprep.subr.mxu0 0.0
        %1326 = vmatpush1.msra.mxu0 0.0
        %1327 = vmatprep.mubr.f32.mxu0 0.0
        %1328 = vmatmul.mubr.f32.gmra.mrb[0].mxu0 %v545
        %v1329 = vpop.f32.mrb[0].mxu0
        %v1330 = vadd.f32 %v512, %v1329
        %v1331 = vpop.f32.mrb[0].mxu0
        %1332 = vmatprep.mubr.f32.mxu0 0.0
        %1333 = vmatmul.mubr.f32.gmra.mrb[0].mxu0 %v548
        %v1334 = vpop.f32.mrb[0].mxu0
        %v1335 = vadd.f32 %v517, %v1334
        %v1336 = vpop.f32.mrb[0].mxu0
        %1337 = vmatprep.mubr.f32.mxu0 0.0
        %1338 = vmatmul.mubr.f32.gmra.mrb[0].mxu0 %v551
        %v1339 = vpop.f32.mrb[0].mxu0
        %v1340 = vadd.f32 %v522, %v1339
        %v1341 = vpop.f32.mrb[0].mxu0
        %1342 = vmatprep.mubr.f32.mxu0 0.0
        %1343 = vmatmul.mubr.f32.gmra.mrb[0].mxu0 %v554
        %v1344 = vpop.f32.mrb[0].mxu0
        %v1345 = vadd.f32 %v527, %v1344
        %v1346 = vpop.f32.mrb[0].mxu0
        %1347 = vdwg.mxu0
        %v1348 = vmax.f32 %v1330, 0.0
        %v1349 = vmax.f32 %v1335, 0.0
        %v1350 = vmax.f32 %v1340, 0.0
        %v1351 = vmax.f32 %v1345, 0.0
        %1352 = vmatprep.subr.mxu0 0.0
        %1353 = vmatpush1.msra.mxu0 %v1348
        %1354 = vmatprep.subr.mxu0 0.0
        %1355 = vmatpush1.msra.mxu0 %v1349
        %1356 = vmatprep.subr.mxu0 0.0
        %1357 = vmatpush1.msra.mxu0 %v1350
        %1358 = vmatprep.subr.mxu0 0.0
        %1359 = vmatpush1.msra.mxu0 %v1351
        %1360 = vmatprep.subr.mxu0 0.0
        %1361 = vmatpush1.msra.mxu0 0.0
        %1362 = vmatprep.subr.mxu0 0.0
        %1363 = vmatpush1.msra.mxu0 0.0
        %1364 = vmatprep.subr.mxu0 0.0
        %1365 = vmatpush1.msra.mxu0 0.0
        %1366 = vmatprep.subr.mxu0 0.0
        %1367 = vmatpush1.msra.mxu0 0.0
        %1368 = vmatprep.subr.mxu0 0.0
        %1369 = vmatpush1.msra.mxu0 0.0
        %1370 = vmatprep.subr.mxu0 0.0
        %1371 = vmatpush1.msra.mxu0 0.0
        %1372 = vmatprep.subr.mxu0 0.0
        %1373 = vmatpush1.msra.mxu0 0.0
        %1374 = vmatprep.subr.mxu0 0.0
        %1375 = vmatpush1.msra.mxu0 0.0
        %1376 = vmatprep.subr.mxu0 0.0
        %1377 = vmatpush1.msra.mxu0 0.0
        %1378 = vmatprep.subr.mxu0 0.0
        %1379 = vmatpush1.msra.mxu0 0.0
        %1380 = vmatprep.subr.mxu0 0.0
        %1381 = vmatpush1.msra.mxu0 0.0
        %1382 = vmatprep.subr.mxu0 0.0
        %1383 = vmatpush1.msra.mxu0 0.0
        %1384 = vmatprep.subr.mxu0 0.0
        %1385 = vmatpush1.msra.mxu0 0.0
        %1386 = vmatprep.subr.mxu0 0.0
        %1387 = vmatpush1.msra.mxu0 0.0
        %1388 = vmatprep.subr.mxu0 0.0
        %1389 = vmatpush1.msra.mxu0 0.0
        %1390 = vmatprep.subr.mxu0 0.0
        %1391 = vmatpush1.msra.mxu0 0.0
        %1392 = vmatprep.subr.mxu0 0.0
        %1393 = vmatpush1.msra.mxu0 0.0
        %1394 = vmatprep.subr.mxu0 0.0
        %1395 = vmatpush1.msra.mxu0 0.0
        %1396 = vmatprep.subr.mxu0 0.0
        %1397 = vmatpush1.msra.mxu0 0.0
        %1398 = vmatprep.subr.mxu0 0.0
        %1399 = vmatpush1.msra.mxu0 0.0
        %1400 = vmatprep.subr.mxu0 0.0
        %1401 = vmatpush1.msra.mxu0 0.0
        %1402 = vmatprep.subr.mxu0 0.0
        %1403 = vmatpush1.msra.mxu0 0.0
        %1404 = vmatprep.subr.mxu0 0.0
        %1405 = vmatpush1.msra.mxu0 0.0
        %1406 = vmatprep.subr.mxu0 0.0
        %1407 = vmatpush1.msra.mxu0 0.0
        %1408 = vmatprep.subr.mxu0 0.0
        %1409 = vmatpush1.msra.mxu0 0.0
        %1410 = vmatprep.subr.mxu0 0.0
        %1411 = vmatpush1.msra.mxu0 0.0
        %1412 = vmatprep.subr.mxu0 0.0
        %1413 = vmatpush1.msra.mxu0 0.0
        %1414 = vmatprep.subr.mxu0 0.0
        %1415 = vmatpush1.msra.mxu0 0.0
        %1416 = vmatprep.mubr.f32.mxu0 0.0
        %1417 = vmatmul.mubr.f32.gmra.mrb[0].mxu0 %v651
        %v1418 = vpop.f32.mrb[0].mxu0
        %v1419 = vadd.f32 %v534, %v1418
        %v1420 = vpop.f32.mrb[0].mxu0
        %1421 = vmatprep.mubr.f32.mxu0 0.0
        %1422 = vmatmul.mubr.f32.gmra.mrb[0].mxu0 %v654
        %v1423 = vpop.f32.mrb[0].mxu0
        %v1424 = vadd.f32 %v539, %v1423
        %v1425 = vpop.f32.mrb[0].mxu0
        %1426 = vdwg.mxu0
        %v1427 = vmax.f32 %v1419, 0.0
        %v1428 = vmax.f32 %v1424, 0.0
        %v1429 = vadd.f32 %v1255, %v1427
        %v1430 = vadd.f32 %v1256, %v1428
        %s1431 = scalar_lea.vmem %s470, 80 [#allocation2]
        %v1432 = vld [vmem:[%s1431] sm:$0xff]
        %v1433 = vld [vmem:[%s1431 + $0x8] sm:$0xf]
        %v1435 = vsel %vm556, %v1433, 0
        %1437 = vmatprep.subr.mxu0 0.0
        %1438 = vmatpush1.msra.mxu0 %v1432
        %1439 = vmatprep.subr.mxu0 0.0
        %1440 = vmatpush1.msra.mxu0 %v1435
        %1441 = vmatprep.subr.mxu0 0.0
        %1442 = vmatpush1.msra.mxu0 0.0
        %1443 = vmatprep.subr.mxu0 0.0
        %1444 = vmatpush1.msra.mxu0 0.0
        %1445 = vmatprep.subr.mxu0 0.0
        %1446 = vmatpush1.msra.mxu0 0.0
        %1447 = vmatprep.subr.mxu0 0.0
        %1448 = vmatpush1.msra.mxu0 0.0
        %1449 = vmatprep.subr.mxu0 0.0
        %1450 = vmatpush1.msra.mxu0 0.0
        %1451 = vmatprep.subr.mxu0 0.0
        %1452 = vmatpush1.msra.mxu0 0.0
        %1453 = vmatprep.subr.mxu0 0.0
        %1454 = vmatpush1.msra.mxu0 0.0
        %1455 = vmatprep.subr.mxu0 0.0
        %1456 = vmatpush1.msra.mxu0 0.0
        %1457 = vmatprep.subr.mxu0 0.0
        %1458 = vmatpush1.msra.mxu0 0.0
        %1459 = vmatprep.subr.mxu0 0.0
        %1460 = vmatpush1.msra.mxu0 0.0
        %1461 = vmatprep.subr.mxu0 0.0
        %1462 = vmatpush1.msra.mxu0 0.0
        %1463 = vmatprep.subr.mxu0 0.0
        %1464 = vmatpush1.msra.mxu0 0.0
        %1465 = vmatprep.subr.mxu0 0.0
        %1466 = vmatpush1.msra.mxu0 0.0
        %1467 = vmatprep.subr.mxu0 0.0
        %1468 = vmatpush1.msra.mxu0 0.0
        %1469 = vmatprep.subr.mxu0 0.0
        %1470 = vmatpush1.msra.mxu0 0.0
        %1471 = vmatprep.subr.mxu0 0.0
        %1472 = vmatpush1.msra.mxu0 0.0
        %1473 = vmatprep.subr.mxu0 0.0
        %1474 = vmatpush1.msra.mxu0 0.0
        %1475 = vmatprep.subr.mxu0 0.0
        %1476 = vmatpush1.msra.mxu0 0.0
        %1477 = vmatprep.subr.mxu0 0.0
        %1478 = vmatpush1.msra.mxu0 0.0
        %1479 = vmatprep.subr.mxu0 0.0
        %1480 = vmatpush1.msra.mxu0 0.0
        %1481 = vmatprep.subr.mxu0 0.0
        %1482 = vmatpush1.msra.mxu0 0.0
        %1483 = vmatprep.subr.mxu0 0.0
        %1484 = vmatpush1.msra.mxu0 0.0
        %1485 = vmatprep.subr.mxu0 0.0
        %1486 = vmatpush1.msra.mxu0 0.0
        %1487 = vmatprep.subr.mxu0 0.0
        %1488 = vmatpush1.msra.mxu0 0.0
        %1489 = vmatprep.subr.mxu0 0.0
        %1490 = vmatpush1.msra.mxu0 0.0
        %1491 = vmatprep.subr.mxu0 0.0
        %1492 = vmatpush1.msra.mxu0 0.0
        %1493 = vmatprep.subr.mxu0 0.0
        %1494 = vmatpush1.msra.mxu0 0.0
        %1495 = vmatprep.subr.mxu0 0.0
        %1496 = vmatpush1.msra.mxu0 0.0
        %1497 = vmatprep.subr.mxu0 0.0
        %1498 = vmatpush1.msra.mxu0 0.0
        %1499 = vmatprep.subr.mxu0 0.0
        %1500 = vmatpush1.msra.mxu0 0.0
        %1501 = vmatprep.mubr.f32.mxu0 0.0
        %1502 = vmatmul.mubr.f32.gmra.mrb[0].mxu0 %v545
        %v1503 = vpop.f32.mrb[0].mxu0
        %v1504 = vadd.f32 %v512, %v1503
        %v1505 = vpop.f32.mrb[0].mxu0
        %1506 = vmatprep.mubr.f32.mxu0 0.0
        %1507 = vmatmul.mubr.f32.gmra.mrb[0].mxu0 %v548
        %v1508 = vpop.f32.mrb[0].mxu0
        %v1509 = vadd.f32 %v517, %v1508
        %v1510 = vpop.f32.mrb[0].mxu0
        %1511 = vmatprep.mubr.f32.mxu0 0.0
        %1512 = vmatmul.mubr.f32.gmra.mrb[0].mxu0 %v551
        %v1513 = vpop.f32.mrb[0].mxu0
        %v1514 = vadd.f32 %v522, %v1513
        %v1515 = vpop.f32.mrb[0].mxu0
        %1516 = vmatprep.mubr.f32.mxu0 0.0
        %1517 = vmatmul.mubr.f32.gmra.mrb[0].mxu0 %v554
        %v1518 = vpop.f32.mrb[0].mxu0
        %v1519 = vadd.f32 %v527, %v1518
        %v1520 = vpop.f32.mrb[0].mxu0
        %1521 = vdwg.mxu0
        %v1522 = vmax.f32 %v1504, 0.0
        %v1523 = vmax.f32 %v1509, 0.0
        %v1524 = vmax.f32 %v1514, 0.0
        %v1525 = vmax.f32 %v1519, 0.0
        %1526 = vmatprep.subr.mxu0 0.0
        %1527 = vmatpush1.msra.mxu0 %v1522
        %1528 = vmatprep.subr.mxu0 0.0
        %1529 = vmatpush1.msra.mxu0 %v1523
        %1530 = vmatprep.subr.mxu0 0.0
        %1531 = vmatpush1.msra.mxu0 %v1524
        %1532 = vmatprep.subr.mxu0 0.0
        %1533 = vmatpush1.msra.mxu0 %v1525
        %1534 = vmatprep.subr.mxu0 0.0
        %1535 = vmatpush1.msra.mxu0 0.0
        %1536 = vmatprep.subr.mxu0 0.0
        %1537 = vmatpush1.msra.mxu0 0.0
        %1538 = vmatprep.subr.mxu0 0.0
        %1539 = vmatpush1.msra.mxu0 0.0
        %1540 = vmatprep.subr.mxu0 0.0
        %1541 = vmatpush1.msra.mxu0 0.0
        %1542 = vmatprep.subr.mxu0 0.0
        %1543 = vmatpush1.msra.mxu0 0.0
        %1544 = vmatprep.subr.mxu0 0.0
        %1545 = vmatpush1.msra.mxu0 0.0
        %1546 = vmatprep.subr.mxu0 0.0
        %1547 = vmatpush1.msra.mxu0 0.0
        %1548 = vmatprep.subr.mxu0 0.0
        %1549 = vmatpush1.msra.mxu0 0.0
        %1550 = vmatprep.subr.mxu0 0.0
        %1551 = vmatpush1.msra.mxu0 0.0
        %1552 = vmatprep.subr.mxu0 0.0
        %1553 = vmatpush1.msra.mxu0 0.0
        %1554 = vmatprep.subr.mxu0 0.0
        %1555 = vmatpush1.msra.mxu0 0.0
        %1556 = vmatprep.subr.mxu0 0.0
        %1557 = vmatpush1.msra.mxu0 0.0
        %1558 = vmatprep.subr.mxu0 0.0
        %1559 = vmatpush1.msra.mxu0 0.0
        %1560 = vmatprep.subr.mxu0 0.0
        %1561 = vmatpush1.msra.mxu0 0.0
        %1562 = vmatprep.subr.mxu0 0.0
        %1563 = vmatpush1.msra.mxu0 0.0
        %1564 = vmatprep.subr.mxu0 0.0
        %1565 = vmatpush1.msra.mxu0 0.0
        %1566 = vmatprep.subr.mxu0 0.0
        %1567 = vmatpush1.msra.mxu0 0.0
        %1568 = vmatprep.subr.mxu0 0.0
        %1569 = vmatpush1.msra.mxu0 0.0
        %1570 = vmatprep.subr.mxu0 0.0
        %1571 = vmatpush1.msra.mxu0 0.0
        %1572 = vmatprep.subr.mxu0 0.0
        %1573 = vmatpush1.msra.mxu0 0.0
        %1574 = vmatprep.subr.mxu0 0.0
        %1575 = vmatpush1.msra.mxu0 0.0
        %1576 = vmatprep.subr.mxu0 0.0
        %1577 = vmatpush1.msra.mxu0 0.0
        %1578 = vmatprep.subr.mxu0 0.0
        %1579 = vmatpush1.msra.mxu0 0.0
        %1580 = vmatprep.subr.mxu0 0.0
        %1581 = vmatpush1.msra.mxu0 0.0
        %1582 = vmatprep.subr.mxu0 0.0
        %1583 = vmatpush1.msra.mxu0 0.0
        %1584 = vmatprep.subr.mxu0 0.0
        %1585 = vmatpush1.msra.mxu0 0.0
        %1586 = vmatprep.subr.mxu0 0.0
        %1587 = vmatpush1.msra.mxu0 0.0
        %1588 = vmatprep.subr.mxu0 0.0
        %1589 = vmatpush1.msra.mxu0 0.0
        %1590 = vmatprep.mubr.f32.mxu0 0.0
        %1591 = vmatmul.mubr.f32.gmra.mrb[0].mxu0 %v651
        %v1592 = vpop.f32.mrb[0].mxu0
        %v1593 = vadd.f32 %v534, %v1592
        %v1594 = vpop.f32.mrb[0].mxu0
        %1595 = vmatprep.mubr.f32.mxu0 0.0
        %1596 = vmatmul.mubr.f32.gmra.mrb[0].mxu0 %v654
        %v1597 = vpop.f32.mrb[0].mxu0
        %v1598 = vadd.f32 %v539, %v1597
        %v1599 = vpop.f32.mrb[0].mxu0
        %1600 = vdwg.mxu0
        %v1601 = vmax.f32 %v1593, 0.0
        %v1602 = vmax.f32 %v1598, 0.0
        %v1603 = vadd.f32 %v1429, %v1601
        %v1604 = vadd.f32 %v1430, %v1602
        %s1605 = scalar_lea.vmem %s470, 96 [#allocation2]
        %v1606 = vld [vmem:[%s1605] sm:$0xff]
        %v1607 = vld [vmem:[%s1605 + $0x8] sm:$0xf]
        %v1609 = vsel %vm556, %v1607, 0
        %1611 = vmatprep.subr.mxu0 0.0
        %1612 = vmatpush1.msra.mxu0 %v1606
        %1613 = vmatprep.subr.mxu0 0.0
        %1614 = vmatpush1.msra.mxu0 %v1609
        %1615 = vmatprep.subr.mxu0 0.0
        %1616 = vmatpush1.msra.mxu0 0.0
        %1617 = vmatprep.subr.mxu0 0.0
        %1618 = vmatpush1.msra.mxu0 0.0
        %1619 = vmatprep.subr.mxu0 0.0
        %1620 = vmatpush1.msra.mxu0 0.0
        %1621 = vmatprep.subr.mxu0 0.0
        %1622 = vmatpush1.msra.mxu0 0.0
        %1623 = vmatprep.subr.mxu0 0.0
        %1624 = vmatpush1.msra.mxu0 0.0
        %1625 = vmatprep.subr.mxu0 0.0
        %1626 = vmatpush1.msra.mxu0 0.0
        %1627 = vmatprep.subr.mxu0 0.0
        %1628 = vmatpush1.msra.mxu0 0.0
        %1629 = vmatprep.subr.mxu0 0.0
        %1630 = vmatpush1.msra.mxu0 0.0
        %1631 = vmatprep.subr.mxu0 0.0
        %1632 = vmatpush1.msra.mxu0 0.0
        %1633 = vmatprep.subr.mxu0 0.0
        %1634 = vmatpush1.msra.mxu0 0.0
        %1635 = vmatprep.subr.mxu0 0.0
        %1636 = vmatpush1.msra.mxu0 0.0
        %1637 = vmatprep.subr.mxu0 0.0
        %1638 = vmatpush1.msra.mxu0 0.0
        %1639 = vmatprep.subr.mxu0 0.0
        %1640 = vmatpush1.msra.mxu0 0.0
        %1641 = vmatprep.subr.mxu0 0.0
        %1642 = vmatpush1.msra.mxu0 0.0
        %1643 = vmatprep.subr.mxu0 0.0
        %1644 = vmatpush1.msra.mxu0 0.0
        %1645 = vmatprep.subr.mxu0 0.0
        %1646 = vmatpush1.msra.mxu0 0.0
        %1647 = vmatprep.subr.mxu0 0.0
        %1648 = vmatpush1.msra.mxu0 0.0
        %1649 = vmatprep.subr.mxu0 0.0
        %1650 = vmatpush1.msra.mxu0 0.0
        %1651 = vmatprep.subr.mxu0 0.0
        %1652 = vmatpush1.msra.mxu0 0.0
        %1653 = vmatprep.subr.mxu0 0.0
        %1654 = vmatpush1.msra.mxu0 0.0
        %1655 = vmatprep.subr.mxu0 0.0
        %1656 = vmatpush1.msra.mxu0 0.0
        %1657 = vmatprep.subr.mxu0 0.0
        %1658 = vmatpush1.msra.mxu0 0.0
        %1659 = vmatprep.subr.mxu0 0.0
        %1660 = vmatpush1.msra.mxu0 0.0
        %1661 = vmatprep.subr.mxu0 0.0
        %1662 = vmatpush1.msra.mxu0 0.0
        %1663 = vmatprep.subr.mxu0 0.0
        %1664 = vmatpush1.msra.mxu0 0.0
        %1665 = vmatprep.subr.mxu0 0.0
        %1666 = vmatpush1.msra.mxu0 0.0
        %1667 = vmatprep.subr.mxu0 0.0
        %1668 = vmatpush1.msra.mxu0 0.0
        %1669 = vmatprep.subr.mxu0 0.0
        %1670 = vmatpush1.msra.mxu0 0.0
        %1671 = vmatprep.subr.mxu0 0.0
        %1672 = vmatpush1.msra.mxu0 0.0
        %1673 = vmatprep.subr.mxu0 0.0
        %1674 = vmatpush1.msra.mxu0 0.0
        %1675 = vmatprep.mubr.f32.mxu0 0.0
        %1676 = vmatmul.mubr.f32.gmra.mrb[0].mxu0 %v545
        %v1677 = vpop.f32.mrb[0].mxu0
        %v1678 = vadd.f32 %v512, %v1677
        %v1679 = vpop.f32.mrb[0].mxu0
        %1680 = vmatprep.mubr.f32.mxu0 0.0
        %1681 = vmatmul.mubr.f32.gmra.mrb[0].mxu0 %v548
        %v1682 = vpop.f32.mrb[0].mxu0
        %v1683 = vadd.f32 %v517, %v1682
        %v1684 = vpop.f32.mrb[0].mxu0
        %1685 = vmatprep.mubr.f32.mxu0 0.0
        %1686 = vmatmul.mubr.f32.gmra.mrb[0].mxu0 %v551
        %v1687 = vpop.f32.mrb[0].mxu0
        %v1688 = vadd.f32 %v522, %v1687
        %v1689 = vpop.f32.mrb[0].mxu0
        %1690 = vmatprep.mubr.f32.mxu0 0.0
        %1691 = vmatmul.mubr.f32.gmra.mrb[0].mxu0 %v554
        %v1692 = vpop.f32.mrb[0].mxu0
        %v1693 = vadd.f32 %v527, %v1692
        %v1694 = vpop.f32.mrb[0].mxu0
        %1695 = vdwg.mxu0
        %v1696 = vmax.f32 %v1678, 0.0
        %v1697 = vmax.f32 %v1683, 0.0
        %v1698 = vmax.f32 %v1688, 0.0
        %v1699 = vmax.f32 %v1693, 0.0
        %1700 = vmatprep.subr.mxu0 0.0
        %1701 = vmatpush1.msra.mxu0 %v1696
        %1702 = vmatprep.subr.mxu0 0.0
        %1703 = vmatpush1.msra.mxu0 %v1697
        %1704 = vmatprep.subr.mxu0 0.0
        %1705 = vmatpush1.msra.mxu0 %v1698
        %1706 = vmatprep.subr.mxu0 0.0
        %1707 = vmatpush1.msra.mxu0 %v1699
        %1708 = vmatprep.subr.mxu0 0.0
        %1709 = vmatpush1.msra.mxu0 0.0
        %1710 = vmatprep.subr.mxu0 0.0
        %1711 = vmatpush1.msra.mxu0 0.0
        %1712 = vmatprep.subr.mxu0 0.0
        %1713 = vmatpush1.msra.mxu0 0.0
        %1714 = vmatprep.subr.mxu0 0.0
        %1715 = vmatpush1.msra.mxu0 0.0
        %1716 = vmatprep.subr.mxu0 0.0
        %1717 = vmatpush1.msra.mxu0 0.0
        %1718 = vmatprep.subr.mxu0 0.0
        %1719 = vmatpush1.msra.mxu0 0.0
        %1720 = vmatprep.subr.mxu0 0.0
        %1721 = vmatpush1.msra.mxu0 0.0
        %1722 = vmatprep.subr.mxu0 0.0
        %1723 = vmatpush1.msra.mxu0 0.0
        %1724 = vmatprep.subr.mxu0 0.0
        %1725 = vmatpush1.msra.mxu0 0.0
        %1726 = vmatprep.subr.mxu0 0.0
        %1727 = vmatpush1.msra.mxu0 0.0
        %1728 = vmatprep.subr.mxu0 0.0
        %1729 = vmatpush1.msra.mxu0 0.0
        %1730 = vmatprep.subr.mxu0 0.0
        %1731 = vmatpush1.msra.mxu0 0.0
        %1732 = vmatprep.subr.mxu0 0.0
        %1733 = vmatpush1.msra.mxu0 0.0
        %1734 = vmatprep.subr.mxu0 0.0
        %1735 = vmatpush1.msra.mxu0 0.0
        %1736 = vmatprep.subr.mxu0 0.0
        %1737 = vmatpush1.msra.mxu0 0.0
        %1738 = vmatprep.subr.mxu0 0.0
        %1739 = vmatpush1.msra.mxu0 0.0
        %1740 = vmatprep.subr.mxu0 0.0
        %1741 = vmatpush1.msra.mxu0 0.0
        %1742 = vmatprep.subr.mxu0 0.0
        %1743 = vmatpush1.msra.mxu0 0.0
        %1744 = vmatprep.subr.mxu0 0.0
        %1745 = vmatpush1.msra.mxu0 0.0
        %1746 = vmatprep.subr.mxu0 0.0
        %1747 = vmatpush1.msra.mxu0 0.0
        %1748 = vmatprep.subr.mxu0 0.0
        %1749 = vmatpush1.msra.mxu0 0.0
        %1750 = vmatprep.subr.mxu0 0.0
        %1751 = vmatpush1.msra.mxu0 0.0
        %1752 = vmatprep.subr.mxu0 0.0
        %1753 = vmatpush1.msra.mxu0 0.0
        %1754 = vmatprep.subr.mxu0 0.0
        %1755 = vmatpush1.msra.mxu0 0.0
        %1756 = vmatprep.subr.mxu0 0.0
        %1757 = vmatpush1.msra.mxu0 0.0
        %1758 = vmatprep.subr.mxu0 0.0
        %1759 = vmatpush1.msra.mxu0 0.0
        %1760 = vmatprep.subr.mxu0 0.0
        %1761 = vmatpush1.msra.mxu0 0.0
        %1762 = vmatprep.subr.mxu0 0.0
        %1763 = vmatpush1.msra.mxu0 0.0
        %1764 = vmatprep.mubr.f32.mxu0 0.0
        %1765 = vmatmul.mubr.f32.gmra.mrb[0].mxu0 %v651
        %v1766 = vpop.f32.mrb[0].mxu0
        %v1767 = vadd.f32 %v534, %v1766
        %v1768 = vpop.f32.mrb[0].mxu0
        %1769 = vmatprep.mubr.f32.mxu0 0.0
        %1770 = vmatmul.mubr.f32.gmra.mrb[0].mxu0 %v654
        %v1771 = vpop.f32.mrb[0].mxu0
        %v1772 = vadd.f32 %v539, %v1771
        %v1773 = vpop.f32.mrb[0].mxu0
        %1774 = vdwg.mxu0
        %v1775 = vmax.f32 %v1767, 0.0
        %v1776 = vmax.f32 %v1772, 0.0
        %v1777 = vadd.f32 %v1603, %v1775
        %v1778 = vadd.f32 %v1604, %v1776
        %s1779 = scalar_lea.vmem %s470, 112 [#allocation2]
        %v1780 = vld [vmem:[%s1779] sm:$0xff]
        %v1781 = vld [vmem:[%s1779 + $0x8] sm:$0xf]
        %v1783 = vsel %vm556, %v1781, 0
        %1785 = vmatprep.subr.mxu0 0.0
        %1786 = vmatpush1.msra.mxu0 %v1780
        %1787 = vmatprep.subr.mxu0 0.0
        %1788 = vmatpush1.msra.mxu0 %v1783
        %1789 = vmatprep.subr.mxu0 0.0
        %1790 = vmatpush1.msra.mxu0 0.0
        %1791 = vmatprep.subr.mxu0 0.0
        %1792 = vmatpush1.msra.mxu0 0.0
        %1793 = vmatprep.subr.mxu0 0.0
        %1794 = vmatpush1.msra.mxu0 0.0
        %1795 = vmatprep.subr.mxu0 0.0
        %1796 = vmatpush1.msra.mxu0 0.0
        %1797 = vmatprep.subr.mxu0 0.0
        %1798 = vmatpush1.msra.mxu0 0.0
        %1799 = vmatprep.subr.mxu0 0.0
        %1800 = vmatpush1.msra.mxu0 0.0
        %1801 = vmatprep.subr.mxu0 0.0
        %1802 = vmatpush1.msra.mxu0 0.0
        %1803 = vmatprep.subr.mxu0 0.0
        %1804 = vmatpush1.msra.mxu0 0.0
        %1805 = vmatprep.subr.mxu0 0.0
        %1806 = vmatpush1.msra.mxu0 0.0
        %1807 = vmatprep.subr.mxu0 0.0
        %1808 = vmatpush1.msra.mxu0 0.0
        %1809 = vmatprep.subr.mxu0 0.0
        %1810 = vmatpush1.msra.mxu0 0.0
        %1811 = vmatprep.subr.mxu0 0.0
        %1812 = vmatpush1.msra.mxu0 0.0
        %1813 = vmatprep.subr.mxu0 0.0
        %1814 = vmatpush1.msra.mxu0 0.0
        %1815 = vmatprep.subr.mxu0 0.0
        %1816 = vmatpush1.msra.mxu0 0.0
        %1817 = vmatprep.subr.mxu0 0.0
        %1818 = vmatpush1.msra.mxu0 0.0
        %1819 = vmatprep.subr.mxu0 0.0
        %1820 = vmatpush1.msra.mxu0 0.0
        %1821 = vmatprep.subr.mxu0 0.0
        %1822 = vmatpush1.msra.mxu0 0.0
        %1823 = vmatprep.subr.mxu0 0.0
        %1824 = vmatpush1.msra.mxu0 0.0
        %1825 = vmatprep.subr.mxu0 0.0
        %1826 = vmatpush1.msra.mxu0 0.0
        %1827 = vmatprep.subr.mxu0 0.0
        %1828 = vmatpush1.msra.mxu0 0.0
        %1829 = vmatprep.subr.mxu0 0.0
        %1830 = vmatpush1.msra.mxu0 0.0
        %1831 = vmatprep.subr.mxu0 0.0
        %1832 = vmatpush1.msra.mxu0 0.0
        %1833 = vmatprep.subr.mxu0 0.0
        %1834 = vmatpush1.msra.mxu0 0.0
        %1835 = vmatprep.subr.mxu0 0.0
        %1836 = vmatpush1.msra.mxu0 0.0
        %1837 = vmatprep.subr.mxu0 0.0
        %1838 = vmatpush1.msra.mxu0 0.0
        %1839 = vmatprep.subr.mxu0 0.0
        %1840 = vmatpush1.msra.mxu0 0.0
        %1841 = vmatprep.subr.mxu0 0.0
        %1842 = vmatpush1.msra.mxu0 0.0
        %1843 = vmatprep.subr.mxu0 0.0
        %1844 = vmatpush1.msra.mxu0 0.0
        %1845 = vmatprep.subr.mxu0 0.0
        %1846 = vmatpush1.msra.mxu0 0.0
        %1847 = vmatprep.subr.mxu0 0.0
        %1848 = vmatpush1.msra.mxu0 0.0
        %1849 = vmatprep.mubr.f32.mxu0 0.0
        %1850 = vmatmul.mubr.f32.gmra.mrb[0].mxu0 %v545
        %v1851 = vpop.f32.mrb[0].mxu0
        %v1852 = vadd.f32 %v512, %v1851
        %v1853 = vpop.f32.mrb[0].mxu0
        %1854 = vmatprep.mubr.f32.mxu0 0.0
        %1855 = vmatmul.mubr.f32.gmra.mrb[0].mxu0 %v548
        %v1856 = vpop.f32.mrb[0].mxu0
        %v1857 = vadd.f32 %v517, %v1856
        %v1858 = vpop.f32.mrb[0].mxu0
        %1859 = vmatprep.mubr.f32.mxu0 0.0
        %1860 = vmatmul.mubr.f32.gmra.mrb[0].mxu0 %v551
        %v1861 = vpop.f32.mrb[0].mxu0
        %v1862 = vadd.f32 %v522, %v1861
        %v1863 = vpop.f32.mrb[0].mxu0
        %1864 = vmatprep.mubr.f32.mxu0 0.0
        %1865 = vmatmul.mubr.f32.gmra.mrb[0].mxu0 %v554
        %v1866 = vpop.f32.mrb[0].mxu0
        %v1867 = vadd.f32 %v527, %v1866
        %v1868 = vpop.f32.mrb[0].mxu0
        %1869 = vdwg.mxu0
        %v1870 = vmax.f32 %v1852, 0.0
        %v1871 = vmax.f32 %v1857, 0.0
        %v1872 = vmax.f32 %v1862, 0.0
        %v1873 = vmax.f32 %v1867, 0.0
        %1874 = vmatprep.subr.mxu0 0.0
        %1875 = vmatpush1.msra.mxu0 %v1870
        %1876 = vmatprep.subr.mxu0 0.0
        %1877 = vmatpush1.msra.mxu0 %v1871
        %1878 = vmatprep.subr.mxu0 0.0
        %1879 = vmatpush1.msra.mxu0 %v1872
        %1880 = vmatprep.subr.mxu0 0.0
        %1881 = vmatpush1.msra.mxu0 %v1873
        %1882 = vmatprep.subr.mxu0 0.0
        %1883 = vmatpush1.msra.mxu0 0.0
        %1884 = vmatprep.subr.mxu0 0.0
        %1885 = vmatpush1.msra.mxu0 0.0
        %1886 = vmatprep.subr.mxu0 0.0
        %1887 = vmatpush1.msra.mxu0 0.0
        %1888 = vmatprep.subr.mxu0 0.0
        %1889 = vmatpush1.msra.mxu0 0.0
        %1890 = vmatprep.subr.mxu0 0.0
        %1891 = vmatpush1.msra.mxu0 0.0
        %1892 = vmatprep.subr.mxu0 0.0
        %1893 = vmatpush1.msra.mxu0 0.0
        %1894 = vmatprep.subr.mxu0 0.0
        %1895 = vmatpush1.msra.mxu0 0.0
        %1896 = vmatprep.subr.mxu0 0.0
        %1897 = vmatpush1.msra.mxu0 0.0
        %1898 = vmatprep.subr.mxu0 0.0
        %1899 = vmatpush1.msra.mxu0 0.0
        %1900 = vmatprep.subr.mxu0 0.0
        %1901 = vmatpush1.msra.mxu0 0.0
        %1902 = vmatprep.subr.mxu0 0.0
        %1903 = vmatpush1.msra.mxu0 0.0
        %1904 = vmatprep.subr.mxu0 0.0
        %1905 = vmatpush1.msra.mxu0 0.0
        %1906 = vmatprep.subr.mxu0 0.0
        %1907 = vmatpush1.msra.mxu0 0.0
        %1908 = vmatprep.subr.mxu0 0.0
        %1909 = vmatpush1.msra.mxu0 0.0
        %1910 = vmatprep.subr.mxu0 0.0
        %1911 = vmatpush1.msra.mxu0 0.0
        %1912 = vmatprep.subr.mxu0 0.0
        %1913 = vmatpush1.msra.mxu0 0.0
        %1914 = vmatprep.subr.mxu0 0.0
        %1915 = vmatpush1.msra.mxu0 0.0
        %1916 = vmatprep.subr.mxu0 0.0
        %1917 = vmatpush1.msra.mxu0 0.0
        %1918 = vmatprep.subr.mxu0 0.0
        %1919 = vmatpush1.msra.mxu0 0.0
        %1920 = vmatprep.subr.mxu0 0.0
        %1921 = vmatpush1.msra.mxu0 0.0
        %1922 = vmatprep.subr.mxu0 0.0
        %1923 = vmatpush1.msra.mxu0 0.0
        %1924 = vmatprep.subr.mxu0 0.0
        %1925 = vmatpush1.msra.mxu0 0.0
        %1926 = vmatprep.subr.mxu0 0.0
        %1927 = vmatpush1.msra.mxu0 0.0
        %1928 = vmatprep.subr.mxu0 0.0
        %1929 = vmatpush1.msra.mxu0 0.0
        %1930 = vmatprep.subr.mxu0 0.0
        %1931 = vmatpush1.msra.mxu0 0.0
        %1932 = vmatprep.subr.mxu0 0.0
        %1933 = vmatpush1.msra.mxu0 0.0
        %1934 = vmatprep.subr.mxu0 0.0
        %1935 = vmatpush1.msra.mxu0 0.0
        %1936 = vmatprep.subr.mxu0 0.0
        %1937 = vmatpush1.msra.mxu0 0.0
        %1938 = vmatprep.mubr.f32.mxu0 0.0
        %1939 = vmatmul.mubr.f32.gmra.mrb[0].mxu0 %v651
        %v1940 = vpop.f32.mrb[0].mxu0
        %v1941 = vadd.f32 %v534, %v1940
        %v1942 = vpop.f32.mrb[0].mxu0
        %1943 = vmatprep.mubr.f32.mxu0 0.0
        %1944 = vmatmul.mubr.f32.gmra.mrb[0].mxu0 %v654
        %v1945 = vpop.f32.mrb[0].mxu0
        %v1946 = vadd.f32 %v539, %v1945
        %v1947 = vpop.f32.mrb[0].mxu0
        %1948 = vdwg.mxu0
        %v1949 = vmax.f32 %v1941, 0.0
        %v1950 = vmax.f32 %v1946, 0.0
        %v1951 = vadd.f32 %v1777, %v1949
        %v1952 = vadd.f32 %v1778, %v1950
        %s1953 = scalar_lea.vmem %s470, 128 [#allocation2]
        %v1954 = vld [vmem:[%s1953] sm:$0xff]
        %v1955 = vld [vmem:[%s1953 + $0x8] sm:$0xf]
        %v1957 = vsel %vm556, %v1955, 0
        %1959 = vmatprep.subr.mxu0 0.0
        %1960 = vmatpush1.msra.mxu0 %v1954
        %1961 = vmatprep.subr.mxu0 0.0
        %1962 = vmatpush1.msra.mxu0 %v1957
        %1963 = vmatprep.subr.mxu0 0.0
        %1964 = vmatpush1.msra.mxu0 0.0
        %1965 = vmatprep.subr.mxu0 0.0
        %1966 = vmatpush1.msra.mxu0 0.0
        %1967 = vmatprep.subr.mxu0 0.0
        %1968 = vmatpush1.msra.mxu0 0.0
        %1969 = vmatprep.subr.mxu0 0.0
        %1970 = vmatpush1.msra.mxu0 0.0
        %1971 = vmatprep.subr.mxu0 0.0
        %1972 = vmatpush1.msra.mxu0 0.0
        %1973 = vmatprep.subr.mxu0 0.0
        %1974 = vmatpush1.msra.mxu0 0.0
        %1975 = vmatprep.subr.mxu0 0.0
        %1976 = vmatpush1.msra.mxu0 0.0
        %1977 = vmatprep.subr.mxu0 0.0
        %1978 = vmatpush1.msra.mxu0 0.0
        %1979 = vmatprep.subr.mxu0 0.0
        %1980 = vmatpush1.msra.mxu0 0.0
        %1981 = vmatprep.subr.mxu0 0.0
        %1982 = vmatpush1.msra.mxu0 0.0
        %1983 = vmatprep.subr.mxu0 0.0
        %1984 = vmatpush1.msra.mxu0 0.0
        %1985 = vmatprep.subr.mxu0 0.0
        %1986 = vmatpush1.msra.mxu0 0.0
        %1987 = vmatprep.subr.mxu0 0.0
        %1988 = vmatpush1.msra.mxu0 0.0
        %1989 = vmatprep.subr.mxu0 0.0
        %1990 = vmatpush1.msra.mxu0 0.0
        %1991 = vmatprep.subr.mxu0 0.0
        %1992 = vmatpush1.msra.mxu0 0.0
        %1993 = vmatprep.subr.mxu0 0.0
        %1994 = vmatpush1.msra.mxu0 0.0
        %1995 = vmatprep.subr.mxu0 0.0
        %1996 = vmatpush1.msra.mxu0 0.0
        %1997 = vmatprep.subr.mxu0 0.0
        %1998 = vmatpush1.msra.mxu0 0.0
        %1999 = vmatprep.subr.mxu0 0.0
        %2000 = vmatpush1.msra.mxu0 0.0
        %2001 = vmatprep.subr.mxu0 0.0
        %2002 = vmatpush1.msra.mxu0 0.0
        %2003 = vmatprep.subr.mxu0 0.0
        %2004 = vmatpush1.msra.mxu0 0.0
        %2005 = vmatprep.subr.mxu0 0.0
        %2006 = vmatpush1.msra.mxu0 0.0
        %2007 = vmatprep.subr.mxu0 0.0
        %2008 = vmatpush1.msra.mxu0 0.0
        %2009 = vmatprep.subr.mxu0 0.0
        %2010 = vmatpush1.msra.mxu0 0.0
        %2011 = vmatprep.subr.mxu0 0.0
        %2012 = vmatpush1.msra.mxu0 0.0
        %2013 = vmatprep.subr.mxu0 0.0
        %2014 = vmatpush1.msra.mxu0 0.0
        %2015 = vmatprep.subr.mxu0 0.0
        %2016 = vmatpush1.msra.mxu0 0.0
        %2017 = vmatprep.subr.mxu0 0.0
        %2018 = vmatpush1.msra.mxu0 0.0
        %2019 = vmatprep.subr.mxu0 0.0
        %2020 = vmatpush1.msra.mxu0 0.0
        %2021 = vmatprep.subr.mxu0 0.0
        %2022 = vmatpush1.msra.mxu0 0.0
        %2023 = vmatprep.mubr.f32.mxu0 0.0
        %2024 = vmatmul.mubr.f32.gmra.mrb[0].mxu0 %v545
        %v2025 = vpop.f32.mrb[0].mxu0
        %v2026 = vadd.f32 %v512, %v2025
        %v2027 = vpop.f32.mrb[0].mxu0
        %2028 = vmatprep.mubr.f32.mxu0 0.0
        %2029 = vmatmul.mubr.f32.gmra.mrb[0].mxu0 %v548
        %v2030 = vpop.f32.mrb[0].mxu0
        %v2031 = vadd.f32 %v517, %v2030
        %v2032 = vpop.f32.mrb[0].mxu0
        %2033 = vmatprep.mubr.f32.mxu0 0.0
        %2034 = vmatmul.mubr.f32.gmra.mrb[0].mxu0 %v551
        %v2035 = vpop.f32.mrb[0].mxu0
        %v2036 = vadd.f32 %v522, %v2035
        %v2037 = vpop.f32.mrb[0].mxu0
        %2038 = vmatprep.mubr.f32.mxu0 0.0
        %2039 = vmatmul.mubr.f32.gmra.mrb[0].mxu0 %v554
        %v2040 = vpop.f32.mrb[0].mxu0
        %v2041 = vadd.f32 %v527, %v2040
        %v2042 = vpop.f32.mrb[0].mxu0
        %2043 = vdwg.mxu0
        %v2044 = vmax.f32 %v2026, 0.0
        %v2045 = vmax.f32 %v2031, 0.0
        %v2046 = vmax.f32 %v2036, 0.0
        %v2047 = vmax.f32 %v2041, 0.0
        %2048 = vmatprep.subr.mxu0 0.0
        %2049 = vmatpush1.msra.mxu0 %v2044
        %2050 = vmatprep.subr.mxu0 0.0
        %2051 = vmatpush1.msra.mxu0 %v2045
        %2052 = vmatprep.subr.mxu0 0.0
        %2053 = vmatpush1.msra.mxu0 %v2046
        %2054 = vmatprep.subr.mxu0 0.0
        %2055 = vmatpush1.msra.mxu0 %v2047
        %2056 = vmatprep.subr.mxu0 0.0
        %2057 = vmatpush1.msra.mxu0 0.0
        %2058 = vmatprep.subr.mxu0 0.0
        %2059 = vmatpush1.msra.mxu0 0.0
        %2060 = vmatprep.subr.mxu0 0.0
        %2061 = vmatpush1.msra.mxu0 0.0
        %2062 = vmatprep.subr.mxu0 0.0
        %2063 = vmatpush1.msra.mxu0 0.0
        %2064 = vmatprep.subr.mxu0 0.0
        %2065 = vmatpush1.msra.mxu0 0.0
        %2066 = vmatprep.subr.mxu0 0.0
        %2067 = vmatpush1.msra.mxu0 0.0
        %2068 = vmatprep.subr.mxu0 0.0
        %2069 = vmatpush1.msra.mxu0 0.0
        %2070 = vmatprep.subr.mxu0 0.0
        %2071 = vmatpush1.msra.mxu0 0.0
        %2072 = vmatprep.subr.mxu0 0.0
        %2073 = vmatpush1.msra.mxu0 0.0
        %2074 = vmatprep.subr.mxu0 0.0
        %2075 = vmatpush1.msra.mxu0 0.0
        %2076 = vmatprep.subr.mxu0 0.0
        %2077 = vmatpush1.msra.mxu0 0.0
        %2078 = vmatprep.subr.mxu0 0.0
        %2079 = vmatpush1.msra.mxu0 0.0
        %2080 = vmatprep.subr.mxu0 0.0
        %2081 = vmatpush1.msra.mxu0 0.0
        %2082 = vmatprep.subr.mxu0 0.0
        %2083 = vmatpush1.msra.mxu0 0.0
        %2084 = vmatprep.subr.mxu0 0.0
        %2085 = vmatpush1.msra.mxu0 0.0
        %2086 = vmatprep.subr.mxu0 0.0
        %2087 = vmatpush1.msra.mxu0 0.0
        %2088 = vmatprep.subr.mxu0 0.0
        %2089 = vmatpush1.msra.mxu0 0.0
        %2090 = vmatprep.subr.mxu0 0.0
        %2091 = vmatpush1.msra.mxu0 0.0
        %2092 = vmatprep.subr.mxu0 0.0
        %2093 = vmatpush1.msra.mxu0 0.0
        %2094 = vmatprep.subr.mxu0 0.0
        %2095 = vmatpush1.msra.mxu0 0.0
        %2096 = vmatprep.subr.mxu0 0.0
        %2097 = vmatpush1.msra.mxu0 0.0
        %2098 = vmatprep.subr.mxu0 0.0
        %2099 = vmatpush1.msra.mxu0 0.0
        %2100 = vmatprep.subr.mxu0 0.0
        %2101 = vmatpush1.msra.mxu0 0.0
        %2102 = vmatprep.subr.mxu0 0.0
        %2103 = vmatpush1.msra.mxu0 0.0
        %2104 = vmatprep.subr.mxu0 0.0
        %2105 = vmatpush1.msra.mxu0 0.0
        %2106 = vmatprep.subr.mxu0 0.0
        %2107 = vmatpush1.msra.mxu0 0.0
        %2108 = vmatprep.subr.mxu0 0.0
        %2109 = vmatpush1.msra.mxu0 0.0
        %2110 = vmatprep.subr.mxu0 0.0
        %2111 = vmatpush1.msra.mxu0 0.0
        %2112 = vmatprep.mubr.f32.mxu0 0.0
        %2113 = vmatmul.mubr.f32.gmra.mrb[0].mxu0 %v651
        %v2114 = vpop.f32.mrb[0].mxu0
        %v2115 = vadd.f32 %v534, %v2114
        %v2116 = vpop.f32.mrb[0].mxu0
        %2117 = vmatprep.mubr.f32.mxu0 0.0
        %2118 = vmatmul.mubr.f32.gmra.mrb[0].mxu0 %v654
        %v2119 = vpop.f32.mrb[0].mxu0
        %v2120 = vadd.f32 %v539, %v2119
        %v2121 = vpop.f32.mrb[0].mxu0
        %2122 = vdwg.mxu0
        %v2123 = vmax.f32 %v2115, 0.0
        %v2124 = vmax.f32 %v2120, 0.0
        %v2125 = vadd.f32 %v1951, %v2123
        %v2126 = vadd.f32 %v1952, %v2124
        %s2127 = scalar_lea.vmem %s470, 144 [#allocation2]
        %v2128 = vld [vmem:[%s2127] sm:$0xff]
        %v2129 = vld [vmem:[%s2127 + $0x8] sm:$0xf]
        %v2131 = vsel %vm556, %v2129, 0
        %2133 = vmatprep.subr.mxu0 0.0
        %2134 = vmatpush1.msra.mxu0 %v2128
        %2135 = vmatprep.subr.mxu0 0.0
        %2136 = vmatpush1.msra.mxu0 %v2131
        %2137 = vmatprep.subr.mxu0 0.0
        %2138 = vmatpush1.msra.mxu0 0.0
        %2139 = vmatprep.subr.mxu0 0.0
        %2140 = vmatpush1.msra.mxu0 0.0
        %2141 = vmatprep.subr.mxu0 0.0
        %2142 = vmatpush1.msra.mxu0 0.0
        %2143 = vmatprep.subr.mxu0 0.0
        %2144 = vmatpush1.msra.mxu0 0.0
        %2145 = vmatprep.subr.mxu0 0.0
        %2146 = vmatpush1.msra.mxu0 0.0
        %2147 = vmatprep.subr.mxu0 0.0
        %2148 = vmatpush1.msra.mxu0 0.0
        %2149 = vmatprep.subr.mxu0 0.0
        %2150 = vmatpush1.msra.mxu0 0.0
        %2151 = vmatprep.subr.mxu0 0.0
        %2152 = vmatpush1.msra.mxu0 0.0
        %2153 = vmatprep.subr.mxu0 0.0
        %2154 = vmatpush1.msra.mxu0 0.0
        %2155 = vmatprep.subr.mxu0 0.0
        %2156 = vmatpush1.msra.mxu0 0.0
        %2157 = vmatprep.subr.mxu0 0.0
        %2158 = vmatpush1.msra.mxu0 0.0
        %2159 = vmatprep.subr.mxu0 0.0
        %2160 = vmatpush1.msra.mxu0 0.0
        %2161 = vmatprep.subr.mxu0 0.0
        %2162 = vmatpush1.msra.mxu0 0.0
        %2163 = vmatprep.subr.mxu0 0.0
        %2164 = vmatpush1.msra.mxu0 0.0
        %2165 = vmatprep.subr.mxu0 0.0
        %2166 = vmatpush1.msra.mxu0 0.0
        %2167 = vmatprep.subr.mxu0 0.0
        %2168 = vmatpush1.msra.mxu0 0.0
        %2169 = vmatprep.subr.mxu0 0.0
        %2170 = vmatpush1.msra.mxu0 0.0
        %2171 = vmatprep.subr.mxu0 0.0
        %2172 = vmatpush1.msra.mxu0 0.0
        %2173 = vmatprep.subr.mxu0 0.0
        %2174 = vmatpush1.msra.mxu0 0.0
        %2175 = vmatprep.subr.mxu0 0.0
        %2176 = vmatpush1.msra.mxu0 0.0
        %2177 = vmatprep.subr.mxu0 0.0
        %2178 = vmatpush1.msra.mxu0 0.0
        %2179 = vmatprep.subr.mxu0 0.0
        %2180 = vmatpush1.msra.mxu0 0.0
        %2181 = vmatprep.subr.mxu0 0.0
        %2182 = vmatpush1.msra.mxu0 0.0
        %2183 = vmatprep.subr.mxu0 0.0
        %2184 = vmatpush1.msra.mxu0 0.0
        %2185 = vmatprep.subr.mxu0 0.0
        %2186 = vmatpush1.msra.mxu0 0.0
        %2187 = vmatprep.subr.mxu0 0.0
        %2188 = vmatpush1.msra.mxu0 0.0
        %2189 = vmatprep.subr.mxu0 0.0
        %2190 = vmatpush1.msra.mxu0 0.0
        %2191 = vmatprep.subr.mxu0 0.0
        %2192 = vmatpush1.msra.mxu0 0.0
        %2193 = vmatprep.subr.mxu0 0.0
        %2194 = vmatpush1.msra.mxu0 0.0
        %2195 = vmatprep.subr.mxu0 0.0
        %2196 = vmatpush1.msra.mxu0 0.0
        %2197 = vmatprep.mubr.f32.mxu0 0.0
        %2198 = vmatmul.mubr.f32.gmra.mrb[0].mxu0 %v545
        %v2199 = vpop.f32.mrb[0].mxu0
        %v2200 = vadd.f32 %v512, %v2199
        %v2201 = vpop.f32.mrb[0].mxu0
        %2202 = vmatprep.mubr.f32.mxu0 0.0
        %2203 = vmatmul.mubr.f32.gmra.mrb[0].mxu0 %v548
        %v2204 = vpop.f32.mrb[0].mxu0
        %v2205 = vadd.f32 %v517, %v2204
        %v2206 = vpop.f32.mrb[0].mxu0
        %2207 = vmatprep.mubr.f32.mxu0 0.0
        %2208 = vmatmul.mubr.f32.gmra.mrb[0].mxu0 %v551
        %v2209 = vpop.f32.mrb[0].mxu0
        %v2210 = vadd.f32 %v522, %v2209
        %v2211 = vpop.f32.mrb[0].mxu0
        %2212 = vmatprep.mubr.f32.mxu0 0.0
        %2213 = vmatmul.mubr.f32.gmra.mrb[0].mxu0 %v554
        %v2214 = vpop.f32.mrb[0].mxu0
        %v2215 = vadd.f32 %v527, %v2214
        %v2216 = vpop.f32.mrb[0].mxu0
        %2217 = vdwg.mxu0
        %v2218 = vmax.f32 %v2200, 0.0
        %v2219 = vmax.f32 %v2205, 0.0
        %v2220 = vmax.f32 %v2210, 0.0
        %v2221 = vmax.f32 %v2215, 0.0
        %2222 = vmatprep.subr.mxu0 0.0
        %2223 = vmatpush1.msra.mxu0 %v2218
        %2224 = vmatprep.subr.mxu0 0.0
        %2225 = vmatpush1.msra.mxu0 %v2219
        %2226 = vmatprep.subr.mxu0 0.0
        %2227 = vmatpush1.msra.mxu0 %v2220
        %2228 = vmatprep.subr.mxu0 0.0
        %2229 = vmatpush1.msra.mxu0 %v2221
        %2230 = vmatprep.subr.mxu0 0.0
        %2231 = vmatpush1.msra.mxu0 0.0
        %2232 = vmatprep.subr.mxu0 0.0
        %2233 = vmatpush1.msra.mxu0 0.0
        %2234 = vmatprep.subr.mxu0 0.0
        %2235 = vmatpush1.msra.mxu0 0.0
        %2236 = vmatprep.subr.mxu0 0.0
        %2237 = vmatpush1.msra.mxu0 0.0
        %2238 = vmatprep.subr.mxu0 0.0
        %2239 = vmatpush1.msra.mxu0 0.0
        %2240 = vmatprep.subr.mxu0 0.0
        %2241 = vmatpush1.msra.mxu0 0.0
        %2242 = vmatprep.subr.mxu0 0.0
        %2243 = vmatpush1.msra.mxu0 0.0
        %2244 = vmatprep.subr.mxu0 0.0
        %2245 = vmatpush1.msra.mxu0 0.0
        %2246 = vmatprep.subr.mxu0 0.0
        %2247 = vmatpush1.msra.mxu0 0.0
        %2248 = vmatprep.subr.mxu0 0.0
        %2249 = vmatpush1.msra.mxu0 0.0
        %2250 = vmatprep.subr.mxu0 0.0
        %2251 = vmatpush1.msra.mxu0 0.0
        %2252 = vmatprep.subr.mxu0 0.0
        %2253 = vmatpush1.msra.mxu0 0.0
        %2254 = vmatprep.subr.mxu0 0.0
        %2255 = vmatpush1.msra.mxu0 0.0
        %2256 = vmatprep.subr.mxu0 0.0
        %2257 = vmatpush1.msra.mxu0 0.0
        %2258 = vmatprep.subr.mxu0 0.0
        %2259 = vmatpush1.msra.mxu0 0.0
        %2260 = vmatprep.subr.mxu0 0.0
        %2261 = vmatpush1.msra.mxu0 0.0
        %2262 = vmatprep.subr.mxu0 0.0
        %2263 = vmatpush1.msra.mxu0 0.0
        %2264 = vmatprep.subr.mxu0 0.0
        %2265 = vmatpush1.msra.mxu0 0.0
        %2266 = vmatprep.subr.mxu0 0.0
        %2267 = vmatpush1.msra.mxu0 0.0
        %2268 = vmatprep.subr.mxu0 0.0
        %2269 = vmatpush1.msra.mxu0 0.0
        %2270 = vmatprep.subr.mxu0 0.0
        %2271 = vmatpush1.msra.mxu0 0.0
        %2272 = vmatprep.subr.mxu0 0.0
        %2273 = vmatpush1.msra.mxu0 0.0
        %2274 = vmatprep.subr.mxu0 0.0
        %2275 = vmatpush1.msra.mxu0 0.0
        %2276 = vmatprep.subr.mxu0 0.0
        %2277 = vmatpush1.msra.mxu0 0.0
        %2278 = vmatprep.subr.mxu0 0.0
        %2279 = vmatpush1.msra.mxu0 0.0
        %2280 = vmatprep.subr.mxu0 0.0
        %2281 = vmatpush1.msra.mxu0 0.0
        %2282 = vmatprep.subr.mxu0 0.0
        %2283 = vmatpush1.msra.mxu0 0.0
        %2284 = vmatprep.subr.mxu0 0.0
        %2285 = vmatpush1.msra.mxu0 0.0
        %2286 = vmatprep.mubr.f32.mxu0 0.0
        %2287 = vmatmul.mubr.f32.gmra.mrb[0].mxu0 %v651
        %v2288 = vpop.f32.mrb[0].mxu0
        %v2289 = vadd.f32 %v534, %v2288
        %v2290 = vpop.f32.mrb[0].mxu0
        %2291 = vmatprep.mubr.f32.mxu0 0.0
        %2292 = vmatmul.mubr.f32.gmra.mrb[0].mxu0 %v654
        %v2293 = vpop.f32.mrb[0].mxu0
        %v2294 = vadd.f32 %v539, %v2293
        %v2295 = vpop.f32.mrb[0].mxu0
        %2296 = vdwg.mxu0
        %v2297 = vmax.f32 %v2289, 0.0
        %v2298 = vmax.f32 %v2294, 0.0
        %v2299 = vadd.f32 %v2125, %v2297
        %v2300 = vadd.f32 %v2126, %v2298
        %s2301 = scalar_lea.vmem %s470, 160 [#allocation2]
        %v2302 = vld [vmem:[%s2301] sm:$0xff]
        %v2303 = vld [vmem:[%s2301 + $0x8] sm:$0xf]
        %v2305 = vsel %vm556, %v2303, 0
        %2307 = vmatprep.subr.mxu0 0.0
        %2308 = vmatpush1.msra.mxu0 %v2302
        %2309 = vmatprep.subr.mxu0 0.0
        %2310 = vmatpush1.msra.mxu0 %v2305
        %2311 = vmatprep.subr.mxu0 0.0
        %2312 = vmatpush1.msra.mxu0 0.0
        %2313 = vmatprep.subr.mxu0 0.0
        %2314 = vmatpush1.msra.mxu0 0.0
        %2315 = vmatprep.subr.mxu0 0.0
        %2316 = vmatpush1.msra.mxu0 0.0
        %2317 = vmatprep.subr.mxu0 0.0
        %2318 = vmatpush1.msra.mxu0 0.0
        %2319 = vmatprep.subr.mxu0 0.0
        %2320 = vmatpush1.msra.mxu0 0.0
        %2321 = vmatprep.subr.mxu0 0.0
        %2322 = vmatpush1.msra.mxu0 0.0
        %2323 = vmatprep.subr.mxu0 0.0
        %2324 = vmatpush1.msra.mxu0 0.0
        %2325 = vmatprep.subr.mxu0 0.0
        %2326 = vmatpush1.msra.mxu0 0.0
        %2327 = vmatprep.subr.mxu0 0.0
        %2328 = vmatpush1.msra.mxu0 0.0
        %2329 = vmatprep.subr.mxu0 0.0
        %2330 = vmatpush1.msra.mxu0 0.0
        %2331 = vmatprep.subr.mxu0 0.0
        %2332 = vmatpush1.msra.mxu0 0.0
        %2333 = vmatprep.subr.mxu0 0.0
        %2334 = vmatpush1.msra.mxu0 0.0
        %2335 = vmatprep.subr.mxu0 0.0
        %2336 = vmatpush1.msra.mxu0 0.0
        %2337 = vmatprep.subr.mxu0 0.0
        %2338 = vmatpush1.msra.mxu0 0.0
        %2339 = vmatprep.subr.mxu0 0.0
        %2340 = vmatpush1.msra.mxu0 0.0
        %2341 = vmatprep.subr.mxu0 0.0
        %2342 = vmatpush1.msra.mxu0 0.0
        %2343 = vmatprep.subr.mxu0 0.0
        %2344 = vmatpush1.msra.mxu0 0.0
        %2345 = vmatprep.subr.mxu0 0.0
        %2346 = vmatpush1.msra.mxu0 0.0
        %2347 = vmatprep.subr.mxu0 0.0
        %2348 = vmatpush1.msra.mxu0 0.0
        %2349 = vmatprep.subr.mxu0 0.0
        %2350 = vmatpush1.msra.mxu0 0.0
        %2351 = vmatprep.subr.mxu0 0.0
        %2352 = vmatpush1.msra.mxu0 0.0
        %2353 = vmatprep.subr.mxu0 0.0
        %2354 = vmatpush1.msra.mxu0 0.0
        %2355 = vmatprep.subr.mxu0 0.0
        %2356 = vmatpush1.msra.mxu0 0.0
        %2357 = vmatprep.subr.mxu0 0.0
        %2358 = vmatpush1.msra.mxu0 0.0
        %2359 = vmatprep.subr.mxu0 0.0
        %2360 = vmatpush1.msra.mxu0 0.0
        %2361 = vmatprep.subr.mxu0 0.0
        %2362 = vmatpush1.msra.mxu0 0.0
        %2363 = vmatprep.subr.mxu0 0.0
        %2364 = vmatpush1.msra.mxu0 0.0
        %2365 = vmatprep.subr.mxu0 0.0
        %2366 = vmatpush1.msra.mxu0 0.0
        %2367 = vmatprep.subr.mxu0 0.0
        %2368 = vmatpush1.msra.mxu0 0.0
        %2369 = vmatprep.subr.mxu0 0.0
        %2370 = vmatpush1.msra.mxu0 0.0
        %2371 = vmatprep.mubr.f32.mxu0 0.0
        %2372 = vmatmul.mubr.f32.gmra.mrb[0].mxu0 %v545
        %v2373 = vpop.f32.mrb[0].mxu0
        %v2374 = vadd.f32 %v512, %v2373
        %v2375 = vpop.f32.mrb[0].mxu0
        %2376 = vmatprep.mubr.f32.mxu0 0.0
        %2377 = vmatmul.mubr.f32.gmra.mrb[0].mxu0 %v548
        %v2378 = vpop.f32.mrb[0].mxu0
        %v2379 = vadd.f32 %v517, %v2378
        %v2380 = vpop.f32.mrb[0].mxu0
        %2381 = vmatprep.mubr.f32.mxu0 0.0
        %2382 = vmatmul.mubr.f32.gmra.mrb[0].mxu0 %v551
        %v2383 = vpop.f32.mrb[0].mxu0
        %v2384 = vadd.f32 %v522, %v2383
        %v2385 = vpop.f32.mrb[0].mxu0
        %2386 = vmatprep.mubr.f32.mxu0 0.0
        %2387 = vmatmul.mubr.f32.gmra.mrb[0].mxu0 %v554
        %v2388 = vpop.f32.mrb[0].mxu0
        %v2389 = vadd.f32 %v527, %v2388
        %v2390 = vpop.f32.mrb[0].mxu0
        %2391 = vdwg.mxu0
        %v2392 = vmax.f32 %v2374, 0.0
        %v2393 = vmax.f32 %v2379, 0.0
        %v2394 = vmax.f32 %v2384, 0.0
        %v2395 = vmax.f32 %v2389, 0.0
        %2396 = vmatprep.subr.mxu0 0.0
        %2397 = vmatpush1.msra.mxu0 %v2392
        %2398 = vmatprep.subr.mxu0 0.0
        %2399 = vmatpush1.msra.mxu0 %v2393
        %2400 = vmatprep.subr.mxu0 0.0
        %2401 = vmatpush1.msra.mxu0 %v2394
        %2402 = vmatprep.subr.mxu0 0.0
        %2403 = vmatpush1.msra.mxu0 %v2395
        %2404 = vmatprep.subr.mxu0 0.0
        %2405 = vmatpush1.msra.mxu0 0.0
        %2406 = vmatprep.subr.mxu0 0.0
        %2407 = vmatpush1.msra.mxu0 0.0
        %2408 = vmatprep.subr.mxu0 0.0
        %2409 = vmatpush1.msra.mxu0 0.0
        %2410 = vmatprep.subr.mxu0 0.0
        %2411 = vmatpush1.msra.mxu0 0.0
        %2412 = vmatprep.subr.mxu0 0.0
        %2413 = vmatpush1.msra.mxu0 0.0
        %2414 = vmatprep.subr.mxu0 0.0
        %2415 = vmatpush1.msra.mxu0 0.0
        %2416 = vmatprep.subr.mxu0 0.0
        %2417 = vmatpush1.msra.mxu0 0.0
        %2418 = vmatprep.subr.mxu0 0.0
        %2419 = vmatpush1.msra.mxu0 0.0
        %2420 = vmatprep.subr.mxu0 0.0
        %2421 = vmatpush1.msra.mxu0 0.0
        %2422 = vmatprep.subr.mxu0 0.0
        %2423 = vmatpush1.msra.mxu0 0.0
        %2424 = vmatprep.subr.mxu0 0.0
        %2425 = vmatpush1.msra.mxu0 0.0
        %2426 = vmatprep.subr.mxu0 0.0
        %2427 = vmatpush1.msra.mxu0 0.0
        %2428 = vmatprep.subr.mxu0 0.0
        %2429 = vmatpush1.msra.mxu0 0.0
        %2430 = vmatprep.subr.mxu0 0.0
        %2431 = vmatpush1.msra.mxu0 0.0
        %2432 = vmatprep.subr.mxu0 0.0
        %2433 = vmatpush1.msra.mxu0 0.0
        %2434 = vmatprep.subr.mxu0 0.0
        %2435 = vmatpush1.msra.mxu0 0.0
        %2436 = vmatprep.subr.mxu0 0.0
        %2437 = vmatpush1.msra.mxu0 0.0
        %2438 = vmatprep.subr.mxu0 0.0
        %2439 = vmatpush1.msra.mxu0 0.0
        %2440 = vmatprep.subr.mxu0 0.0
        %2441 = vmatpush1.msra.mxu0 0.0
        %2442 = vmatprep.subr.mxu0 0.0
        %2443 = vmatpush1.msra.mxu0 0.0
        %2444 = vmatprep.subr.mxu0 0.0
        %2445 = vmatpush1.msra.mxu0 0.0
        %2446 = vmatprep.subr.mxu0 0.0
        %2447 = vmatpush1.msra.mxu0 0.0
        %2448 = vmatprep.subr.mxu0 0.0
        %2449 = vmatpush1.msra.mxu0 0.0
        %2450 = vmatprep.subr.mxu0 0.0
        %2451 = vmatpush1.msra.mxu0 0.0
        %2452 = vmatprep.subr.mxu0 0.0
        %2453 = vmatpush1.msra.mxu0 0.0
        %2454 = vmatprep.subr.mxu0 0.0
        %2455 = vmatpush1.msra.mxu0 0.0
        %2456 = vmatprep.subr.mxu0 0.0
        %2457 = vmatpush1.msra.mxu0 0.0
        %2458 = vmatprep.subr.mxu0 0.0
        %2459 = vmatpush1.msra.mxu0 0.0
        %2460 = vmatprep.mubr.f32.mxu0 0.0
        %2461 = vmatmul.mubr.f32.gmra.mrb[0].mxu0 %v651
        %v2462 = vpop.f32.mrb[0].mxu0
        %v2463 = vadd.f32 %v534, %v2462
        %v2464 = vpop.f32.mrb[0].mxu0
        %2465 = vmatprep.mubr.f32.mxu0 0.0
        %2466 = vmatmul.mubr.f32.gmra.mrb[0].mxu0 %v654
        %v2467 = vpop.f32.mrb[0].mxu0
        %v2468 = vadd.f32 %v539, %v2467
        %v2469 = vpop.f32.mrb[0].mxu0
        %2470 = vdwg.mxu0
        %v2471 = vmax.f32 %v2463, 0.0
        %v2472 = vmax.f32 %v2468, 0.0
        %v2473 = vadd.f32 %v2299, %v2471
        %v2474 = vadd.f32 %v2300, %v2472
        %s2475 = scalar_lea.vmem %s470, 176 [#allocation2]
        %v2476 = vld [vmem:[%s2475] sm:$0xff]
        %v2477 = vld [vmem:[%s2475 + $0x8] sm:$0xf]
        %v2479 = vsel %vm556, %v2477, 0
        %2481 = vmatprep.subr.mxu0 0.0
        %2482 = vmatpush1.msra.mxu0 %v2476
        %2483 = vmatprep.subr.mxu0 0.0
        %2484 = vmatpush1.msra.mxu0 %v2479
        %2485 = vmatprep.subr.mxu0 0.0
        %2486 = vmatpush1.msra.mxu0 0.0
        %2487 = vmatprep.subr.mxu0 0.0
        %2488 = vmatpush1.msra.mxu0 0.0
        %2489 = vmatprep.subr.mxu0 0.0
        %2490 = vmatpush1.msra.mxu0 0.0
        %2491 = vmatprep.subr.mxu0 0.0
        %2492 = vmatpush1.msra.mxu0 0.0
        %2493 = vmatprep.subr.mxu0 0.0
        %2494 = vmatpush1.msra.mxu0 0.0
        %2495 = vmatprep.subr.mxu0 0.0
        %2496 = vmatpush1.msra.mxu0 0.0
        %2497 = vmatprep.subr.mxu0 0.0
        %2498 = vmatpush1.msra.mxu0 0.0
        %2499 = vmatprep.subr.mxu0 0.0
        %2500 = vmatpush1.msra.mxu0 0.0
        %2501 = vmatprep.subr.mxu0 0.0
        %2502 = vmatpush1.msra.mxu0 0.0
        %2503 = vmatprep.subr.mxu0 0.0
        %2504 = vmatpush1.msra.mxu0 0.0
        %2505 = vmatprep.subr.mxu0 0.0
        %2506 = vmatpush1.msra.mxu0 0.0
        %2507 = vmatprep.subr.mxu0 0.0
        %2508 = vmatpush1.msra.mxu0 0.0
        %2509 = vmatprep.subr.mxu0 0.0
        %2510 = vmatpush1.msra.mxu0 0.0
        %2511 = vmatprep.subr.mxu0 0.0
        %2512 = vmatpush1.msra.mxu0 0.0
        %2513 = vmatprep.subr.mxu0 0.0
        %2514 = vmatpush1.msra.mxu0 0.0
        %2515 = vmatprep.subr.mxu0 0.0
        %2516 = vmatpush1.msra.mxu0 0.0
        %2517 = vmatprep.subr.mxu0 0.0
        %2518 = vmatpush1.msra.mxu0 0.0
        %2519 = vmatprep.subr.mxu0 0.0
        %2520 = vmatpush1.msra.mxu0 0.0
        %2521 = vmatprep.subr.mxu0 0.0
        %2522 = vmatpush1.msra.mxu0 0.0
        %2523 = vmatprep.subr.mxu0 0.0
        %2524 = vmatpush1.msra.mxu0 0.0
        %2525 = vmatprep.subr.mxu0 0.0
        %2526 = vmatpush1.msra.mxu0 0.0
        %2527 = vmatprep.subr.mxu0 0.0
        %2528 = vmatpush1.msra.mxu0 0.0
        %2529 = vmatprep.subr.mxu0 0.0
        %2530 = vmatpush1.msra.mxu0 0.0
        %2531 = vmatprep.subr.mxu0 0.0
        %2532 = vmatpush1.msra.mxu0 0.0
        %2533 = vmatprep.subr.mxu0 0.0
        %2534 = vmatpush1.msra.mxu0 0.0
        %2535 = vmatprep.subr.mxu0 0.0
        %2536 = vmatpush1.msra.mxu0 0.0
        %2537 = vmatprep.subr.mxu0 0.0
        %2538 = vmatpush1.msra.mxu0 0.0
        %2539 = vmatprep.subr.mxu0 0.0
        %2540 = vmatpush1.msra.mxu0 0.0
        %2541 = vmatprep.subr.mxu0 0.0
        %2542 = vmatpush1.msra.mxu0 0.0
        %2543 = vmatprep.subr.mxu0 0.0
        %2544 = vmatpush1.msra.mxu0 0.0
        %2545 = vmatprep.mubr.f32.mxu0 0.0
        %2546 = vmatmul.mubr.f32.gmra.mrb[0].mxu0 %v545
        %v2547 = vpop.f32.mrb[0].mxu0
        %v2548 = vadd.f32 %v512, %v2547
        %v2549 = vpop.f32.mrb[0].mxu0
        %2550 = vmatprep.mubr.f32.mxu0 0.0
        %2551 = vmatmul.mubr.f32.gmra.mrb[0].mxu0 %v548
        %v2552 = vpop.f32.mrb[0].mxu0
        %v2553 = vadd.f32 %v517, %v2552
        %v2554 = vpop.f32.mrb[0].mxu0
        %2555 = vmatprep.mubr.f32.mxu0 0.0
        %2556 = vmatmul.mubr.f32.gmra.mrb[0].mxu0 %v551
        %v2557 = vpop.f32.mrb[0].mxu0
        %v2558 = vadd.f32 %v522, %v2557
        %v2559 = vpop.f32.mrb[0].mxu0
        %2560 = vmatprep.mubr.f32.mxu0 0.0
        %2561 = vmatmul.mubr.f32.gmra.mrb[0].mxu0 %v554
        %v2562 = vpop.f32.mrb[0].mxu0
        %v2563 = vadd.f32 %v527, %v2562
        %v2564 = vpop.f32.mrb[0].mxu0
        %2565 = vdwg.mxu0
        %v2566 = vmax.f32 %v2548, 0.0
        %v2567 = vmax.f32 %v2553, 0.0
        %v2568 = vmax.f32 %v2558, 0.0
        %v2569 = vmax.f32 %v2563, 0.0
        %2570 = vmatprep.subr.mxu0 0.0
        %2571 = vmatpush1.msra.mxu0 %v2566
        %2572 = vmatprep.subr.mxu0 0.0
        %2573 = vmatpush1.msra.mxu0 %v2567
        %2574 = vmatprep.subr.mxu0 0.0
        %2575 = vmatpush1.msra.mxu0 %v2568
        %2576 = vmatprep.subr.mxu0 0.0
        %2577 = vmatpush1.msra.mxu0 %v2569
        %2578 = vmatprep.subr.mxu0 0.0
        %2579 = vmatpush1.msra.mxu0 0.0
        %2580 = vmatprep.subr.mxu0 0.0
        %2581 = vmatpush1.msra.mxu0 0.0
        %2582 = vmatprep.subr.mxu0 0.0
        %2583 = vmatpush1.msra.mxu0 0.0
        %2584 = vmatprep.subr.mxu0 0.0
        %2585 = vmatpush1.msra.mxu0 0.0
        %2586 = vmatprep.subr.mxu0 0.0
        %2587 = vmatpush1.msra.mxu0 0.0
        %2588 = vmatprep.subr.mxu0 0.0
        %2589 = vmatpush1.msra.mxu0 0.0
        %2590 = vmatprep.subr.mxu0 0.0
        %2591 = vmatpush1.msra.mxu0 0.0
        %2592 = vmatprep.subr.mxu0 0.0
        %2593 = vmatpush1.msra.mxu0 0.0
        %2594 = vmatprep.subr.mxu0 0.0
        %2595 = vmatpush1.msra.mxu0 0.0
        %2596 = vmatprep.subr.mxu0 0.0
        %2597 = vmatpush1.msra.mxu0 0.0
        %2598 = vmatprep.subr.mxu0 0.0
        %2599 = vmatpush1.msra.mxu0 0.0
        %2600 = vmatprep.subr.mxu0 0.0
        %2601 = vmatpush1.msra.mxu0 0.0
        %2602 = vmatprep.subr.mxu0 0.0
        %2603 = vmatpush1.msra.mxu0 0.0
        %2604 = vmatprep.subr.mxu0 0.0
        %2605 = vmatpush1.msra.mxu0 0.0
        %2606 = vmatprep.subr.mxu0 0.0
        %2607 = vmatpush1.msra.mxu0 0.0
        %2608 = vmatprep.subr.mxu0 0.0
        %2609 = vmatpush1.msra.mxu0 0.0
        %2610 = vmatprep.subr.mxu0 0.0
        %2611 = vmatpush1.msra.mxu0 0.0
        %2612 = vmatprep.subr.mxu0 0.0
        %2613 = vmatpush1.msra.mxu0 0.0
        %2614 = vmatprep.subr.mxu0 0.0
        %2615 = vmatpush1.msra.mxu0 0.0
        %2616 = vmatprep.subr.mxu0 0.0
        %2617 = vmatpush1.msra.mxu0 0.0
        %2618 = vmatprep.subr.mxu0 0.0
        %2619 = vmatpush1.msra.mxu0 0.0
        %2620 = vmatprep.subr.mxu0 0.0
        %2621 = vmatpush1.msra.mxu0 0.0
        %2622 = vmatprep.subr.mxu0 0.0
        %2623 = vmatpush1.msra.mxu0 0.0
        %2624 = vmatprep.subr.mxu0 0.0
        %2625 = vmatpush1.msra.mxu0 0.0
        %2626 = vmatprep.subr.mxu0 0.0
        %2627 = vmatpush1.msra.mxu0 0.0
        %2628 = vmatprep.subr.mxu0 0.0
        %2629 = vmatpush1.msra.mxu0 0.0
        %2630 = vmatprep.subr.mxu0 0.0
        %2631 = vmatpush1.msra.mxu0 0.0
        %2632 = vmatprep.subr.mxu0 0.0
        %2633 = vmatpush1.msra.mxu0 0.0
        %2634 = vmatprep.mubr.f32.mxu0 0.0
        %2635 = vmatmul.mubr.f32.gmra.mrb[0].mxu0 %v651
        %v2636 = vpop.f32.mrb[0].mxu0
        %v2637 = vadd.f32 %v534, %v2636
        %v2638 = vpop.f32.mrb[0].mxu0
        %2639 = vmatprep.mubr.f32.mxu0 0.0
        %2640 = vmatmul.mubr.f32.gmra.mrb[0].mxu0 %v654
        %v2641 = vpop.f32.mrb[0].mxu0
        %v2642 = vadd.f32 %v539, %v2641
        %v2643 = vpop.f32.mrb[0].mxu0
        %2644 = vdwg.mxu0
        %v2645 = vmax.f32 %v2637, 0.0
        %v2646 = vmax.f32 %v2642, 0.0
        %v2647 = vadd.f32 %v2473, %v2645
        %v2648 = vadd.f32 %v2474, %v2646
        %s2649 = scalar_lea.vmem %s470, 192 [#allocation2]
        %v2650 = vld [vmem:[%s2649] sm:$0xff]
        %v2651 = vld [vmem:[%s2649 + $0x8] sm:$0xf]
        %v2653 = vsel %vm556, %v2651, 0
        %2655 = vmatprep.subr.mxu0 0.0
        %2656 = vmatpush1.msra.mxu0 %v2650
        %2657 = vmatprep.subr.mxu0 0.0
        %2658 = vmatpush1.msra.mxu0 %v2653
        %2659 = vmatprep.subr.mxu0 0.0
        %2660 = vmatpush1.msra.mxu0 0.0
        %2661 = vmatprep.subr.mxu0 0.0
        %2662 = vmatpush1.msra.mxu0 0.0
        %2663 = vmatprep.subr.mxu0 0.0
        %2664 = vmatpush1.msra.mxu0 0.0
        %2665 = vmatprep.subr.mxu0 0.0
        %2666 = vmatpush1.msra.mxu0 0.0
        %2667 = vmatprep.subr.mxu0 0.0
        %2668 = vmatpush1.msra.mxu0 0.0
        %2669 = vmatprep.subr.mxu0 0.0
        %2670 = vmatpush1.msra.mxu0 0.0
        %2671 = vmatprep.subr.mxu0 0.0
        %2672 = vmatpush1.msra.mxu0 0.0
        %2673 = vmatprep.subr.mxu0 0.0
        %2674 = vmatpush1.msra.mxu0 0.0
        %2675 = vmatprep.subr.mxu0 0.0
        %2676 = vmatpush1.msra.mxu0 0.0
        %2677 = vmatprep.subr.mxu0 0.0
        %2678 = vmatpush1.msra.mxu0 0.0
        %2679 = vmatprep.subr.mxu0 0.0
        %2680 = vmatpush1.msra.mxu0 0.0
        %2681 = vmatprep.subr.mxu0 0.0
        %2682 = vmatpush1.msra.mxu0 0.0
        %2683 = vmatprep.subr.mxu0 0.0
        %2684 = vmatpush1.msra.mxu0 0.0
        %2685 = vmatprep.subr.mxu0 0.0
        %2686 = vmatpush1.msra.mxu0 0.0
        %2687 = vmatprep.subr.mxu0 0.0
        %2688 = vmatpush1.msra.mxu0 0.0
        %2689 = vmatprep.subr.mxu0 0.0
        %2690 = vmatpush1.msra.mxu0 0.0
        %2691 = vmatprep.subr.mxu0 0.0
        %2692 = vmatpush1.msra.mxu0 0.0
        %2693 = vmatprep.subr.mxu0 0.0
        %2694 = vmatpush1.msra.mxu0 0.0
        %2695 = vmatprep.subr.mxu0 0.0
        %2696 = vmatpush1.msra.mxu0 0.0
        %2697 = vmatprep.subr.mxu0 0.0
        %2698 = vmatpush1.msra.mxu0 0.0
        %2699 = vmatprep.subr.mxu0 0.0
        %2700 = vmatpush1.msra.mxu0 0.0
        %2701 = vmatprep.subr.mxu0 0.0
        %2702 = vmatpush1.msra.mxu0 0.0
        %2703 = vmatprep.subr.mxu0 0.0
        %2704 = vmatpush1.msra.mxu0 0.0
        %2705 = vmatprep.subr.mxu0 0.0
        %2706 = vmatpush1.msra.mxu0 0.0
        %2707 = vmatprep.subr.mxu0 0.0
        %2708 = vmatpush1.msra.mxu0 0.0
        %2709 = vmatprep.subr.mxu0 0.0
        %2710 = vmatpush1.msra.mxu0 0.0
        %2711 = vmatprep.subr.mxu0 0.0
        %2712 = vmatpush1.msra.mxu0 0.0
        %2713 = vmatprep.subr.mxu0 0.0
        %2714 = vmatpush1.msra.mxu0 0.0
        %2715 = vmatprep.subr.mxu0 0.0
        %2716 = vmatpush1.msra.mxu0 0.0
        %2717 = vmatprep.subr.mxu0 0.0
        %2718 = vmatpush1.msra.mxu0 0.0
        %2719 = vmatprep.mubr.f32.mxu0 0.0
        %2720 = vmatmul.mubr.f32.gmra.mrb[0].mxu0 %v545
        %v2721 = vpop.f32.mrb[0].mxu0
        %v2722 = vadd.f32 %v512, %v2721
        %v2723 = vpop.f32.mrb[0].mxu0
        %2724 = vmatprep.mubr.f32.mxu0 0.0
        %2725 = vmatmul.mubr.f32.gmra.mrb[0].mxu0 %v548
        %v2726 = vpop.f32.mrb[0].mxu0
        %v2727 = vadd.f32 %v517, %v2726
        %v2728 = vpop.f32.mrb[0].mxu0
        %2729 = vmatprep.mubr.f32.mxu0 0.0
        %2730 = vmatmul.mubr.f32.gmra.mrb[0].mxu0 %v551
        %v2731 = vpop.f32.mrb[0].mxu0
        %v2732 = vadd.f32 %v522, %v2731
        %v2733 = vpop.f32.mrb[0].mxu0
        %2734 = vmatprep.mubr.f32.mxu0 0.0
        %2735 = vmatmul.mubr.f32.gmra.mrb[0].mxu0 %v554
        %v2736 = vpop.f32.mrb[0].mxu0
        %v2737 = vadd.f32 %v527, %v2736
        %v2738 = vpop.f32.mrb[0].mxu0
        %2739 = vdwg.mxu0
        %v2740 = vmax.f32 %v2722, 0.0
        %v2741 = vmax.f32 %v2727, 0.0
        %v2742 = vmax.f32 %v2732, 0.0
        %v2743 = vmax.f32 %v2737, 0.0
        %2744 = vmatprep.subr.mxu0 0.0
        %2745 = vmatpush1.msra.mxu0 %v2740
        %2746 = vmatprep.subr.mxu0 0.0
        %2747 = vmatpush1.msra.mxu0 %v2741
        %2748 = vmatprep.subr.mxu0 0.0
        %2749 = vmatpush1.msra.mxu0 %v2742
        %2750 = vmatprep.subr.mxu0 0.0
        %2751 = vmatpush1.msra.mxu0 %v2743
        %2752 = vmatprep.subr.mxu0 0.0
        %2753 = vmatpush1.msra.mxu0 0.0
        %2754 = vmatprep.subr.mxu0 0.0
        %2755 = vmatpush1.msra.mxu0 0.0
        %2756 = vmatprep.subr.mxu0 0.0
        %2757 = vmatpush1.msra.mxu0 0.0
        %2758 = vmatprep.subr.mxu0 0.0
        %2759 = vmatpush1.msra.mxu0 0.0
        %2760 = vmatprep.subr.mxu0 0.0
        %2761 = vmatpush1.msra.mxu0 0.0
        %2762 = vmatprep.subr.mxu0 0.0
        %2763 = vmatpush1.msra.mxu0 0.0
        %2764 = vmatprep.subr.mxu0 0.0
        %2765 = vmatpush1.msra.mxu0 0.0
        %2766 = vmatprep.subr.mxu0 0.0
        %2767 = vmatpush1.msra.mxu0 0.0
        %2768 = vmatprep.subr.mxu0 0.0
        %2769 = vmatpush1.msra.mxu0 0.0
        %2770 = vmatprep.subr.mxu0 0.0
        %2771 = vmatpush1.msra.mxu0 0.0
        %2772 = vmatprep.subr.mxu0 0.0
        %2773 = vmatpush1.msra.mxu0 0.0
        %2774 = vmatprep.subr.mxu0 0.0
        %2775 = vmatpush1.msra.mxu0 0.0
        %2776 = vmatprep.subr.mxu0 0.0
        %2777 = vmatpush1.msra.mxu0 0.0
        %2778 = vmatprep.subr.mxu0 0.0
        %2779 = vmatpush1.msra.mxu0 0.0
        %2780 = vmatprep.subr.mxu0 0.0
        %2781 = vmatpush1.msra.mxu0 0.0
        %2782 = vmatprep.subr.mxu0 0.0
        %2783 = vmatpush1.msra.mxu0 0.0
        %2784 = vmatprep.subr.mxu0 0.0
        %2785 = vmatpush1.msra.mxu0 0.0
        %2786 = vmatprep.subr.mxu0 0.0
        %2787 = vmatpush1.msra.mxu0 0.0
        %2788 = vmatprep.subr.mxu0 0.0
        %2789 = vmatpush1.msra.mxu0 0.0
        %2790 = vmatprep.subr.mxu0 0.0
        %2791 = vmatpush1.msra.mxu0 0.0
        %2792 = vmatprep.subr.mxu0 0.0
        %2793 = vmatpush1.msra.mxu0 0.0
        %2794 = vmatprep.subr.mxu0 0.0
        %2795 = vmatpush1.msra.mxu0 0.0
        %2796 = vmatprep.subr.mxu0 0.0
        %2797 = vmatpush1.msra.mxu0 0.0
        %2798 = vmatprep.subr.mxu0 0.0
        %2799 = vmatpush1.msra.mxu0 0.0
        %2800 = vmatprep.subr.mxu0 0.0
        %2801 = vmatpush1.msra.mxu0 0.0
        %2802 = vmatprep.subr.mxu0 0.0
        %2803 = vmatpush1.msra.mxu0 0.0
        %2804 = vmatprep.subr.mxu0 0.0
        %2805 = vmatpush1.msra.mxu0 0.0
        %2806 = vmatprep.subr.mxu0 0.0
        %2807 = vmatpush1.msra.mxu0 0.0
        %2808 = vmatprep.mubr.f32.mxu0 0.0
        %2809 = vmatmul.mubr.f32.gmra.mrb[0].mxu0 %v651
        %v2810 = vpop.f32.mrb[0].mxu0
        %v2811 = vadd.f32 %v534, %v2810
        %v2812 = vpop.f32.mrb[0].mxu0
        %2813 = vmatprep.mubr.f32.mxu0 0.0
        %2814 = vmatmul.mubr.f32.gmra.mrb[0].mxu0 %v654
        %v2815 = vpop.f32.mrb[0].mxu0
        %v2816 = vadd.f32 %v539, %v2815
        %v2817 = vpop.f32.mrb[0].mxu0
        %2818 = vdwg.mxu0
        %v2819 = vmax.f32 %v2811, 0.0
        %v2820 = vmax.f32 %v2816, 0.0
        %v2821 = vadd.f32 %v2647, %v2819
        %v2822 = vadd.f32 %v2648, %v2820
        %s2823 = scalar_lea.vmem %s470, 208 [#allocation2]
        %v2824 = vld [vmem:[%s2823] sm:$0xff]
        %v2825 = vld [vmem:[%s2823 + $0x8] sm:$0xf]
        %v2827 = vsel %vm556, %v2825, 0
        %2829 = vmatprep.subr.mxu0 0.0
        %2830 = vmatpush1.msra.mxu0 %v2824
        %2831 = vmatprep.subr.mxu0 0.0
        %2832 = vmatpush1.msra.mxu0 %v2827
        %2833 = vmatprep.subr.mxu0 0.0
        %2834 = vmatpush1.msra.mxu0 0.0
        %2835 = vmatprep.subr.mxu0 0.0
        %2836 = vmatpush1.msra.mxu0 0.0
        %2837 = vmatprep.subr.mxu0 0.0
        %2838 = vmatpush1.msra.mxu0 0.0
        %2839 = vmatprep.subr.mxu0 0.0
        %2840 = vmatpush1.msra.mxu0 0.0
        %2841 = vmatprep.subr.mxu0 0.0
        %2842 = vmatpush1.msra.mxu0 0.0
        %2843 = vmatprep.subr.mxu0 0.0
        %2844 = vmatpush1.msra.mxu0 0.0
        %2845 = vmatprep.subr.mxu0 0.0
        %2846 = vmatpush1.msra.mxu0 0.0
        %2847 = vmatprep.subr.mxu0 0.0
        %2848 = vmatpush1.msra.mxu0 0.0
        %2849 = vmatprep.subr.mxu0 0.0
        %2850 = vmatpush1.msra.mxu0 0.0
        %2851 = vmatprep.subr.mxu0 0.0
        %2852 = vmatpush1.msra.mxu0 0.0
        %2853 = vmatprep.subr.mxu0 0.0
        %2854 = vmatpush1.msra.mxu0 0.0
        %2855 = vmatprep.subr.mxu0 0.0
        %2856 = vmatpush1.msra.mxu0 0.0
        %2857 = vmatprep.subr.mxu0 0.0
        %2858 = vmatpush1.msra.mxu0 0.0
        %2859 = vmatprep.subr.mxu0 0.0
        %2860 = vmatpush1.msra.mxu0 0.0
        %2861 = vmatprep.subr.mxu0 0.0
        %2862 = vmatpush1.msra.mxu0 0.0
        %2863 = vmatprep.subr.mxu0 0.0
        %2864 = vmatpush1.msra.mxu0 0.0
        %2865 = vmatprep.subr.mxu0 0.0
        %2866 = vmatpush1.msra.mxu0 0.0
        %2867 = vmatprep.subr.mxu0 0.0
        %2868 = vmatpush1.msra.mxu0 0.0
        %2869 = vmatprep.subr.mxu0 0.0
        %2870 = vmatpush1.msra.mxu0 0.0
        %2871 = vmatprep.subr.mxu0 0.0
        %2872 = vmatpush1.msra.mxu0 0.0
        %2873 = vmatprep.subr.mxu0 0.0
        %2874 = vmatpush1.msra.mxu0 0.0
        %2875 = vmatprep.subr.mxu0 0.0
        %2876 = vmatpush1.msra.mxu0 0.0
        %2877 = vmatprep.subr.mxu0 0.0
        %2878 = vmatpush1.msra.mxu0 0.0
        %2879 = vmatprep.subr.mxu0 0.0
        %2880 = vmatpush1.msra.mxu0 0.0
        %2881 = vmatprep.subr.mxu0 0.0
        %2882 = vmatpush1.msra.mxu0 0.0
        %2883 = vmatprep.subr.mxu0 0.0
        %2884 = vmatpush1.msra.mxu0 0.0
        %2885 = vmatprep.subr.mxu0 0.0
        %2886 = vmatpush1.msra.mxu0 0.0
        %2887 = vmatprep.subr.mxu0 0.0
        %2888 = vmatpush1.msra.mxu0 0.0
        %2889 = vmatprep.subr.mxu0 0.0
        %2890 = vmatpush1.msra.mxu0 0.0
        %2891 = vmatprep.subr.mxu0 0.0
        %2892 = vmatpush1.msra.mxu0 0.0
        %2893 = vmatprep.mubr.f32.mxu0 0.0
        %2894 = vmatmul.mubr.f32.gmra.mrb[0].mxu0 %v545
        %v2895 = vpop.f32.mrb[0].mxu0
        %v2896 = vadd.f32 %v512, %v2895
        %v2897 = vpop.f32.mrb[0].mxu0
        %2898 = vmatprep.mubr.f32.mxu0 0.0
        %2899 = vmatmul.mubr.f32.gmra.mrb[0].mxu0 %v548
        %v2900 = vpop.f32.mrb[0].mxu0
        %v2901 = vadd.f32 %v517, %v2900
        %v2902 = vpop.f32.mrb[0].mxu0
        %2903 = vmatprep.mubr.f32.mxu0 0.0
        %2904 = vmatmul.mubr.f32.gmra.mrb[0].mxu0 %v551
        %v2905 = vpop.f32.mrb[0].mxu0
        %v2906 = vadd.f32 %v522, %v2905
        %v2907 = vpop.f32.mrb[0].mxu0
        %2908 = vmatprep.mubr.f32.mxu0 0.0
        %2909 = vmatmul.mubr.f32.gmra.mrb[0].mxu0 %v554
        %v2910 = vpop.f32.mrb[0].mxu0
        %v2911 = vadd.f32 %v527, %v2910
        %v2912 = vpop.f32.mrb[0].mxu0
        %2913 = vdwg.mxu0
        %v2914 = vmax.f32 %v2896, 0.0
        %v2915 = vmax.f32 %v2901, 0.0
        %v2916 = vmax.f32 %v2906, 0.0
        %v2917 = vmax.f32 %v2911, 0.0
        %2918 = vmatprep.subr.mxu0 0.0
        %2919 = vmatpush1.msra.mxu0 %v2914
        %2920 = vmatprep.subr.mxu0 0.0
        %2921 = vmatpush1.msra.mxu0 %v2915
        %2922 = vmatprep.subr.mxu0 0.0
        %2923 = vmatpush1.msra.mxu0 %v2916
        %2924 = vmatprep.subr.mxu0 0.0
        %2925 = vmatpush1.msra.mxu0 %v2917
        %2926 = vmatprep.subr.mxu0 0.0
        %2927 = vmatpush1.msra.mxu0 0.0
        %2928 = vmatprep.subr.mxu0 0.0
        %2929 = vmatpush1.msra.mxu0 0.0
        %2930 = vmatprep.subr.mxu0 0.0
        %2931 = vmatpush1.msra.mxu0 0.0
        %2932 = vmatprep.subr.mxu0 0.0
        %2933 = vmatpush1.msra.mxu0 0.0
        %2934 = vmatprep.subr.mxu0 0.0
        %2935 = vmatpush1.msra.mxu0 0.0
        %2936 = vmatprep.subr.mxu0 0.0
        %2937 = vmatpush1.msra.mxu0 0.0
        %2938 = vmatprep.subr.mxu0 0.0
        %2939 = vmatpush1.msra.mxu0 0.0
        %2940 = vmatprep.subr.mxu0 0.0
        %2941 = vmatpush1.msra.mxu0 0.0
        %2942 = vmatprep.subr.mxu0 0.0
        %2943 = vmatpush1.msra.mxu0 0.0
        %2944 = vmatprep.subr.mxu0 0.0
        %2945 = vmatpush1.msra.mxu0 0.0
        %2946 = vmatprep.subr.mxu0 0.0
        %2947 = vmatpush1.msra.mxu0 0.0
        %2948 = vmatprep.subr.mxu0 0.0
        %2949 = vmatpush1.msra.mxu0 0.0
        %2950 = vmatprep.subr.mxu0 0.0
        %2951 = vmatpush1.msra.mxu0 0.0
        %2952 = vmatprep.subr.mxu0 0.0
        %2953 = vmatpush1.msra.mxu0 0.0
        %2954 = vmatprep.subr.mxu0 0.0
        %2955 = vmatpush1.msra.mxu0 0.0
        %2956 = vmatprep.subr.mxu0 0.0
        %2957 = vmatpush1.msra.mxu0 0.0
        %2958 = vmatprep.subr.mxu0 0.0
        %2959 = vmatpush1.msra.mxu0 0.0
        %2960 = vmatprep.subr.mxu0 0.0
        %2961 = vmatpush1.msra.mxu0 0.0
        %2962 = vmatprep.subr.mxu0 0.0
        %2963 = vmatpush1.msra.mxu0 0.0
        %2964 = vmatprep.subr.mxu0 0.0
        %2965 = vmatpush1.msra.mxu0 0.0
        %2966 = vmatprep.subr.mxu0 0.0
        %2967 = vmatpush1.msra.mxu0 0.0
        %2968 = vmatprep.subr.mxu0 0.0
        %2969 = vmatpush1.msra.mxu0 0.0
        %2970 = vmatprep.subr.mxu0 0.0
        %2971 = vmatpush1.msra.mxu0 0.0
        %2972 = vmatprep.subr.mxu0 0.0
        %2973 = vmatpush1.msra.mxu0 0.0
        %2974 = vmatprep.subr.mxu0 0.0
        %2975 = vmatpush1.msra.mxu0 0.0
        %2976 = vmatprep.subr.mxu0 0.0
        %2977 = vmatpush1.msra.mxu0 0.0
        %2978 = vmatprep.subr.mxu0 0.0
        %2979 = vmatpush1.msra.mxu0 0.0
        %2980 = vmatprep.subr.mxu0 0.0
        %2981 = vmatpush1.msra.mxu0 0.0
        %2982 = vmatprep.mubr.f32.mxu0 0.0
        %2983 = vmatmul.mubr.f32.gmra.mrb[0].mxu0 %v651
        %v2984 = vpop.f32.mrb[0].mxu0
        %v2985 = vadd.f32 %v534, %v2984
        %v2986 = vpop.f32.mrb[0].mxu0
        %2987 = vmatprep.mubr.f32.mxu0 0.0
        %2988 = vmatmul.mubr.f32.gmra.mrb[0].mxu0 %v654
        %v2989 = vpop.f32.mrb[0].mxu0
        %v2990 = vadd.f32 %v539, %v2989
        %v2991 = vpop.f32.mrb[0].mxu0
        %2992 = vdwg.mxu0
        %v2993 = vmax.f32 %v2985, 0.0
        %v2994 = vmax.f32 %v2990, 0.0
        %v2995 = vadd.f32 %v2821, %v2993
        %v2996 = vadd.f32 %v2822, %v2994
        %s2997 = scalar_lea.vmem %s470, 224 [#allocation2]
        %v2998 = vld [vmem:[%s2997] sm:$0xff]
        %v2999 = vld [vmem:[%s2997 + $0x8] sm:$0xf]
        %v3001 = vsel %vm556, %v2999, 0
        %3003 = vmatprep.subr.mxu0 0.0
        %3004 = vmatpush1.msra.mxu0 %v2998
        %3005 = vmatprep.subr.mxu0 0.0
        %3006 = vmatpush1.msra.mxu0 %v3001
        %3007 = vmatprep.subr.mxu0 0.0
        %3008 = vmatpush1.msra.mxu0 0.0
        %3009 = vmatprep.subr.mxu0 0.0
        %3010 = vmatpush1.msra.mxu0 0.0
        %3011 = vmatprep.subr.mxu0 0.0
        %3012 = vmatpush1.msra.mxu0 0.0
        %3013 = vmatprep.subr.mxu0 0.0
        %3014 = vmatpush1.msra.mxu0 0.0
        %3015 = vmatprep.subr.mxu0 0.0
        %3016 = vmatpush1.msra.mxu0 0.0
        %3017 = vmatprep.subr.mxu0 0.0
        %3018 = vmatpush1.msra.mxu0 0.0
        %3019 = vmatprep.subr.mxu0 0.0
        %3020 = vmatpush1.msra.mxu0 0.0
        %3021 = vmatprep.subr.mxu0 0.0
        %3022 = vmatpush1.msra.mxu0 0.0
        %3023 = vmatprep.subr.mxu0 0.0
        %3024 = vmatpush1.msra.mxu0 0.0
        %3025 = vmatprep.subr.mxu0 0.0
        %3026 = vmatpush1.msra.mxu0 0.0
        %3027 = vmatprep.subr.mxu0 0.0
        %3028 = vmatpush1.msra.mxu0 0.0
        %3029 = vmatprep.subr.mxu0 0.0
        %3030 = vmatpush1.msra.mxu0 0.0
        %3031 = vmatprep.subr.mxu0 0.0
        %3032 = vmatpush1.msra.mxu0 0.0
        %3033 = vmatprep.subr.mxu0 0.0
        %3034 = vmatpush1.msra.mxu0 0.0
        %3035 = vmatprep.subr.mxu0 0.0
        %3036 = vmatpush1.msra.mxu0 0.0
        %3037 = vmatprep.subr.mxu0 0.0
        %3038 = vmatpush1.msra.mxu0 0.0
        %3039 = vmatprep.subr.mxu0 0.0
        %3040 = vmatpush1.msra.mxu0 0.0
        %3041 = vmatprep.subr.mxu0 0.0
        %3042 = vmatpush1.msra.mxu0 0.0
        %3043 = vmatprep.subr.mxu0 0.0
        %3044 = vmatpush1.msra.mxu0 0.0
        %3045 = vmatprep.subr.mxu0 0.0
        %3046 = vmatpush1.msra.mxu0 0.0
        %3047 = vmatprep.subr.mxu0 0.0
        %3048 = vmatpush1.msra.mxu0 0.0
        %3049 = vmatprep.subr.mxu0 0.0
        %3050 = vmatpush1.msra.mxu0 0.0
        %3051 = vmatprep.subr.mxu0 0.0
        %3052 = vmatpush1.msra.mxu0 0.0
        %3053 = vmatprep.subr.mxu0 0.0
        %3054 = vmatpush1.msra.mxu0 0.0
        %3055 = vmatprep.subr.mxu0 0.0
        %3056 = vmatpush1.msra.mxu0 0.0
        %3057 = vmatprep.subr.mxu0 0.0
        %3058 = vmatpush1.msra.mxu0 0.0
        %3059 = vmatprep.subr.mxu0 0.0
        %3060 = vmatpush1.msra.mxu0 0.0
        %3061 = vmatprep.subr.mxu0 0.0
        %3062 = vmatpush1.msra.mxu0 0.0
        %3063 = vmatprep.subr.mxu0 0.0
        %3064 = vmatpush1.msra.mxu0 0.0
        %3065 = vmatprep.subr.mxu0 0.0
        %3066 = vmatpush1.msra.mxu0 0.0
        %3067 = vmatprep.mubr.f32.mxu0 0.0
        %3068 = vmatmul.mubr.f32.gmra.mrb[0].mxu0 %v545
        %v3069 = vpop.f32.mrb[0].mxu0
        %v3070 = vadd.f32 %v512, %v3069
        %v3071 = vpop.f32.mrb[0].mxu0
        %3072 = vmatprep.mubr.f32.mxu0 0.0
        %3073 = vmatmul.mubr.f32.gmra.mrb[0].mxu0 %v548
        %v3074 = vpop.f32.mrb[0].mxu0
        %v3075 = vadd.f32 %v517, %v3074
        %v3076 = vpop.f32.mrb[0].mxu0
        %3077 = vmatprep.mubr.f32.mxu0 0.0
        %3078 = vmatmul.mubr.f32.gmra.mrb[0].mxu0 %v551
        %v3079 = vpop.f32.mrb[0].mxu0
        %v3080 = vadd.f32 %v522, %v3079
        %v3081 = vpop.f32.mrb[0].mxu0
        %3082 = vmatprep.mubr.f32.mxu0 0.0
        %3083 = vmatmul.mubr.f32.gmra.mrb[0].mxu0 %v554
        %v3084 = vpop.f32.mrb[0].mxu0
        %v3085 = vadd.f32 %v527, %v3084
        %v3086 = vpop.f32.mrb[0].mxu0
        %3087 = vdwg.mxu0
        %v3088 = vmax.f32 %v3070, 0.0
        %v3089 = vmax.f32 %v3075, 0.0
        %v3090 = vmax.f32 %v3080, 0.0
        %v3091 = vmax.f32 %v3085, 0.0
        %3092 = vmatprep.subr.mxu0 0.0
        %3093 = vmatpush1.msra.mxu0 %v3088
        %3094 = vmatprep.subr.mxu0 0.0
        %3095 = vmatpush1.msra.mxu0 %v3089
        %3096 = vmatprep.subr.mxu0 0.0
        %3097 = vmatpush1.msra.mxu0 %v3090
        %3098 = vmatprep.subr.mxu0 0.0
        %3099 = vmatpush1.msra.mxu0 %v3091
        %3100 = vmatprep.subr.mxu0 0.0
        %3101 = vmatpush1.msra.mxu0 0.0
        %3102 = vmatprep.subr.mxu0 0.0
        %3103 = vmatpush1.msra.mxu0 0.0
        %3104 = vmatprep.subr.mxu0 0.0
        %3105 = vmatpush1.msra.mxu0 0.0
        %3106 = vmatprep.subr.mxu0 0.0
        %3107 = vmatpush1.msra.mxu0 0.0
        %3108 = vmatprep.subr.mxu0 0.0
        %3109 = vmatpush1.msra.mxu0 0.0
        %3110 = vmatprep.subr.mxu0 0.0
        %3111 = vmatpush1.msra.mxu0 0.0
        %3112 = vmatprep.subr.mxu0 0.0
        %3113 = vmatpush1.msra.mxu0 0.0
        %3114 = vmatprep.subr.mxu0 0.0
        %3115 = vmatpush1.msra.mxu0 0.0
        %3116 = vmatprep.subr.mxu0 0.0
        %3117 = vmatpush1.msra.mxu0 0.0
        %3118 = vmatprep.subr.mxu0 0.0
        %3119 = vmatpush1.msra.mxu0 0.0
        %3120 = vmatprep.subr.mxu0 0.0
        %3121 = vmatpush1.msra.mxu0 0.0
        %3122 = vmatprep.subr.mxu0 0.0
        %3123 = vmatpush1.msra.mxu0 0.0
        %3124 = vmatprep.subr.mxu0 0.0
        %3125 = vmatpush1.msra.mxu0 0.0
        %3126 = vmatprep.subr.mxu0 0.0
        %3127 = vmatpush1.msra.mxu0 0.0
        %3128 = vmatprep.subr.mxu0 0.0
        %3129 = vmatpush1.msra.mxu0 0.0
        %3130 = vmatprep.subr.mxu0 0.0
        %3131 = vmatpush1.msra.mxu0 0.0
        %3132 = vmatprep.subr.mxu0 0.0
        %3133 = vmatpush1.msra.mxu0 0.0
        %3134 = vmatprep.subr.mxu0 0.0
        %3135 = vmatpush1.msra.mxu0 0.0
        %3136 = vmatprep.subr.mxu0 0.0
        %3137 = vmatpush1.msra.mxu0 0.0
        %3138 = vmatprep.subr.mxu0 0.0
        %3139 = vmatpush1.msra.mxu0 0.0
        %3140 = vmatprep.subr.mxu0 0.0
        %3141 = vmatpush1.msra.mxu0 0.0
        %3142 = vmatprep.subr.mxu0 0.0
        %3143 = vmatpush1.msra.mxu0 0.0
        %3144 = vmatprep.subr.mxu0 0.0
        %3145 = vmatpush1.msra.mxu0 0.0
        %3146 = vmatprep.subr.mxu0 0.0
        %3147 = vmatpush1.msra.mxu0 0.0
        %3148 = vmatprep.subr.mxu0 0.0
        %3149 = vmatpush1.msra.mxu0 0.0
        %3150 = vmatprep.subr.mxu0 0.0
        %3151 = vmatpush1.msra.mxu0 0.0
        %3152 = vmatprep.subr.mxu0 0.0
        %3153 = vmatpush1.msra.mxu0 0.0
        %3154 = vmatprep.subr.mxu0 0.0
        %3155 = vmatpush1.msra.mxu0 0.0
        %3156 = vmatprep.mubr.f32.mxu0 0.0
        %3157 = vmatmul.mubr.f32.gmra.mrb[0].mxu0 %v651
        %v3158 = vpop.f32.mrb[0].mxu0
        %v3159 = vadd.f32 %v534, %v3158
        %v3160 = vpop.f32.mrb[0].mxu0
        %3161 = vmatprep.mubr.f32.mxu0 0.0
        %3162 = vmatmul.mubr.f32.gmra.mrb[0].mxu0 %v654
        %v3163 = vpop.f32.mrb[0].mxu0
        %v3164 = vadd.f32 %v539, %v3163
        %v3165 = vpop.f32.mrb[0].mxu0
        %3166 = vdwg.mxu0
        %v3167 = vmax.f32 %v3159, 0.0
        %v3168 = vmax.f32 %v3164, 0.0
        %v3169 = vadd.f32 %v2995, %v3167
        %v3170 = vadd.f32 %v2996, %v3168
        %s3171 = scalar_lea.vmem %s470, 240 [#allocation2]
        %v3172 = vld [vmem:[%s3171] sm:$0xff]
        %v3173 = vld [vmem:[%s3171 + $0x8] sm:$0xf]
        %v3175 = vsel %vm556, %v3173, 0
        %3177 = vmatprep.subr.mxu0 0.0
        %3178 = vmatpush1.msra.mxu0 %v3172
        %3179 = vmatprep.subr.mxu0 0.0
        %3180 = vmatpush1.msra.mxu0 %v3175
        %3181 = vmatprep.subr.mxu0 0.0
        %3182 = vmatpush1.msra.mxu0 0.0
        %3183 = vmatprep.subr.mxu0 0.0
        %3184 = vmatpush1.msra.mxu0 0.0
        %3185 = vmatprep.subr.mxu0 0.0
        %3186 = vmatpush1.msra.mxu0 0.0
        %3187 = vmatprep.subr.mxu0 0.0
        %3188 = vmatpush1.msra.mxu0 0.0
        %3189 = vmatprep.subr.mxu0 0.0
        %3190 = vmatpush1.msra.mxu0 0.0
        %3191 = vmatprep.subr.mxu0 0.0
        %3192 = vmatpush1.msra.mxu0 0.0
        %3193 = vmatprep.subr.mxu0 0.0
        %3194 = vmatpush1.msra.mxu0 0.0
        %3195 = vmatprep.subr.mxu0 0.0
        %3196 = vmatpush1.msra.mxu0 0.0
        %3197 = vmatprep.subr.mxu0 0.0
        %3198 = vmatpush1.msra.mxu0 0.0
        %3199 = vmatprep.subr.mxu0 0.0
        %3200 = vmatpush1.msra.mxu0 0.0
        %3201 = vmatprep.subr.mxu0 0.0
        %3202 = vmatpush1.msra.mxu0 0.0
        %3203 = vmatprep.subr.mxu0 0.0
        %3204 = vmatpush1.msra.mxu0 0.0
        %3205 = vmatprep.subr.mxu0 0.0
        %3206 = vmatpush1.msra.mxu0 0.0
        %3207 = vmatprep.subr.mxu0 0.0
        %3208 = vmatpush1.msra.mxu0 0.0
        %3209 = vmatprep.subr.mxu0 0.0
        %3210 = vmatpush1.msra.mxu0 0.0
        %3211 = vmatprep.subr.mxu0 0.0
        %3212 = vmatpush1.msra.mxu0 0.0
        %3213 = vmatprep.subr.mxu0 0.0
        %3214 = vmatpush1.msra.mxu0 0.0
        %3215 = vmatprep.subr.mxu0 0.0
        %3216 = vmatpush1.msra.mxu0 0.0
        %3217 = vmatprep.subr.mxu0 0.0
        %3218 = vmatpush1.msra.mxu0 0.0
        %3219 = vmatprep.subr.mxu0 0.0
        %3220 = vmatpush1.msra.mxu0 0.0
        %3221 = vmatprep.subr.mxu0 0.0
        %3222 = vmatpush1.msra.mxu0 0.0
        %3223 = vmatprep.subr.mxu0 0.0
        %3224 = vmatpush1.msra.mxu0 0.0
        %3225 = vmatprep.subr.mxu0 0.0
        %3226 = vmatpush1.msra.mxu0 0.0
        %3227 = vmatprep.subr.mxu0 0.0
        %3228 = vmatpush1.msra.mxu0 0.0
        %3229 = vmatprep.subr.mxu0 0.0
        %3230 = vmatpush1.msra.mxu0 0.0
        %3231 = vmatprep.subr.mxu0 0.0
        %3232 = vmatpush1.msra.mxu0 0.0
        %3233 = vmatprep.subr.mxu0 0.0
        %3234 = vmatpush1.msra.mxu0 0.0
        %3235 = vmatprep.subr.mxu0 0.0
        %3236 = vmatpush1.msra.mxu0 0.0
        %3237 = vmatprep.subr.mxu0 0.0
        %3238 = vmatpush1.msra.mxu0 0.0
        %3239 = vmatprep.subr.mxu0 0.0
        %3240 = vmatpush1.msra.mxu0 0.0
        %3241 = vmatprep.mubr.f32.mxu0 0.0
        %3242 = vmatmul.mubr.f32.gmra.mrb[0].mxu0 %v545
        %v3243 = vpop.f32.mrb[0].mxu0
        %v3244 = vadd.f32 %v512, %v3243
        %v3245 = vpop.f32.mrb[0].mxu0
        %3246 = vmatprep.mubr.f32.mxu0 0.0
        %3247 = vmatmul.mubr.f32.gmra.mrb[0].mxu0 %v548
        %v3248 = vpop.f32.mrb[0].mxu0
        %v3249 = vadd.f32 %v517, %v3248
        %v3250 = vpop.f32.mrb[0].mxu0
        %3251 = vmatprep.mubr.f32.mxu0 0.0
        %3252 = vmatmul.mubr.f32.gmra.mrb[0].mxu0 %v551
        %v3253 = vpop.f32.mrb[0].mxu0
        %v3254 = vadd.f32 %v522, %v3253
        %v3255 = vpop.f32.mrb[0].mxu0
        %3256 = vmatprep.mubr.f32.mxu0 0.0
        %3257 = vmatmul.mubr.f32.gmra.mrb[0].mxu0 %v554
        %v3258 = vpop.f32.mrb[0].mxu0
        %v3259 = vadd.f32 %v527, %v3258
        %v3260 = vpop.f32.mrb[0].mxu0
        %3261 = vdwg.mxu0
        %v3262 = vmax.f32 %v3244, 0.0
        %v3263 = vmax.f32 %v3249, 0.0
        %v3264 = vmax.f32 %v3254, 0.0
        %v3265 = vmax.f32 %v3259, 0.0
        %3266 = vmatprep.subr.mxu0 0.0
        %3267 = vmatpush1.msra.mxu0 %v3262
        %3268 = vmatprep.subr.mxu0 0.0
        %3269 = vmatpush1.msra.mxu0 %v3263
        %3270 = vmatprep.subr.mxu0 0.0
        %3271 = vmatpush1.msra.mxu0 %v3264
        %3272 = vmatprep.subr.mxu0 0.0
        %3273 = vmatpush1.msra.mxu0 %v3265
        %3274 = vmatprep.subr.mxu0 0.0
        %3275 = vmatpush1.msra.mxu0 0.0
        %3276 = vmatprep.subr.mxu0 0.0
        %3277 = vmatpush1.msra.mxu0 0.0
        %3278 = vmatprep.subr.mxu0 0.0
        %3279 = vmatpush1.msra.mxu0 0.0
        %3280 = vmatprep.subr.mxu0 0.0
        %3281 = vmatpush1.msra.mxu0 0.0
        %3282 = vmatprep.subr.mxu0 0.0
        %3283 = vmatpush1.msra.mxu0 0.0
        %3284 = vmatprep.subr.mxu0 0.0
        %3285 = vmatpush1.msra.mxu0 0.0
        %3286 = vmatprep.subr.mxu0 0.0
        %3287 = vmatpush1.msra.mxu0 0.0
        %3288 = vmatprep.subr.mxu0 0.0
        %3289 = vmatpush1.msra.mxu0 0.0
        %3290 = vmatprep.subr.mxu0 0.0
        %3291 = vmatpush1.msra.mxu0 0.0
        %3292 = vmatprep.subr.mxu0 0.0
        %3293 = vmatpush1.msra.mxu0 0.0
        %3294 = vmatprep.subr.mxu0 0.0
        %3295 = vmatpush1.msra.mxu0 0.0
        %3296 = vmatprep.subr.mxu0 0.0
        %3297 = vmatpush1.msra.mxu0 0.0
        %3298 = vmatprep.subr.mxu0 0.0
        %3299 = vmatpush1.msra.mxu0 0.0
        %3300 = vmatprep.subr.mxu0 0.0
        %3301 = vmatpush1.msra.mxu0 0.0
        %3302 = vmatprep.subr.mxu0 0.0
        %3303 = vmatpush1.msra.mxu0 0.0
        %3304 = vmatprep.subr.mxu0 0.0
        %3305 = vmatpush1.msra.mxu0 0.0
        %3306 = vmatprep.subr.mxu0 0.0
        %3307 = vmatpush1.msra.mxu0 0.0
        %3308 = vmatprep.subr.mxu0 0.0
        %3309 = vmatpush1.msra.mxu0 0.0
        %3310 = vmatprep.subr.mxu0 0.0
        %3311 = vmatpush1.msra.mxu0 0.0
        %3312 = vmatprep.subr.mxu0 0.0
        %3313 = vmatpush1.msra.mxu0 0.0
        %3314 = vmatprep.subr.mxu0 0.0
        %3315 = vmatpush1.msra.mxu0 0.0
        %3316 = vmatprep.subr.mxu0 0.0
        %3317 = vmatpush1.msra.mxu0 0.0
        %3318 = vmatprep.subr.mxu0 0.0
        %3319 = vmatpush1.msra.mxu0 0.0
        %3320 = vmatprep.subr.mxu0 0.0
        %3321 = vmatpush1.msra.mxu0 0.0
        %3322 = vmatprep.subr.mxu0 0.0
        %3323 = vmatpush1.msra.mxu0 0.0
        %3324 = vmatprep.subr.mxu0 0.0
        %3325 = vmatpush1.msra.mxu0 0.0
        %3326 = vmatprep.subr.mxu0 0.0
        %3327 = vmatpush1.msra.mxu0 0.0
        %3328 = vmatprep.subr.mxu0 0.0
        %3329 = vmatpush1.msra.mxu0 0.0
        %3330 = vmatprep.mubr.f32.mxu0 0.0
        %3331 = vmatmul.mubr.f32.gmra.mrb[0].mxu0 %v651
        %v3332 = vpop.f32.mrb[0].mxu0
        %v3333 = vadd.f32 %v534, %v3332
        %v3334 = vpop.f32.mrb[0].mxu0
        %3335 = vmatprep.mubr.f32.mxu0 0.0
        %3336 = vmatmul.mubr.f32.gmra.mrb[0].mxu0 %v654
        %v3337 = vpop.f32.mrb[0].mxu0
        %v3338 = vadd.f32 %v539, %v3337
        %v3339 = vpop.f32.mrb[0].mxu0
        %3340 = vdwg.mxu0
        %v3341 = vmax.f32 %v3333, 0.0
        %v3342 = vmax.f32 %v3338, 0.0
        %v3343 = vadd.f32 %v3169, %v3341
        %v3344 = vadd.f32 %v3170, %v3342
        %s3345 = scalar_lea.vmem %s470, 256 [#allocation2]
        %v3346 = vld [vmem:[%s3345] sm:$0xff]
        %v3347 = vld [vmem:[%s3345 + $0x8] sm:$0xf]
        %v3349 = vsel %vm556, %v3347, 0
        %3351 = vmatprep.subr.mxu0 0.0
        %3352 = vmatpush1.msra.mxu0 %v3346
        %3353 = vmatprep.subr.mxu0 0.0
        %3354 = vmatpush1.msra.mxu0 %v3349
        %3355 = vmatprep.subr.mxu0 0.0
        %3356 = vmatpush1.msra.mxu0 0.0
        %3357 = vmatprep.subr.mxu0 0.0
        %3358 = vmatpush1.msra.mxu0 0.0
        %3359 = vmatprep.subr.mxu0 0.0
        %3360 = vmatpush1.msra.mxu0 0.0
        %3361 = vmatprep.subr.mxu0 0.0
        %3362 = vmatpush1.msra.mxu0 0.0
        %3363 = vmatprep.subr.mxu0 0.0
        %3364 = vmatpush1.msra.mxu0 0.0
        %3365 = vmatprep.subr.mxu0 0.0
        %3366 = vmatpush1.msra.mxu0 0.0
        %3367 = vmatprep.subr.mxu0 0.0
        %3368 = vmatpush1.msra.mxu0 0.0
        %3369 = vmatprep.subr.mxu0 0.0
        %3370 = vmatpush1.msra.mxu0 0.0
        %3371 = vmatprep.subr.mxu0 0.0
        %3372 = vmatpush1.msra.mxu0 0.0
        %3373 = vmatprep.subr.mxu0 0.0
        %3374 = vmatpush1.msra.mxu0 0.0
        %3375 = vmatprep.subr.mxu0 0.0
        %3376 = vmatpush1.msra.mxu0 0.0
        %3377 = vmatprep.subr.mxu0 0.0
        %3378 = vmatpush1.msra.mxu0 0.0
        %3379 = vmatprep.subr.mxu0 0.0
        %3380 = vmatpush1.msra.mxu0 0.0
        %3381 = vmatprep.subr.mxu0 0.0
        %3382 = vmatpush1.msra.mxu0 0.0
        %3383 = vmatprep.subr.mxu0 0.0
        %3384 = vmatpush1.msra.mxu0 0.0
        %3385 = vmatprep.subr.mxu0 0.0
        %3386 = vmatpush1.msra.mxu0 0.0
        %3387 = vmatprep.subr.mxu0 0.0
        %3388 = vmatpush1.msra.mxu0 0.0
        %3389 = vmatprep.subr.mxu0 0.0
        %3390 = vmatpush1.msra.mxu0 0.0
        %3391 = vmatprep.subr.mxu0 0.0
        %3392 = vmatpush1.msra.mxu0 0.0
        %3393 = vmatprep.subr.mxu0 0.0
        %3394 = vmatpush1.msra.mxu0 0.0
        %3395 = vmatprep.subr.mxu0 0.0
        %3396 = vmatpush1.msra.mxu0 0.0
        %3397 = vmatprep.subr.mxu0 0.0
        %3398 = vmatpush1.msra.mxu0 0.0
        %3399 = vmatprep.subr.mxu0 0.0
        %3400 = vmatpush1.msra.mxu0 0.0
        %3401 = vmatprep.subr.mxu0 0.0
        %3402 = vmatpush1.msra.mxu0 0.0
        %3403 = vmatprep.subr.mxu0 0.0
        %3404 = vmatpush1.msra.mxu0 0.0
        %3405 = vmatprep.subr.mxu0 0.0
        %3406 = vmatpush1.msra.mxu0 0.0
        %3407 = vmatprep.subr.mxu0 0.0
        %3408 = vmatpush1.msra.mxu0 0.0
        %3409 = vmatprep.subr.mxu0 0.0
        %3410 = vmatpush1.msra.mxu0 0.0
        %3411 = vmatprep.subr.mxu0 0.0
        %3412 = vmatpush1.msra.mxu0 0.0
        %3413 = vmatprep.subr.mxu0 0.0
        %3414 = vmatpush1.msra.mxu0 0.0
        %3415 = vmatprep.mubr.f32.mxu0 0.0
        %3416 = vmatmul.mubr.f32.gmra.mrb[0].mxu0 %v545
        %v3417 = vpop.f32.mrb[0].mxu0
        %v3418 = vadd.f32 %v512, %v3417
        %v3419 = vpop.f32.mrb[0].mxu0
        %3420 = vmatprep.mubr.f32.mxu0 0.0
        %3421 = vmatmul.mubr.f32.gmra.mrb[0].mxu0 %v548
        %v3422 = vpop.f32.mrb[0].mxu0
        %v3423 = vadd.f32 %v517, %v3422
        %v3424 = vpop.f32.mrb[0].mxu0
        %3425 = vmatprep.mubr.f32.mxu0 0.0
        %3426 = vmatmul.mubr.f32.gmra.mrb[0].mxu0 %v551
        %v3427 = vpop.f32.mrb[0].mxu0
        %v3428 = vadd.f32 %v522, %v3427
        %v3429 = vpop.f32.mrb[0].mxu0
        %3430 = vmatprep.mubr.f32.mxu0 0.0
        %3431 = vmatmul.mubr.f32.gmra.mrb[0].mxu0 %v554
        %v3432 = vpop.f32.mrb[0].mxu0
        %v3433 = vadd.f32 %v527, %v3432
        %v3434 = vpop.f32.mrb[0].mxu0
        %3435 = vdwg.mxu0
        %v3436 = vmax.f32 %v3418, 0.0
        %v3437 = vmax.f32 %v3423, 0.0
        %v3438 = vmax.f32 %v3428, 0.0
        %v3439 = vmax.f32 %v3433, 0.0
        %3440 = vmatprep.subr.mxu0 0.0
        %3441 = vmatpush1.msra.mxu0 %v3436
        %3442 = vmatprep.subr.mxu0 0.0
        %3443 = vmatpush1.msra.mxu0 %v3437
        %3444 = vmatprep.subr.mxu0 0.0
        %3445 = vmatpush1.msra.mxu0 %v3438
        %3446 = vmatprep.subr.mxu0 0.0
        %3447 = vmatpush1.msra.mxu0 %v3439
        %3448 = vmatprep.subr.mxu0 0.0
        %3449 = vmatpush1.msra.mxu0 0.0
        %3450 = vmatprep.subr.mxu0 0.0
        %3451 = vmatpush1.msra.mxu0 0.0
        %3452 = vmatprep.subr.mxu0 0.0
        %3453 = vmatpush1.msra.mxu0 0.0
        %3454 = vmatprep.subr.mxu0 0.0
        %3455 = vmatpush1.msra.mxu0 0.0
        %3456 = vmatprep.subr.mxu0 0.0
        %3457 = vmatpush1.msra.mxu0 0.0
        %3458 = vmatprep.subr.mxu0 0.0
        %3459 = vmatpush1.msra.mxu0 0.0
        %3460 = vmatprep.subr.mxu0 0.0
        %3461 = vmatpush1.msra.mxu0 0.0
        %3462 = vmatprep.subr.mxu0 0.0
        %3463 = vmatpush1.msra.mxu0 0.0
        %3464 = vmatprep.subr.mxu0 0.0
        %3465 = vmatpush1.msra.mxu0 0.0
        %3466 = vmatprep.subr.mxu0 0.0
        %3467 = vmatpush1.msra.mxu0 0.0
        %3468 = vmatprep.subr.mxu0 0.0
        %3469 = vmatpush1.msra.mxu0 0.0
        %3470 = vmatprep.subr.mxu0 0.0
        %3471 = vmatpush1.msra.mxu0 0.0
        %3472 = vmatprep.subr.mxu0 0.0
        %3473 = vmatpush1.msra.mxu0 0.0
        %3474 = vmatprep.subr.mxu0 0.0
        %3475 = vmatpush1.msra.mxu0 0.0
        %3476 = vmatprep.subr.mxu0 0.0
        %3477 = vmatpush1.msra.mxu0 0.0
        %3478 = vmatprep.subr.mxu0 0.0
        %3479 = vmatpush1.msra.mxu0 0.0
        %3480 = vmatprep.subr.mxu0 0.0
        %3481 = vmatpush1.msra.mxu0 0.0
        %3482 = vmatprep.subr.mxu0 0.0
        %3483 = vmatpush1.msra.mxu0 0.0
        %3484 = vmatprep.subr.mxu0 0.0
        %3485 = vmatpush1.msra.mxu0 0.0
        %3486 = vmatprep.subr.mxu0 0.0
        %3487 = vmatpush1.msra.mxu0 0.0
        %3488 = vmatprep.subr.mxu0 0.0
        %3489 = vmatpush1.msra.mxu0 0.0
        %3490 = vmatprep.subr.mxu0 0.0
        %3491 = vmatpush1.msra.mxu0 0.0
        %3492 = vmatprep.subr.mxu0 0.0
        %3493 = vmatpush1.msra.mxu0 0.0
        %3494 = vmatprep.subr.mxu0 0.0
        %3495 = vmatpush1.msra.mxu0 0.0
        %3496 = vmatprep.subr.mxu0 0.0
        %3497 = vmatpush1.msra.mxu0 0.0
        %3498 = vmatprep.subr.mxu0 0.0
        %3499 = vmatpush1.msra.mxu0 0.0
        %3500 = vmatprep.subr.mxu0 0.0
        %3501 = vmatpush1.msra.mxu0 0.0
        %3502 = vmatprep.subr.mxu0 0.0
        %3503 = vmatpush1.msra.mxu0 0.0
        %3504 = vmatprep.mubr.f32.mxu0 0.0
        %3505 = vmatmul.mubr.f32.gmra.mrb[0].mxu0 %v651
        %v3506 = vpop.f32.mrb[0].mxu0
        %v3507 = vadd.f32 %v534, %v3506
        %v3508 = vpop.f32.mrb[0].mxu0
        %3509 = vmatprep.mubr.f32.mxu0 0.0
        %3510 = vmatmul.mubr.f32.gmra.mrb[0].mxu0 %v654
        %v3511 = vpop.f32.mrb[0].mxu0
        %v3512 = vadd.f32 %v539, %v3511
        %v3513 = vpop.f32.mrb[0].mxu0
        %3514 = vdwg.mxu0
        %v3515 = vmax.f32 %v3507, 0.0
        %v3516 = vmax.f32 %v3512, 0.0
        %v3517 = vadd.f32 %v3343, %v3515
        %v3518 = vadd.f32 %v3344, %v3516
        %s3519 = scalar_lea.vmem %s470, 272 [#allocation2]
        %v3520 = vld [vmem:[%s3519] sm:$0xff]
        %v3521 = vld [vmem:[%s3519 + $0x8] sm:$0xf]
        %v3523 = vsel %vm556, %v3521, 0
        %3525 = vmatprep.subr.mxu0 0.0
        %3526 = vmatpush1.msra.mxu0 %v3520
        %3527 = vmatprep.subr.mxu0 0.0
        %3528 = vmatpush1.msra.mxu0 %v3523
        %3529 = vmatprep.subr.mxu0 0.0
        %3530 = vmatpush1.msra.mxu0 0.0
        %3531 = vmatprep.subr.mxu0 0.0
        %3532 = vmatpush1.msra.mxu0 0.0
        %3533 = vmatprep.subr.mxu0 0.0
        %3534 = vmatpush1.msra.mxu0 0.0
        %3535 = vmatprep.subr.mxu0 0.0
        %3536 = vmatpush1.msra.mxu0 0.0
        %3537 = vmatprep.subr.mxu0 0.0
        %3538 = vmatpush1.msra.mxu0 0.0
        %3539 = vmatprep.subr.mxu0 0.0
        %3540 = vmatpush1.msra.mxu0 0.0
        %3541 = vmatprep.subr.mxu0 0.0
        %3542 = vmatpush1.msra.mxu0 0.0
        %3543 = vmatprep.subr.mxu0 0.0
        %3544 = vmatpush1.msra.mxu0 0.0
        %3545 = vmatprep.subr.mxu0 0.0
        %3546 = vmatpush1.msra.mxu0 0.0
        %3547 = vmatprep.subr.mxu0 0.0
        %3548 = vmatpush1.msra.mxu0 0.0
        %3549 = vmatprep.subr.mxu0 0.0
        %3550 = vmatpush1.msra.mxu0 0.0
        %3551 = vmatprep.subr.mxu0 0.0
        %3552 = vmatpush1.msra.mxu0 0.0
        %3553 = vmatprep.subr.mxu0 0.0
        %3554 = vmatpush1.msra.mxu0 0.0
        %3555 = vmatprep.subr.mxu0 0.0
        %3556 = vmatpush1.msra.mxu0 0.0
        %3557 = vmatprep.subr.mxu0 0.0
        %3558 = vmatpush1.msra.mxu0 0.0
        %3559 = vmatprep.subr.mxu0 0.0
        %3560 = vmatpush1.msra.mxu0 0.0
        %3561 = vmatprep.subr.mxu0 0.0
        %3562 = vmatpush1.msra.mxu0 0.0
        %3563 = vmatprep.subr.mxu0 0.0
        %3564 = vmatpush1.msra.mxu0 0.0
        %3565 = vmatprep.subr.mxu0 0.0
        %3566 = vmatpush1.msra.mxu0 0.0
        %3567 = vmatprep.subr.mxu0 0.0
        %3568 = vmatpush1.msra.mxu0 0.0
        %3569 = vmatprep.subr.mxu0 0.0
        %3570 = vmatpush1.msra.mxu0 0.0
        %3571 = vmatprep.subr.mxu0 0.0
        %3572 = vmatpush1.msra.mxu0 0.0
        %3573 = vmatprep.subr.mxu0 0.0
        %3574 = vmatpush1.msra.mxu0 0.0
        %3575 = vmatprep.subr.mxu0 0.0
        %3576 = vmatpush1.msra.mxu0 0.0
        %3577 = vmatprep.subr.mxu0 0.0
        %3578 = vmatpush1.msra.mxu0 0.0
        %3579 = vmatprep.subr.mxu0 0.0
        %3580 = vmatpush1.msra.mxu0 0.0
        %3581 = vmatprep.subr.mxu0 0.0
        %3582 = vmatpush1.msra.mxu0 0.0
        %3583 = vmatprep.subr.mxu0 0.0
        %3584 = vmatpush1.msra.mxu0 0.0
        %3585 = vmatprep.subr.mxu0 0.0
        %3586 = vmatpush1.msra.mxu0 0.0
        %3587 = vmatprep.subr.mxu0 0.0
        %3588 = vmatpush1.msra.mxu0 0.0
        %3589 = vmatprep.mubr.f32.mxu0 0.0
        %3590 = vmatmul.mubr.f32.gmra.mrb[0].mxu0 %v545
        %v3591 = vpop.f32.mrb[0].mxu0
        %v3592 = vadd.f32 %v512, %v3591
        %v3593 = vpop.f32.mrb[0].mxu0
        %3594 = vmatprep.mubr.f32.mxu0 0.0
        %3595 = vmatmul.mubr.f32.gmra.mrb[0].mxu0 %v548
        %v3596 = vpop.f32.mrb[0].mxu0
        %v3597 = vadd.f32 %v517, %v3596
        %v3598 = vpop.f32.mrb[0].mxu0
        %3599 = vmatprep.mubr.f32.mxu0 0.0
        %3600 = vmatmul.mubr.f32.gmra.mrb[0].mxu0 %v551
        %v3601 = vpop.f32.mrb[0].mxu0
        %v3602 = vadd.f32 %v522, %v3601
        %v3603 = vpop.f32.mrb[0].mxu0
        %3604 = vmatprep.mubr.f32.mxu0 0.0
        %3605 = vmatmul.mubr.f32.gmra.mrb[0].mxu0 %v554
        %v3606 = vpop.f32.mrb[0].mxu0
        %v3607 = vadd.f32 %v527, %v3606
        %v3608 = vpop.f32.mrb[0].mxu0
        %3609 = vdwg.mxu0
        %v3610 = vmax.f32 %v3592, 0.0
        %v3611 = vmax.f32 %v3597, 0.0
        %v3612 = vmax.f32 %v3602, 0.0
        %v3613 = vmax.f32 %v3607, 0.0
        %3614 = vmatprep.subr.mxu0 0.0
        %3615 = vmatpush1.msra.mxu0 %v3610
        %3616 = vmatprep.subr.mxu0 0.0
        %3617 = vmatpush1.msra.mxu0 %v3611
        %3618 = vmatprep.subr.mxu0 0.0
        %3619 = vmatpush1.msra.mxu0 %v3612
        %3620 = vmatprep.subr.mxu0 0.0
        %3621 = vmatpush1.msra.mxu0 %v3613
        %3622 = vmatprep.subr.mxu0 0.0
        %3623 = vmatpush1.msra.mxu0 0.0
        %3624 = vmatprep.subr.mxu0 0.0
        %3625 = vmatpush1.msra.mxu0 0.0
        %3626 = vmatprep.subr.mxu0 0.0
        %3627 = vmatpush1.msra.mxu0 0.0
        %3628 = vmatprep.subr.mxu0 0.0
        %3629 = vmatpush1.msra.mxu0 0.0
        %3630 = vmatprep.subr.mxu0 0.0
        %3631 = vmatpush1.msra.mxu0 0.0
        %3632 = vmatprep.subr.mxu0 0.0
        %3633 = vmatpush1.msra.mxu0 0.0
        %3634 = vmatprep.subr.mxu0 0.0
        %3635 = vmatpush1.msra.mxu0 0.0
        %3636 = vmatprep.subr.mxu0 0.0
        %3637 = vmatpush1.msra.mxu0 0.0
        %3638 = vmatprep.subr.mxu0 0.0
        %3639 = vmatpush1.msra.mxu0 0.0
        %3640 = vmatprep.subr.mxu0 0.0
        %3641 = vmatpush1.msra.mxu0 0.0
        %3642 = vmatprep.subr.mxu0 0.0
        %3643 = vmatpush1.msra.mxu0 0.0
        %3644 = vmatprep.subr.mxu0 0.0
        %3645 = vmatpush1.msra.mxu0 0.0
        %3646 = vmatprep.subr.mxu0 0.0
        %3647 = vmatpush1.msra.mxu0 0.0
        %3648 = vmatprep.subr.mxu0 0.0
        %3649 = vmatpush1.msra.mxu0 0.0
        %3650 = vmatprep.subr.mxu0 0.0
        %3651 = vmatpush1.msra.mxu0 0.0
        %3652 = vmatprep.subr.mxu0 0.0
        %3653 = vmatpush1.msra.mxu0 0.0
        %3654 = vmatprep.subr.mxu0 0.0
        %3655 = vmatpush1.msra.mxu0 0.0
        %3656 = vmatprep.subr.mxu0 0.0
        %3657 = vmatpush1.msra.mxu0 0.0
        %3658 = vmatprep.subr.mxu0 0.0
        %3659 = vmatpush1.msra.mxu0 0.0
        %3660 = vmatprep.subr.mxu0 0.0
        %3661 = vmatpush1.msra.mxu0 0.0
        %3662 = vmatprep.subr.mxu0 0.0
        %3663 = vmatpush1.msra.mxu0 0.0
        %3664 = vmatprep.subr.mxu0 0.0
        %3665 = vmatpush1.msra.mxu0 0.0
        %3666 = vmatprep.subr.mxu0 0.0
        %3667 = vmatpush1.msra.mxu0 0.0
        %3668 = vmatprep.subr.mxu0 0.0
        %3669 = vmatpush1.msra.mxu0 0.0
        %3670 = vmatprep.subr.mxu0 0.0
        %3671 = vmatpush1.msra.mxu0 0.0
        %3672 = vmatprep.subr.mxu0 0.0
        %3673 = vmatpush1.msra.mxu0 0.0
        %3674 = vmatprep.subr.mxu0 0.0
        %3675 = vmatpush1.msra.mxu0 0.0
        %3676 = vmatprep.subr.mxu0 0.0
        %3677 = vmatpush1.msra.mxu0 0.0
        %3678 = vmatprep.mubr.f32.mxu0 0.0
        %3679 = vmatmul.mubr.f32.gmra.mrb[0].mxu0 %v651
        %v3680 = vpop.f32.mrb[0].mxu0
        %v3681 = vadd.f32 %v534, %v3680
        %v3682 = vpop.f32.mrb[0].mxu0
        %3683 = vmatprep.mubr.f32.mxu0 0.0
        %3684 = vmatmul.mubr.f32.gmra.mrb[0].mxu0 %v654
        %v3685 = vpop.f32.mrb[0].mxu0
        %v3686 = vadd.f32 %v539, %v3685
        %v3687 = vpop.f32.mrb[0].mxu0
        %3688 = vdwg.mxu0
        %v3689 = vmax.f32 %v3681, 0.0
        %v3690 = vmax.f32 %v3686, 0.0
        %v3691 = vadd.f32 %v3517, %v3689
        %v3692 = vadd.f32 %v3518, %v3690
        %s3693 = scalar_lea.vmem %s470, 288 [#allocation2]
        %v3694 = vld [vmem:[%s3693] sm:$0xff]
        %v3695 = vld [vmem:[%s3693 + $0x8] sm:$0xf]
        %v3697 = vsel %vm556, %v3695, 0
        %3699 = vmatprep.subr.mxu0 0.0
        %3700 = vmatpush1.msra.mxu0 %v3694
        %3701 = vmatprep.subr.mxu0 0.0
        %3702 = vmatpush1.msra.mxu0 %v3697
        %3703 = vmatprep.subr.mxu0 0.0
        %3704 = vmatpush1.msra.mxu0 0.0
        %3705 = vmatprep.subr.mxu0 0.0
        %3706 = vmatpush1.msra.mxu0 0.0
        %3707 = vmatprep.subr.mxu0 0.0
        %3708 = vmatpush1.msra.mxu0 0.0
        %3709 = vmatprep.subr.mxu0 0.0
        %3710 = vmatpush1.msra.mxu0 0.0
        %3711 = vmatprep.subr.mxu0 0.0
        %3712 = vmatpush1.msra.mxu0 0.0
        %3713 = vmatprep.subr.mxu0 0.0
        %3714 = vmatpush1.msra.mxu0 0.0
        %3715 = vmatprep.subr.mxu0 0.0
        %3716 = vmatpush1.msra.mxu0 0.0
        %3717 = vmatprep.subr.mxu0 0.0
        %3718 = vmatpush1.msra.mxu0 0.0
        %3719 = vmatprep.subr.mxu0 0.0
        %3720 = vmatpush1.msra.mxu0 0.0
        %3721 = vmatprep.subr.mxu0 0.0
        %3722 = vmatpush1.msra.mxu0 0.0
        %3723 = vmatprep.subr.mxu0 0.0
        %3724 = vmatpush1.msra.mxu0 0.0
        %3725 = vmatprep.subr.mxu0 0.0
        %3726 = vmatpush1.msra.mxu0 0.0
        %3727 = vmatprep.subr.mxu0 0.0
        %3728 = vmatpush1.msra.mxu0 0.0
        %3729 = vmatprep.subr.mxu0 0.0
        %3730 = vmatpush1.msra.mxu0 0.0
        %3731 = vmatprep.subr.mxu0 0.0
        %3732 = vmatpush1.msra.mxu0 0.0
        %3733 = vmatprep.subr.mxu0 0.0
        %3734 = vmatpush1.msra.mxu0 0.0
        %3735 = vmatprep.subr.mxu0 0.0
        %3736 = vmatpush1.msra.mxu0 0.0
        %3737 = vmatprep.subr.mxu0 0.0
        %3738 = vmatpush1.msra.mxu0 0.0
        %3739 = vmatprep.subr.mxu0 0.0
        %3740 = vmatpush1.msra.mxu0 0.0
        %3741 = vmatprep.subr.mxu0 0.0
        %3742 = vmatpush1.msra.mxu0 0.0
        %3743 = vmatprep.subr.mxu0 0.0
        %3744 = vmatpush1.msra.mxu0 0.0
        %3745 = vmatprep.subr.mxu0 0.0
        %3746 = vmatpush1.msra.mxu0 0.0
        %3747 = vmatprep.subr.mxu0 0.0
        %3748 = vmatpush1.msra.mxu0 0.0
        %3749 = vmatprep.subr.mxu0 0.0
        %3750 = vmatpush1.msra.mxu0 0.0
        %3751 = vmatprep.subr.mxu0 0.0
        %3752 = vmatpush1.msra.mxu0 0.0
        %3753 = vmatprep.subr.mxu0 0.0
        %3754 = vmatpush1.msra.mxu0 0.0
        %3755 = vmatprep.subr.mxu0 0.0
        %3756 = vmatpush1.msra.mxu0 0.0
        %3757 = vmatprep.subr.mxu0 0.0
        %3758 = vmatpush1.msra.mxu0 0.0
        %3759 = vmatprep.subr.mxu0 0.0
        %3760 = vmatpush1.msra.mxu0 0.0
        %3761 = vmatprep.subr.mxu0 0.0
        %3762 = vmatpush1.msra.mxu0 0.0
        %3763 = vmatprep.mubr.f32.mxu0 0.0
        %3764 = vmatmul.mubr.f32.gmra.mrb[0].mxu0 %v545
        %v3765 = vpop.f32.mrb[0].mxu0
        %v3766 = vadd.f32 %v512, %v3765
        %v3767 = vpop.f32.mrb[0].mxu0
        %3768 = vmatprep.mubr.f32.mxu0 0.0
        %3769 = vmatmul.mubr.f32.gmra.mrb[0].mxu0 %v548
        %v3770 = vpop.f32.mrb[0].mxu0
        %v3771 = vadd.f32 %v517, %v3770
        %v3772 = vpop.f32.mrb[0].mxu0
        %3773 = vmatprep.mubr.f32.mxu0 0.0
        %3774 = vmatmul.mubr.f32.gmra.mrb[0].mxu0 %v551
        %v3775 = vpop.f32.mrb[0].mxu0
        %v3776 = vadd.f32 %v522, %v3775
        %v3777 = vpop.f32.mrb[0].mxu0
        %3778 = vmatprep.mubr.f32.mxu0 0.0
        %3779 = vmatmul.mubr.f32.gmra.mrb[0].mxu0 %v554
        %v3780 = vpop.f32.mrb[0].mxu0
        %v3781 = vadd.f32 %v527, %v3780
        %v3782 = vpop.f32.mrb[0].mxu0
        %3783 = vdwg.mxu0
        %v3784 = vmax.f32 %v3766, 0.0
        %v3785 = vmax.f32 %v3771, 0.0
        %v3786 = vmax.f32 %v3776, 0.0
        %v3787 = vmax.f32 %v3781, 0.0
        %3788 = vmatprep.subr.mxu0 0.0
        %3789 = vmatpush1.msra.mxu0 %v3784
        %3790 = vmatprep.subr.mxu0 0.0
        %3791 = vmatpush1.msra.mxu0 %v3785
        %3792 = vmatprep.subr.mxu0 0.0
        %3793 = vmatpush1.msra.mxu0 %v3786
        %3794 = vmatprep.subr.mxu0 0.0
        %3795 = vmatpush1.msra.mxu0 %v3787
        %3796 = vmatprep.subr.mxu0 0.0
        %3797 = vmatpush1.msra.mxu0 0.0
        %3798 = vmatprep.subr.mxu0 0.0
        %3799 = vmatpush1.msra.mxu0 0.0
        %3800 = vmatprep.subr.mxu0 0.0
        %3801 = vmatpush1.msra.mxu0 0.0
        %3802 = vmatprep.subr.mxu0 0.0
        %3803 = vmatpush1.msra.mxu0 0.0
        %3804 = vmatprep.subr.mxu0 0.0
        %3805 = vmatpush1.msra.mxu0 0.0
        %3806 = vmatprep.subr.mxu0 0.0
        %3807 = vmatpush1.msra.mxu0 0.0
        %3808 = vmatprep.subr.mxu0 0.0
        %3809 = vmatpush1.msra.mxu0 0.0
        %3810 = vmatprep.subr.mxu0 0.0
        %3811 = vmatpush1.msra.mxu0 0.0
        %3812 = vmatprep.subr.mxu0 0.0
        %3813 = vmatpush1.msra.mxu0 0.0
        %3814 = vmatprep.subr.mxu0 0.0
        %3815 = vmatpush1.msra.mxu0 0.0
        %3816 = vmatprep.subr.mxu0 0.0
        %3817 = vmatpush1.msra.mxu0 0.0
        %3818 = vmatprep.subr.mxu0 0.0
        %3819 = vmatpush1.msra.mxu0 0.0
        %3820 = vmatprep.subr.mxu0 0.0
        %3821 = vmatpush1.msra.mxu0 0.0
        %3822 = vmatprep.subr.mxu0 0.0
        %3823 = vmatpush1.msra.mxu0 0.0
        %3824 = vmatprep.subr.mxu0 0.0
        %3825 = vmatpush1.msra.mxu0 0.0
        %3826 = vmatprep.subr.mxu0 0.0
        %3827 = vmatpush1.msra.mxu0 0.0
        %3828 = vmatprep.subr.mxu0 0.0
        %3829 = vmatpush1.msra.mxu0 0.0
        %3830 = vmatprep.subr.mxu0 0.0
        %3831 = vmatpush1.msra.mxu0 0.0
        %3832 = vmatprep.subr.mxu0 0.0
        %3833 = vmatpush1.msra.mxu0 0.0
        %3834 = vmatprep.subr.mxu0 0.0
        %3835 = vmatpush1.msra.mxu0 0.0
        %3836 = vmatprep.subr.mxu0 0.0
        %3837 = vmatpush1.msra.mxu0 0.0
        %3838 = vmatprep.subr.mxu0 0.0
        %3839 = vmatpush1.msra.mxu0 0.0
        %3840 = vmatprep.subr.mxu0 0.0
        %3841 = vmatpush1.msra.mxu0 0.0
        %3842 = vmatprep.subr.mxu0 0.0
        %3843 = vmatpush1.msra.mxu0 0.0
        %3844 = vmatprep.subr.mxu0 0.0
        %3845 = vmatpush1.msra.mxu0 0.0
        %3846 = vmatprep.subr.mxu0 0.0
        %3847 = vmatpush1.msra.mxu0 0.0
        %3848 = vmatprep.subr.mxu0 0.0
        %3849 = vmatpush1.msra.mxu0 0.0
        %3850 = vmatprep.subr.mxu0 0.0
        %3851 = vmatpush1.msra.mxu0 0.0
        %3852 = vmatprep.mubr.f32.mxu0 0.0
        %3853 = vmatmul.mubr.f32.gmra.mrb[0].mxu0 %v651
        %v3854 = vpop.f32.mrb[0].mxu0
        %v3855 = vadd.f32 %v534, %v3854
        %v3856 = vpop.f32.mrb[0].mxu0
        %3857 = vmatprep.mubr.f32.mxu0 0.0
        %3858 = vmatmul.mubr.f32.gmra.mrb[0].mxu0 %v654
        %v3859 = vpop.f32.mrb[0].mxu0
        %v3860 = vadd.f32 %v539, %v3859
        %v3861 = vpop.f32.mrb[0].mxu0
        %3862 = vdwg.mxu0
        %v3863 = vmax.f32 %v3855, 0.0
        %v3864 = vmax.f32 %v3860, 0.0
        %v3865 = vadd.f32 %v3691, %v3863
        %v3866 = vadd.f32 %v3692, %v3864
        %s3867 = scalar_lea.vmem %s470, 304 [#allocation2]
        %v3868 = vld [vmem:[%s3867] sm:$0xff]
        %v3869 = vld [vmem:[%s3867 + $0x8] sm:$0xf]
        %v3871 = vsel %vm556, %v3869, 0
        %3873 = vmatprep.subr.mxu0 0.0
        %3874 = vmatpush1.msra.mxu0 %v3868
        %3875 = vmatprep.subr.mxu0 0.0
        %3876 = vmatpush1.msra.mxu0 %v3871
        %3877 = vmatprep.subr.mxu0 0.0
        %3878 = vmatpush1.msra.mxu0 0.0
        %3879 = vmatprep.subr.mxu0 0.0
        %3880 = vmatpush1.msra.mxu0 0.0
        %3881 = vmatprep.subr.mxu0 0.0
        %3882 = vmatpush1.msra.mxu0 0.0
        %3883 = vmatprep.subr.mxu0 0.0
        %3884 = vmatpush1.msra.mxu0 0.0
        %3885 = vmatprep.subr.mxu0 0.0
        %3886 = vmatpush1.msra.mxu0 0.0
        %3887 = vmatprep.subr.mxu0 0.0
        %3888 = vmatpush1.msra.mxu0 0.0
        %3889 = vmatprep.subr.mxu0 0.0
        %3890 = vmatpush1.msra.mxu0 0.0
        %3891 = vmatprep.subr.mxu0 0.0
        %3892 = vmatpush1.msra.mxu0 0.0
        %3893 = vmatprep.subr.mxu0 0.0
        %3894 = vmatpush1.msra.mxu0 0.0
        %3895 = vmatprep.subr.mxu0 0.0
        %3896 = vmatpush1.msra.mxu0 0.0
        %3897 = vmatprep.subr.mxu0 0.0
        %3898 = vmatpush1.msra.mxu0 0.0
        %3899 = vmatprep.subr.mxu0 0.0
        %3900 = vmatpush1.msra.mxu0 0.0
        %3901 = vmatprep.subr.mxu0 0.0
        %3902 = vmatpush1.msra.mxu0 0.0
        %3903 = vmatprep.subr.mxu0 0.0
        %3904 = vmatpush1.msra.mxu0 0.0
        %3905 = vmatprep.subr.mxu0 0.0
        %3906 = vmatpush1.msra.mxu0 0.0
        %3907 = vmatprep.subr.mxu0 0.0
        %3908 = vmatpush1.msra.mxu0 0.0
        %3909 = vmatprep.subr.mxu0 0.0
        %3910 = vmatpush1.msra.mxu0 0.0
        %3911 = vmatprep.subr.mxu0 0.0
        %3912 = vmatpush1.msra.mxu0 0.0
        %3913 = vmatprep.subr.mxu0 0.0
        %3914 = vmatpush1.msra.mxu0 0.0
        %3915 = vmatprep.subr.mxu0 0.0
        %3916 = vmatpush1.msra.mxu0 0.0
        %3917 = vmatprep.subr.mxu0 0.0
        %3918 = vmatpush1.msra.mxu0 0.0
        %3919 = vmatprep.subr.mxu0 0.0
        %3920 = vmatpush1.msra.mxu0 0.0
        %3921 = vmatprep.subr.mxu0 0.0
        %3922 = vmatpush1.msra.mxu0 0.0
        %3923 = vmatprep.subr.mxu0 0.0
        %3924 = vmatpush1.msra.mxu0 0.0
        %3925 = vmatprep.subr.mxu0 0.0
        %3926 = vmatpush1.msra.mxu0 0.0
        %3927 = vmatprep.subr.mxu0 0.0
        %3928 = vmatpush1.msra.mxu0 0.0
        %3929 = vmatprep.subr.mxu0 0.0
        %3930 = vmatpush1.msra.mxu0 0.0
        %3931 = vmatprep.subr.mxu0 0.0
        %3932 = vmatpush1.msra.mxu0 0.0
        %3933 = vmatprep.subr.mxu0 0.0
        %3934 = vmatpush1.msra.mxu0 0.0
        %3935 = vmatprep.subr.mxu0 0.0
        %3936 = vmatpush1.msra.mxu0 0.0
        %3937 = vmatprep.mubr.f32.mxu0 0.0
        %3938 = vmatmul.mubr.f32.gmra.mrb[0].mxu0 %v545
        %v3939 = vpop.f32.mrb[0].mxu0
        %v3940 = vadd.f32 %v512, %v3939
        %v3941 = vpop.f32.mrb[0].mxu0
        %3942 = vmatprep.mubr.f32.mxu0 0.0
        %3943 = vmatmul.mubr.f32.gmra.mrb[0].mxu0 %v548
        %v3944 = vpop.f32.mrb[0].mxu0
        %v3945 = vadd.f32 %v517, %v3944
        %v3946 = vpop.f32.mrb[0].mxu0
        %3947 = vmatprep.mubr.f32.mxu0 0.0
        %3948 = vmatmul.mubr.f32.gmra.mrb[0].mxu0 %v551
        %v3949 = vpop.f32.mrb[0].mxu0
        %v3950 = vadd.f32 %v522, %v3949
        %v3951 = vpop.f32.mrb[0].mxu0
        %3952 = vmatprep.mubr.f32.mxu0 0.0
        %3953 = vmatmul.mubr.f32.gmra.mrb[0].mxu0 %v554
        %v3954 = vpop.f32.mrb[0].mxu0
        %v3955 = vadd.f32 %v527, %v3954
        %v3956 = vpop.f32.mrb[0].mxu0
        %3957 = vdwg.mxu0
        %v3958 = vmax.f32 %v3940, 0.0
        %v3959 = vmax.f32 %v3945, 0.0
        %v3960 = vmax.f32 %v3950, 0.0
        %v3961 = vmax.f32 %v3955, 0.0
        %3962 = vmatprep.subr.mxu0 0.0
        %3963 = vmatpush1.msra.mxu0 %v3958
        %3964 = vmatprep.subr.mxu0 0.0
        %3965 = vmatpush1.msra.mxu0 %v3959
        %3966 = vmatprep.subr.mxu0 0.0
        %3967 = vmatpush1.msra.mxu0 %v3960
        %3968 = vmatprep.subr.mxu0 0.0
        %3969 = vmatpush1.msra.mxu0 %v3961
        %3970 = vmatprep.subr.mxu0 0.0
        %3971 = vmatpush1.msra.mxu0 0.0
        %3972 = vmatprep.subr.mxu0 0.0
        %3973 = vmatpush1.msra.mxu0 0.0
        %3974 = vmatprep.subr.mxu0 0.0
        %3975 = vmatpush1.msra.mxu0 0.0
        %3976 = vmatprep.subr.mxu0 0.0
        %3977 = vmatpush1.msra.mxu0 0.0
        %3978 = vmatprep.subr.mxu0 0.0
        %3979 = vmatpush1.msra.mxu0 0.0
        %3980 = vmatprep.subr.mxu0 0.0
        %3981 = vmatpush1.msra.mxu0 0.0
        %3982 = vmatprep.subr.mxu0 0.0
        %3983 = vmatpush1.msra.mxu0 0.0
        %3984 = vmatprep.subr.mxu0 0.0
        %3985 = vmatpush1.msra.mxu0 0.0
        %3986 = vmatprep.subr.mxu0 0.0
        %3987 = vmatpush1.msra.mxu0 0.0
        %3988 = vmatprep.subr.mxu0 0.0
        %3989 = vmatpush1.msra.mxu0 0.0
        %3990 = vmatprep.subr.mxu0 0.0
        %3991 = vmatpush1.msra.mxu0 0.0
        %3992 = vmatprep.subr.mxu0 0.0
        %3993 = vmatpush1.msra.mxu0 0.0
        %3994 = vmatprep.subr.mxu0 0.0
        %3995 = vmatpush1.msra.mxu0 0.0
        %3996 = vmatprep.subr.mxu0 0.0
        %3997 = vmatpush1.msra.mxu0 0.0
        %3998 = vmatprep.subr.mxu0 0.0
        %3999 = vmatpush1.msra.mxu0 0.0
        %4000 = vmatprep.subr.mxu0 0.0
        %4001 = vmatpush1.msra.mxu0 0.0
        %4002 = vmatprep.subr.mxu0 0.0
        %4003 = vmatpush1.msra.mxu0 0.0
        %4004 = vmatprep.subr.mxu0 0.0
        %4005 = vmatpush1.msra.mxu0 0.0
        %4006 = vmatprep.subr.mxu0 0.0
        %4007 = vmatpush1.msra.mxu0 0.0
        %4008 = vmatprep.subr.mxu0 0.0
        %4009 = vmatpush1.msra.mxu0 0.0
        %4010 = vmatprep.subr.mxu0 0.0
        %4011 = vmatpush1.msra.mxu0 0.0
        %4012 = vmatprep.subr.mxu0 0.0
        %4013 = vmatpush1.msra.mxu0 0.0
        %4014 = vmatprep.subr.mxu0 0.0
        %4015 = vmatpush1.msra.mxu0 0.0
        %4016 = vmatprep.subr.mxu0 0.0
        %4017 = vmatpush1.msra.mxu0 0.0
        %4018 = vmatprep.subr.mxu0 0.0
        %4019 = vmatpush1.msra.mxu0 0.0
        %4020 = vmatprep.subr.mxu0 0.0
        %4021 = vmatpush1.msra.mxu0 0.0
        %4022 = vmatprep.subr.mxu0 0.0
        %4023 = vmatpush1.msra.mxu0 0.0
        %4024 = vmatprep.subr.mxu0 0.0
        %4025 = vmatpush1.msra.mxu0 0.0
        %4026 = vmatprep.mubr.f32.mxu0 0.0
        %4027 = vmatmul.mubr.f32.gmra.mrb[0].mxu0 %v651
        %v4028 = vpop.f32.mrb[0].mxu0
        %v4029 = vadd.f32 %v534, %v4028
        %v4030 = vpop.f32.mrb[0].mxu0
        %4031 = vmatprep.mubr.f32.mxu0 0.0
        %4032 = vmatmul.mubr.f32.gmra.mrb[0].mxu0 %v654
        %v4033 = vpop.f32.mrb[0].mxu0
        %v4034 = vadd.f32 %v539, %v4033
        %v4035 = vpop.f32.mrb[0].mxu0
        %4036 = vdwg.mxu0
        %v4037 = vmax.f32 %v4029, 0.0
        %v4038 = vmax.f32 %v4034, 0.0
        %v4039 = vadd.f32 %v3865, %v4037
        %v4040 = vadd.f32 %v3866, %v4038
        %s4041 = scalar_lea.vmem %s470, 320 [#allocation2]
        %v4042 = vld [vmem:[%s4041] sm:$0xff]
        %v4043 = vld [vmem:[%s4041 + $0x8] sm:$0xf]
        %v4045 = vsel %vm556, %v4043, 0
        %4047 = vmatprep.subr.mxu0 0.0
        %4048 = vmatpush1.msra.mxu0 %v4042
        %4049 = vmatprep.subr.mxu0 0.0
        %4050 = vmatpush1.msra.mxu0 %v4045
        %4051 = vmatprep.subr.mxu0 0.0
        %4052 = vmatpush1.msra.mxu0 0.0
        %4053 = vmatprep.subr.mxu0 0.0
        %4054 = vmatpush1.msra.mxu0 0.0
        %4055 = vmatprep.subr.mxu0 0.0
        %4056 = vmatpush1.msra.mxu0 0.0
        %4057 = vmatprep.subr.mxu0 0.0
        %4058 = vmatpush1.msra.mxu0 0.0
        %4059 = vmatprep.subr.mxu0 0.0
        %4060 = vmatpush1.msra.mxu0 0.0
        %4061 = vmatprep.subr.mxu0 0.0
        %4062 = vmatpush1.msra.mxu0 0.0
        %4063 = vmatprep.subr.mxu0 0.0
        %4064 = vmatpush1.msra.mxu0 0.0
        %4065 = vmatprep.subr.mxu0 0.0
        %4066 = vmatpush1.msra.mxu0 0.0
        %4067 = vmatprep.subr.mxu0 0.0
        %4068 = vmatpush1.msra.mxu0 0.0
        %4069 = vmatprep.subr.mxu0 0.0
        %4070 = vmatpush1.msra.mxu0 0.0
        %4071 = vmatprep.subr.mxu0 0.0
        %4072 = vmatpush1.msra.mxu0 0.0
        %4073 = vmatprep.subr.mxu0 0.0
        %4074 = vmatpush1.msra.mxu0 0.0
        %4075 = vmatprep.subr.mxu0 0.0
        %4076 = vmatpush1.msra.mxu0 0.0
        %4077 = vmatprep.subr.mxu0 0.0
        %4078 = vmatpush1.msra.mxu0 0.0
        %4079 = vmatprep.subr.mxu0 0.0
        %4080 = vmatpush1.msra.mxu0 0.0
        %4081 = vmatprep.subr.mxu0 0.0
        %4082 = vmatpush1.msra.mxu0 0.0
        %4083 = vmatprep.subr.mxu0 0.0
        %4084 = vmatpush1.msra.mxu0 0.0
        %4085 = vmatprep.subr.mxu0 0.0
        %4086 = vmatpush1.msra.mxu0 0.0
        %4087 = vmatprep.subr.mxu0 0.0
        %4088 = vmatpush1.msra.mxu0 0.0
        %4089 = vmatprep.subr.mxu0 0.0
        %4090 = vmatpush1.msra.mxu0 0.0
        %4091 = vmatprep.subr.mxu0 0.0
        %4092 = vmatpush1.msra.mxu0 0.0
        %4093 = vmatprep.subr.mxu0 0.0
        %4094 = vmatpush1.msra.mxu0 0.0
        %4095 = vmatprep.subr.mxu0 0.0
        %4096 = vmatpush1.msra.mxu0 0.0
        %4097 = vmatprep.subr.mxu0 0.0
        %4098 = vmatpush1.msra.mxu0 0.0
        %4099 = vmatprep.subr.mxu0 0.0
        %4100 = vmatpush1.msra.mxu0 0.0
        %4101 = vmatprep.subr.mxu0 0.0
        %4102 = vmatpush1.msra.mxu0 0.0
        %4103 = vmatprep.subr.mxu0 0.0
        %4104 = vmatpush1.msra.mxu0 0.0
        %4105 = vmatprep.subr.mxu0 0.0
        %4106 = vmatpush1.msra.mxu0 0.0
        %4107 = vmatprep.subr.mxu0 0.0
        %4108 = vmatpush1.msra.mxu0 0.0
        %4109 = vmatprep.subr.mxu0 0.0
        %4110 = vmatpush1.msra.mxu0 0.0
        %4111 = vmatprep.mubr.f32.mxu0 0.0
        %4112 = vmatmul.mubr.f32.gmra.mrb[0].mxu0 %v545
        %v4113 = vpop.f32.mrb[0].mxu0
        %v4114 = vadd.f32 %v512, %v4113
        %v4115 = vpop.f32.mrb[0].mxu0
        %4116 = vmatprep.mubr.f32.mxu0 0.0
        %4117 = vmatmul.mubr.f32.gmra.mrb[0].mxu0 %v548
        %v4118 = vpop.f32.mrb[0].mxu0
        %v4119 = vadd.f32 %v517, %v4118
        %v4120 = vpop.f32.mrb[0].mxu0
        %4121 = vmatprep.mubr.f32.mxu0 0.0
        %4122 = vmatmul.mubr.f32.gmra.mrb[0].mxu0 %v551
        %v4123 = vpop.f32.mrb[0].mxu0
        %v4124 = vadd.f32 %v522, %v4123
        %v4125 = vpop.f32.mrb[0].mxu0
        %4126 = vmatprep.mubr.f32.mxu0 0.0
        %4127 = vmatmul.mubr.f32.gmra.mrb[0].mxu0 %v554
        %v4128 = vpop.f32.mrb[0].mxu0
        %v4129 = vadd.f32 %v527, %v4128
        %v4130 = vpop.f32.mrb[0].mxu0
        %4131 = vdwg.mxu0
        %v4132 = vmax.f32 %v4114, 0.0
        %v4133 = vmax.f32 %v4119, 0.0
        %v4134 = vmax.f32 %v4124, 0.0
        %v4135 = vmax.f32 %v4129, 0.0
        %4136 = vmatprep.subr.mxu0 0.0
        %4137 = vmatpush1.msra.mxu0 %v4132
        %4138 = vmatprep.subr.mxu0 0.0
        %4139 = vmatpush1.msra.mxu0 %v4133
        %4140 = vmatprep.subr.mxu0 0.0
        %4141 = vmatpush1.msra.mxu0 %v4134
        %4142 = vmatprep.subr.mxu0 0.0
        %4143 = vmatpush1.msra.mxu0 %v4135
        %4144 = vmatprep.subr.mxu0 0.0
        %4145 = vmatpush1.msra.mxu0 0.0
        %4146 = vmatprep.subr.mxu0 0.0
        %4147 = vmatpush1.msra.mxu0 0.0
        %4148 = vmatprep.subr.mxu0 0.0
        %4149 = vmatpush1.msra.mxu0 0.0
        %4150 = vmatprep.subr.mxu0 0.0
        %4151 = vmatpush1.msra.mxu0 0.0
        %4152 = vmatprep.subr.mxu0 0.0
        %4153 = vmatpush1.msra.mxu0 0.0
        %4154 = vmatprep.subr.mxu0 0.0
        %4155 = vmatpush1.msra.mxu0 0.0
        %4156 = vmatprep.subr.mxu0 0.0
        %4157 = vmatpush1.msra.mxu0 0.0
        %4158 = vmatprep.subr.mxu0 0.0
        %4159 = vmatpush1.msra.mxu0 0.0
        %4160 = vmatprep.subr.mxu0 0.0
        %4161 = vmatpush1.msra.mxu0 0.0
        %4162 = vmatprep.subr.mxu0 0.0
        %4163 = vmatpush1.msra.mxu0 0.0
        %4164 = vmatprep.subr.mxu0 0.0
        %4165 = vmatpush1.msra.mxu0 0.0
        %4166 = vmatprep.subr.mxu0 0.0
        %4167 = vmatpush1.msra.mxu0 0.0
        %4168 = vmatprep.subr.mxu0 0.0
        %4169 = vmatpush1.msra.mxu0 0.0
        %4170 = vmatprep.subr.mxu0 0.0
        %4171 = vmatpush1.msra.mxu0 0.0
        %4172 = vmatprep.subr.mxu0 0.0
        %4173 = vmatpush1.msra.mxu0 0.0
        %4174 = vmatprep.subr.mxu0 0.0
        %4175 = vmatpush1.msra.mxu0 0.0
        %4176 = vmatprep.subr.mxu0 0.0
        %4177 = vmatpush1.msra.mxu0 0.0
        %4178 = vmatprep.subr.mxu0 0.0
        %4179 = vmatpush1.msra.mxu0 0.0
        %4180 = vmatprep.subr.mxu0 0.0
        %4181 = vmatpush1.msra.mxu0 0.0
        %4182 = vmatprep.subr.mxu0 0.0
        %4183 = vmatpush1.msra.mxu0 0.0
        %4184 = vmatprep.subr.mxu0 0.0
        %4185 = vmatpush1.msra.mxu0 0.0
        %4186 = vmatprep.subr.mxu0 0.0
        %4187 = vmatpush1.msra.mxu0 0.0
        %4188 = vmatprep.subr.mxu0 0.0
        %4189 = vmatpush1.msra.mxu0 0.0
        %4190 = vmatprep.subr.mxu0 0.0
        %4191 = vmatpush1.msra.mxu0 0.0
        %4192 = vmatprep.subr.mxu0 0.0
        %4193 = vmatpush1.msra.mxu0 0.0
        %4194 = vmatprep.subr.mxu0 0.0
        %4195 = vmatpush1.msra.mxu0 0.0
        %4196 = vmatprep.subr.mxu0 0.0
        %4197 = vmatpush1.msra.mxu0 0.0
        %4198 = vmatprep.subr.mxu0 0.0
        %4199 = vmatpush1.msra.mxu0 0.0
        %4200 = vmatprep.mubr.f32.mxu0 0.0
        %4201 = vmatmul.mubr.f32.gmra.mrb[0].mxu0 %v651
        %v4202 = vpop.f32.mrb[0].mxu0
        %v4203 = vadd.f32 %v534, %v4202
        %v4204 = vpop.f32.mrb[0].mxu0
        %4205 = vmatprep.mubr.f32.mxu0 0.0
        %4206 = vmatmul.mubr.f32.gmra.mrb[0].mxu0 %v654
        %v4207 = vpop.f32.mrb[0].mxu0
        %v4208 = vadd.f32 %v539, %v4207
        %v4209 = vpop.f32.mrb[0].mxu0
        %4210 = vdwg.mxu0
        %v4211 = vmax.f32 %v4203, 0.0
        %v4212 = vmax.f32 %v4208, 0.0
        %v4213 = vadd.f32 %v4039, %v4211
        %v4214 = vadd.f32 %v4040, %v4212
        %s4215 = scalar_lea.vmem %s470, 336 [#allocation2]
        %v4216 = vld [vmem:[%s4215] sm:$0xff]
        %v4217 = vld [vmem:[%s4215 + $0x8] sm:$0xf]
        %v4219 = vsel %vm556, %v4217, 0
        %4221 = vmatprep.subr.mxu0 0.0
        %4222 = vmatpush1.msra.mxu0 %v4216
        %4223 = vmatprep.subr.mxu0 0.0
        %4224 = vmatpush1.msra.mxu0 %v4219
        %4225 = vmatprep.subr.mxu0 0.0
        %4226 = vmatpush1.msra.mxu0 0.0
        %4227 = vmatprep.subr.mxu0 0.0
        %4228 = vmatpush1.msra.mxu0 0.0
        %4229 = vmatprep.subr.mxu0 0.0
        %4230 = vmatpush1.msra.mxu0 0.0
        %4231 = vmatprep.subr.mxu0 0.0
        %4232 = vmatpush1.msra.mxu0 0.0
        %4233 = vmatprep.subr.mxu0 0.0
        %4234 = vmatpush1.msra.mxu0 0.0
        %4235 = vmatprep.subr.mxu0 0.0
        %4236 = vmatpush1.msra.mxu0 0.0
        %4237 = vmatprep.subr.mxu0 0.0
        %4238 = vmatpush1.msra.mxu0 0.0
        %4239 = vmatprep.subr.mxu0 0.0
        %4240 = vmatpush1.msra.mxu0 0.0
        %4241 = vmatprep.subr.mxu0 0.0
        %4242 = vmatpush1.msra.mxu0 0.0
        %4243 = vmatprep.subr.mxu0 0.0
        %4244 = vmatpush1.msra.mxu0 0.0
        %4245 = vmatprep.subr.mxu0 0.0
        %4246 = vmatpush1.msra.mxu0 0.0
        %4247 = vmatprep.subr.mxu0 0.0
        %4248 = vmatpush1.msra.mxu0 0.0
        %4249 = vmatprep.subr.mxu0 0.0
        %4250 = vmatpush1.msra.mxu0 0.0
        %4251 = vmatprep.subr.mxu0 0.0
        %4252 = vmatpush1.msra.mxu0 0.0
        %4253 = vmatprep.subr.mxu0 0.0
        %4254 = vmatpush1.msra.mxu0 0.0
        %4255 = vmatprep.subr.mxu0 0.0
        %4256 = vmatpush1.msra.mxu0 0.0
        %4257 = vmatprep.subr.mxu0 0.0
        %4258 = vmatpush1.msra.mxu0 0.0
        %4259 = vmatprep.subr.mxu0 0.0
        %4260 = vmatpush1.msra.mxu0 0.0
        %4261 = vmatprep.subr.mxu0 0.0
        %4262 = vmatpush1.msra.mxu0 0.0
        %4263 = vmatprep.subr.mxu0 0.0
        %4264 = vmatpush1.msra.mxu0 0.0
        %4265 = vmatprep.subr.mxu0 0.0
        %4266 = vmatpush1.msra.mxu0 0.0
        %4267 = vmatprep.subr.mxu0 0.0
        %4268 = vmatpush1.msra.mxu0 0.0
        %4269 = vmatprep.subr.mxu0 0.0
        %4270 = vmatpush1.msra.mxu0 0.0
        %4271 = vmatprep.subr.mxu0 0.0
        %4272 = vmatpush1.msra.mxu0 0.0
        %4273 = vmatprep.subr.mxu0 0.0
        %4274 = vmatpush1.msra.mxu0 0.0
        %4275 = vmatprep.subr.mxu0 0.0
        %4276 = vmatpush1.msra.mxu0 0.0
        %4277 = vmatprep.subr.mxu0 0.0
        %4278 = vmatpush1.msra.mxu0 0.0
        %4279 = vmatprep.subr.mxu0 0.0
        %4280 = vmatpush1.msra.mxu0 0.0
        %4281 = vmatprep.subr.mxu0 0.0
        %4282 = vmatpush1.msra.mxu0 0.0
        %4283 = vmatprep.subr.mxu0 0.0
        %4284 = vmatpush1.msra.mxu0 0.0
        %4285 = vmatprep.mubr.f32.mxu0 0.0
        %4286 = vmatmul.mubr.f32.gmra.mrb[0].mxu0 %v545
        %v4287 = vpop.f32.mrb[0].mxu0
        %v4288 = vadd.f32 %v512, %v4287
        %v4289 = vpop.f32.mrb[0].mxu0
        %4290 = vmatprep.mubr.f32.mxu0 0.0
        %4291 = vmatmul.mubr.f32.gmra.mrb[0].mxu0 %v548
        %v4292 = vpop.f32.mrb[0].mxu0
        %v4293 = vadd.f32 %v517, %v4292
        %v4294 = vpop.f32.mrb[0].mxu0
        %4295 = vmatprep.mubr.f32.mxu0 0.0
        %4296 = vmatmul.mubr.f32.gmra.mrb[0].mxu0 %v551
        %v4297 = vpop.f32.mrb[0].mxu0
        %v4298 = vadd.f32 %v522, %v4297
        %v4299 = vpop.f32.mrb[0].mxu0
        %4300 = vmatprep.mubr.f32.mxu0 0.0
        %4301 = vmatmul.mubr.f32.gmra.mrb[0].mxu0 %v554
        %v4302 = vpop.f32.mrb[0].mxu0
        %v4303 = vadd.f32 %v527, %v4302
        %v4304 = vpop.f32.mrb[0].mxu0
        %4305 = vdwg.mxu0
        %v4306 = vmax.f32 %v4288, 0.0
        %v4307 = vmax.f32 %v4293, 0.0
        %v4308 = vmax.f32 %v4298, 0.0
        %v4309 = vmax.f32 %v4303, 0.0
        %4310 = vmatprep.subr.mxu0 0.0
        %4311 = vmatpush1.msra.mxu0 %v4306
        %4312 = vmatprep.subr.mxu0 0.0
        %4313 = vmatpush1.msra.mxu0 %v4307
        %4314 = vmatprep.subr.mxu0 0.0
        %4315 = vmatpush1.msra.mxu0 %v4308
        %4316 = vmatprep.subr.mxu0 0.0
        %4317 = vmatpush1.msra.mxu0 %v4309
        %4318 = vmatprep.subr.mxu0 0.0
        %4319 = vmatpush1.msra.mxu0 0.0
        %4320 = vmatprep.subr.mxu0 0.0
        %4321 = vmatpush1.msra.mxu0 0.0
        %4322 = vmatprep.subr.mxu0 0.0
        %4323 = vmatpush1.msra.mxu0 0.0
        %4324 = vmatprep.subr.mxu0 0.0
        %4325 = vmatpush1.msra.mxu0 0.0
        %4326 = vmatprep.subr.mxu0 0.0
        %4327 = vmatpush1.msra.mxu0 0.0
        %4328 = vmatprep.subr.mxu0 0.0
        %4329 = vmatpush1.msra.mxu0 0.0
        %4330 = vmatprep.subr.mxu0 0.0
        %4331 = vmatpush1.msra.mxu0 0.0
        %4332 = vmatprep.subr.mxu0 0.0
        %4333 = vmatpush1.msra.mxu0 0.0
        %4334 = vmatprep.subr.mxu0 0.0
        %4335 = vmatpush1.msra.mxu0 0.0
        %4336 = vmatprep.subr.mxu0 0.0
        %4337 = vmatpush1.msra.mxu0 0.0
        %4338 = vmatprep.subr.mxu0 0.0
        %4339 = vmatpush1.msra.mxu0 0.0
        %4340 = vmatprep.subr.mxu0 0.0
        %4341 = vmatpush1.msra.mxu0 0.0
        %4342 = vmatprep.subr.mxu0 0.0
        %4343 = vmatpush1.msra.mxu0 0.0
        %4344 = vmatprep.subr.mxu0 0.0
        %4345 = vmatpush1.msra.mxu0 0.0
        %4346 = vmatprep.subr.mxu0 0.0
        %4347 = vmatpush1.msra.mxu0 0.0
        %4348 = vmatprep.subr.mxu0 0.0
        %4349 = vmatpush1.msra.mxu0 0.0
        %4350 = vmatprep.subr.mxu0 0.0
        %4351 = vmatpush1.msra.mxu0 0.0
        %4352 = vmatprep.subr.mxu0 0.0
        %4353 = vmatpush1.msra.mxu0 0.0
        %4354 = vmatprep.subr.mxu0 0.0
        %4355 = vmatpush1.msra.mxu0 0.0
        %4356 = vmatprep.subr.mxu0 0.0
        %4357 = vmatpush1.msra.mxu0 0.0
        %4358 = vmatprep.subr.mxu0 0.0
        %4359 = vmatpush1.msra.mxu0 0.0
        %4360 = vmatprep.subr.mxu0 0.0
        %4361 = vmatpush1.msra.mxu0 0.0
        %4362 = vmatprep.subr.mxu0 0.0
        %4363 = vmatpush1.msra.mxu0 0.0
        %4364 = vmatprep.subr.mxu0 0.0
        %4365 = vmatpush1.msra.mxu0 0.0
        %4366 = vmatprep.subr.mxu0 0.0
        %4367 = vmatpush1.msra.mxu0 0.0
        %4368 = vmatprep.subr.mxu0 0.0
        %4369 = vmatpush1.msra.mxu0 0.0
        %4370 = vmatprep.subr.mxu0 0.0
        %4371 = vmatpush1.msra.mxu0 0.0
        %4372 = vmatprep.subr.mxu0 0.0
        %4373 = vmatpush1.msra.mxu0 0.0
        %4374 = vmatprep.mubr.f32.mxu0 0.0
        %4375 = vmatmul.mubr.f32.gmra.mrb[0].mxu0 %v651
        %v4376 = vpop.f32.mrb[0].mxu0
        %v4377 = vadd.f32 %v534, %v4376
        %v4378 = vpop.f32.mrb[0].mxu0
        %4379 = vmatprep.mubr.f32.mxu0 0.0
        %4380 = vmatmul.mubr.f32.gmra.mrb[0].mxu0 %v654
        %v4381 = vpop.f32.mrb[0].mxu0
        %v4382 = vadd.f32 %v539, %v4381
        %v4383 = vpop.f32.mrb[0].mxu0
        %4384 = vdwg.mxu0
        %v4385 = vmax.f32 %v4377, 0.0
        %v4386 = vmax.f32 %v4382, 0.0
        %v4387 = vadd.f32 %v4213, %v4385
        %v4388 = vadd.f32 %v4214, %v4386
        %s4389 = scalar_lea.vmem %s470, 352 [#allocation2]
        %v4390 = vld [vmem:[%s4389] sm:$0xff]
        %v4391 = vld [vmem:[%s4389 + $0x8] sm:$0xf]
        %v4393 = vsel %vm556, %v4391, 0
        %4395 = vmatprep.subr.mxu0 0.0
        %4396 = vmatpush1.msra.mxu0 %v4390
        %4397 = vmatprep.subr.mxu0 0.0
        %4398 = vmatpush1.msra.mxu0 %v4393
        %4399 = vmatprep.subr.mxu0 0.0
        %4400 = vmatpush1.msra.mxu0 0.0
        %4401 = vmatprep.subr.mxu0 0.0
        %4402 = vmatpush1.msra.mxu0 0.0
        %4403 = vmatprep.subr.mxu0 0.0
        %4404 = vmatpush1.msra.mxu0 0.0
        %4405 = vmatprep.subr.mxu0 0.0
        %4406 = vmatpush1.msra.mxu0 0.0
        %4407 = vmatprep.subr.mxu0 0.0
        %4408 = vmatpush1.msra.mxu0 0.0
        %4409 = vmatprep.subr.mxu0 0.0
        %4410 = vmatpush1.msra.mxu0 0.0
        %4411 = vmatprep.subr.mxu0 0.0
        %4412 = vmatpush1.msra.mxu0 0.0
        %4413 = vmatprep.subr.mxu0 0.0
        %4414 = vmatpush1.msra.mxu0 0.0
        %4415 = vmatprep.subr.mxu0 0.0
        %4416 = vmatpush1.msra.mxu0 0.0
        %4417 = vmatprep.subr.mxu0 0.0
        %4418 = vmatpush1.msra.mxu0 0.0
        %4419 = vmatprep.subr.mxu0 0.0
        %4420 = vmatpush1.msra.mxu0 0.0
        %4421 = vmatprep.subr.mxu0 0.0
        %4422 = vmatpush1.msra.mxu0 0.0
        %4423 = vmatprep.subr.mxu0 0.0
        %4424 = vmatpush1.msra.mxu0 0.0
        %4425 = vmatprep.subr.mxu0 0.0
        %4426 = vmatpush1.msra.mxu0 0.0
        %4427 = vmatprep.subr.mxu0 0.0
        %4428 = vmatpush1.msra.mxu0 0.0
        %4429 = vmatprep.subr.mxu0 0.0
        %4430 = vmatpush1.msra.mxu0 0.0
        %4431 = vmatprep.subr.mxu0 0.0
        %4432 = vmatpush1.msra.mxu0 0.0
        %4433 = vmatprep.subr.mxu0 0.0
        %4434 = vmatpush1.msra.mxu0 0.0
        %4435 = vmatprep.subr.mxu0 0.0
        %4436 = vmatpush1.msra.mxu0 0.0
        %4437 = vmatprep.subr.mxu0 0.0
        %4438 = vmatpush1.msra.mxu0 0.0
        %4439 = vmatprep.subr.mxu0 0.0
        %4440 = vmatpush1.msra.mxu0 0.0
        %4441 = vmatprep.subr.mxu0 0.0
        %4442 = vmatpush1.msra.mxu0 0.0
        %4443 = vmatprep.subr.mxu0 0.0
        %4444 = vmatpush1.msra.mxu0 0.0
        %4445 = vmatprep.subr.mxu0 0.0
        %4446 = vmatpush1.msra.mxu0 0.0
        %4447 = vmatprep.subr.mxu0 0.0
        %4448 = vmatpush1.msra.mxu0 0.0
        %4449 = vmatprep.subr.mxu0 0.0
        %4450 = vmatpush1.msra.mxu0 0.0
        %4451 = vmatprep.subr.mxu0 0.0
        %4452 = vmatpush1.msra.mxu0 0.0
        %4453 = vmatprep.subr.mxu0 0.0
        %4454 = vmatpush1.msra.mxu0 0.0
        %4455 = vmatprep.subr.mxu0 0.0
        %4456 = vmatpush1.msra.mxu0 0.0
        %4457 = vmatprep.subr.mxu0 0.0
        %4458 = vmatpush1.msra.mxu0 0.0
        %4459 = vmatprep.mubr.f32.mxu0 0.0
        %4460 = vmatmul.mubr.f32.gmra.mrb[0].mxu0 %v545
        %v4461 = vpop.f32.mrb[0].mxu0
        %v4462 = vadd.f32 %v512, %v4461
        %v4463 = vpop.f32.mrb[0].mxu0
        %4464 = vmatprep.mubr.f32.mxu0 0.0
        %4465 = vmatmul.mubr.f32.gmra.mrb[0].mxu0 %v548
        %v4466 = vpop.f32.mrb[0].mxu0
        %v4467 = vadd.f32 %v517, %v4466
        %v4468 = vpop.f32.mrb[0].mxu0
        %4469 = vmatprep.mubr.f32.mxu0 0.0
        %4470 = vmatmul.mubr.f32.gmra.mrb[0].mxu0 %v551
        %v4471 = vpop.f32.mrb[0].mxu0
        %v4472 = vadd.f32 %v522, %v4471
        %v4473 = vpop.f32.mrb[0].mxu0
        %4474 = vmatprep.mubr.f32.mxu0 0.0
        %4475 = vmatmul.mubr.f32.gmra.mrb[0].mxu0 %v554
        %v4476 = vpop.f32.mrb[0].mxu0
        %v4477 = vadd.f32 %v527, %v4476
        %v4478 = vpop.f32.mrb[0].mxu0
        %4479 = vdwg.mxu0
        %v4480 = vmax.f32 %v4462, 0.0
        %v4481 = vmax.f32 %v4467, 0.0
        %v4482 = vmax.f32 %v4472, 0.0
        %v4483 = vmax.f32 %v4477, 0.0
        %4484 = vmatprep.subr.mxu0 0.0
        %4485 = vmatpush1.msra.mxu0 %v4480
        %4486 = vmatprep.subr.mxu0 0.0
        %4487 = vmatpush1.msra.mxu0 %v4481
        %4488 = vmatprep.subr.mxu0 0.0
        %4489 = vmatpush1.msra.mxu0 %v4482
        %4490 = vmatprep.subr.mxu0 0.0
        %4491 = vmatpush1.msra.mxu0 %v4483
        %4492 = vmatprep.subr.mxu0 0.0
        %4493 = vmatpush1.msra.mxu0 0.0
        %4494 = vmatprep.subr.mxu0 0.0
        %4495 = vmatpush1.msra.mxu0 0.0
        %4496 = vmatprep.subr.mxu0 0.0
        %4497 = vmatpush1.msra.mxu0 0.0
        %4498 = vmatprep.subr.mxu0 0.0
        %4499 = vmatpush1.msra.mxu0 0.0
        %4500 = vmatprep.subr.mxu0 0.0
        %4501 = vmatpush1.msra.mxu0 0.0
        %4502 = vmatprep.subr.mxu0 0.0
        %4503 = vmatpush1.msra.mxu0 0.0
        %4504 = vmatprep.subr.mxu0 0.0
        %4505 = vmatpush1.msra.mxu0 0.0
        %4506 = vmatprep.subr.mxu0 0.0
        %4507 = vmatpush1.msra.mxu0 0.0
        %4508 = vmatprep.subr.mxu0 0.0
        %4509 = vmatpush1.msra.mxu0 0.0
        %4510 = vmatprep.subr.mxu0 0.0
        %4511 = vmatpush1.msra.mxu0 0.0
        %4512 = vmatprep.subr.mxu0 0.0
        %4513 = vmatpush1.msra.mxu0 0.0
        %4514 = vmatprep.subr.mxu0 0.0
        %4515 = vmatpush1.msra.mxu0 0.0
        %4516 = vmatprep.subr.mxu0 0.0
        %4517 = vmatpush1.msra.mxu0 0.0
        %4518 = vmatprep.subr.mxu0 0.0
        %4519 = vmatpush1.msra.mxu0 0.0
        %4520 = vmatprep.subr.mxu0 0.0
        %4521 = vmatpush1.msra.mxu0 0.0
        %4522 = vmatprep.subr.mxu0 0.0
        %4523 = vmatpush1.msra.mxu0 0.0
        %4524 = vmatprep.subr.mxu0 0.0
        %4525 = vmatpush1.msra.mxu0 0.0
        %4526 = vmatprep.subr.mxu0 0.0
        %4527 = vmatpush1.msra.mxu0 0.0
        %4528 = vmatprep.subr.mxu0 0.0
        %4529 = vmatpush1.msra.mxu0 0.0
        %4530 = vmatprep.subr.mxu0 0.0
        %4531 = vmatpush1.msra.mxu0 0.0
        %4532 = vmatprep.subr.mxu0 0.0
        %4533 = vmatpush1.msra.mxu0 0.0
        %4534 = vmatprep.subr.mxu0 0.0
        %4535 = vmatpush1.msra.mxu0 0.0
        %4536 = vmatprep.subr.mxu0 0.0
        %4537 = vmatpush1.msra.mxu0 0.0
        %4538 = vmatprep.subr.mxu0 0.0
        %4539 = vmatpush1.msra.mxu0 0.0
        %4540 = vmatprep.subr.mxu0 0.0
        %4541 = vmatpush1.msra.mxu0 0.0
        %4542 = vmatprep.subr.mxu0 0.0
        %4543 = vmatpush1.msra.mxu0 0.0
        %4544 = vmatprep.subr.mxu0 0.0
        %4545 = vmatpush1.msra.mxu0 0.0
        %4546 = vmatprep.subr.mxu0 0.0
        %4547 = vmatpush1.msra.mxu0 0.0
        %4548 = vmatprep.mubr.f32.mxu0 0.0
        %4549 = vmatmul.mubr.f32.gmra.mrb[0].mxu0 %v651
        %v4550 = vpop.f32.mrb[0].mxu0
        %v4551 = vadd.f32 %v534, %v4550
        %v4552 = vpop.f32.mrb[0].mxu0
        %4553 = vmatprep.mubr.f32.mxu0 0.0
        %4554 = vmatmul.mubr.f32.gmra.mrb[0].mxu0 %v654
        %v4555 = vpop.f32.mrb[0].mxu0
        %v4556 = vadd.f32 %v539, %v4555
        %v4557 = vpop.f32.mrb[0].mxu0
        %4558 = vdwg.mxu0
        %v4559 = vmax.f32 %v4551, 0.0
        %v4560 = vmax.f32 %v4556, 0.0
        %v4561 = vadd.f32 %v4387, %v4559
        %v4562 = vadd.f32 %v4388, %v4560
        %s4563 = scalar_lea.vmem %s470, 368 [#allocation2]
        %v4564 = vld [vmem:[%s4563] sm:$0xff]
        %v4565 = vld [vmem:[%s4563 + $0x8] sm:$0xf]
        %v4567 = vsel %vm556, %v4565, 0
        %4569 = vmatprep.subr.mxu0 0.0
        %4570 = vmatpush1.msra.mxu0 %v4564
        %4571 = vmatprep.subr.mxu0 0.0
        %4572 = vmatpush1.msra.mxu0 %v4567
        %4573 = vmatprep.subr.mxu0 0.0
        %4574 = vmatpush1.msra.mxu0 0.0
        %4575 = vmatprep.subr.mxu0 0.0
        %4576 = vmatpush1.msra.mxu0 0.0
        %4577 = vmatprep.subr.mxu0 0.0
        %4578 = vmatpush1.msra.mxu0 0.0
        %4579 = vmatprep.subr.mxu0 0.0
        %4580 = vmatpush1.msra.mxu0 0.0
        %4581 = vmatprep.subr.mxu0 0.0
        %4582 = vmatpush1.msra.mxu0 0.0
        %4583 = vmatprep.subr.mxu0 0.0
        %4584 = vmatpush1.msra.mxu0 0.0
        %4585 = vmatprep.subr.mxu0 0.0
        %4586 = vmatpush1.msra.mxu0 0.0
        %4587 = vmatprep.subr.mxu0 0.0
        %4588 = vmatpush1.msra.mxu0 0.0
        %4589 = vmatprep.subr.mxu0 0.0
        %4590 = vmatpush1.msra.mxu0 0.0
        %4591 = vmatprep.subr.mxu0 0.0
        %4592 = vmatpush1.msra.mxu0 0.0
        %4593 = vmatprep.subr.mxu0 0.0
        %4594 = vmatpush1.msra.mxu0 0.0
        %4595 = vmatprep.subr.mxu0 0.0
        %4596 = vmatpush1.msra.mxu0 0.0
        %4597 = vmatprep.subr.mxu0 0.0
        %4598 = vmatpush1.msra.mxu0 0.0
        %4599 = vmatprep.subr.mxu0 0.0
        %4600 = vmatpush1.msra.mxu0 0.0
        %4601 = vmatprep.subr.mxu0 0.0
        %4602 = vmatpush1.msra.mxu0 0.0
        %4603 = vmatprep.subr.mxu0 0.0
        %4604 = vmatpush1.msra.mxu0 0.0
        %4605 = vmatprep.subr.mxu0 0.0
        %4606 = vmatpush1.msra.mxu0 0.0
        %4607 = vmatprep.subr.mxu0 0.0
        %4608 = vmatpush1.msra.mxu0 0.0
        %4609 = vmatprep.subr.mxu0 0.0
        %4610 = vmatpush1.msra.mxu0 0.0
        %4611 = vmatprep.subr.mxu0 0.0
        %4612 = vmatpush1.msra.mxu0 0.0
        %4613 = vmatprep.subr.mxu0 0.0
        %4614 = vmatpush1.msra.mxu0 0.0
        %4615 = vmatprep.subr.mxu0 0.0
        %4616 = vmatpush1.msra.mxu0 0.0
        %4617 = vmatprep.subr.mxu0 0.0
        %4618 = vmatpush1.msra.mxu0 0.0
        %4619 = vmatprep.subr.mxu0 0.0
        %4620 = vmatpush1.msra.mxu0 0.0
        %4621 = vmatprep.subr.mxu0 0.0
        %4622 = vmatpush1.msra.mxu0 0.0
        %4623 = vmatprep.subr.mxu0 0.0
        %4624 = vmatpush1.msra.mxu0 0.0
        %4625 = vmatprep.subr.mxu0 0.0
        %4626 = vmatpush1.msra.mxu0 0.0
        %4627 = vmatprep.subr.mxu0 0.0
        %4628 = vmatpush1.msra.mxu0 0.0
        %4629 = vmatprep.subr.mxu0 0.0
        %4630 = vmatpush1.msra.mxu0 0.0
        %4631 = vmatprep.subr.mxu0 0.0
        %4632 = vmatpush1.msra.mxu0 0.0
        %4633 = vmatprep.mubr.f32.mxu0 0.0
        %4634 = vmatmul.mubr.f32.gmra.mrb[0].mxu0 %v545
        %v4635 = vpop.f32.mrb[0].mxu0
        %v4636 = vadd.f32 %v512, %v4635
        %v4637 = vpop.f32.mrb[0].mxu0
        %4638 = vmatprep.mubr.f32.mxu0 0.0
        %4639 = vmatmul.mubr.f32.gmra.mrb[0].mxu0 %v548
        %v4640 = vpop.f32.mrb[0].mxu0
        %v4641 = vadd.f32 %v517, %v4640
        %v4642 = vpop.f32.mrb[0].mxu0
        %4643 = vmatprep.mubr.f32.mxu0 0.0
        %4644 = vmatmul.mubr.f32.gmra.mrb[0].mxu0 %v551
        %v4645 = vpop.f32.mrb[0].mxu0
        %v4646 = vadd.f32 %v522, %v4645
        %v4647 = vpop.f32.mrb[0].mxu0
        %4648 = vmatprep.mubr.f32.mxu0 0.0
        %4649 = vmatmul.mubr.f32.gmra.mrb[0].mxu0 %v554
        %v4650 = vpop.f32.mrb[0].mxu0
        %v4651 = vadd.f32 %v527, %v4650
        %v4652 = vpop.f32.mrb[0].mxu0
        %4653 = vdwg.mxu0
        %v4654 = vmax.f32 %v4636, 0.0
        %v4655 = vmax.f32 %v4641, 0.0
        %v4656 = vmax.f32 %v4646, 0.0
        %v4657 = vmax.f32 %v4651, 0.0
        %4658 = vmatprep.subr.mxu0 0.0
        %4659 = vmatpush1.msra.mxu0 %v4654
        %4660 = vmatprep.subr.mxu0 0.0
        %4661 = vmatpush1.msra.mxu0 %v4655
        %4662 = vmatprep.subr.mxu0 0.0
        %4663 = vmatpush1.msra.mxu0 %v4656
        %4664 = vmatprep.subr.mxu0 0.0
        %4665 = vmatpush1.msra.mxu0 %v4657
        %4666 = vmatprep.subr.mxu0 0.0
        %4667 = vmatpush1.msra.mxu0 0.0
        %4668 = vmatprep.subr.mxu0 0.0
        %4669 = vmatpush1.msra.mxu0 0.0
        %4670 = vmatprep.subr.mxu0 0.0
        %4671 = vmatpush1.msra.mxu0 0.0
        %4672 = vmatprep.subr.mxu0 0.0
        %4673 = vmatpush1.msra.mxu0 0.0
        %4674 = vmatprep.subr.mxu0 0.0
        %4675 = vmatpush1.msra.mxu0 0.0
        %4676 = vmatprep.subr.mxu0 0.0
        %4677 = vmatpush1.msra.mxu0 0.0
        %4678 = vmatprep.subr.mxu0 0.0
        %4679 = vmatpush1.msra.mxu0 0.0
        %4680 = vmatprep.subr.mxu0 0.0
        %4681 = vmatpush1.msra.mxu0 0.0
        %4682 = vmatprep.subr.mxu0 0.0
        %4683 = vmatpush1.msra.mxu0 0.0
        %4684 = vmatprep.subr.mxu0 0.0
        %4685 = vmatpush1.msra.mxu0 0.0
        %4686 = vmatprep.subr.mxu0 0.0
        %4687 = vmatpush1.msra.mxu0 0.0
        %4688 = vmatprep.subr.mxu0 0.0
        %4689 = vmatpush1.msra.mxu0 0.0
        %4690 = vmatprep.subr.mxu0 0.0
        %4691 = vmatpush1.msra.mxu0 0.0
        %4692 = vmatprep.subr.mxu0 0.0
        %4693 = vmatpush1.msra.mxu0 0.0
        %4694 = vmatprep.subr.mxu0 0.0
        %4695 = vmatpush1.msra.mxu0 0.0
        %4696 = vmatprep.subr.mxu0 0.0
        %4697 = vmatpush1.msra.mxu0 0.0
        %4698 = vmatprep.subr.mxu0 0.0
        %4699 = vmatpush1.msra.mxu0 0.0
        %4700 = vmatprep.subr.mxu0 0.0
        %4701 = vmatpush1.msra.mxu0 0.0
        %4702 = vmatprep.subr.mxu0 0.0
        %4703 = vmatpush1.msra.mxu0 0.0
        %4704 = vmatprep.subr.mxu0 0.0
        %4705 = vmatpush1.msra.mxu0 0.0
        %4706 = vmatprep.subr.mxu0 0.0
        %4707 = vmatpush1.msra.mxu0 0.0
        %4708 = vmatprep.subr.mxu0 0.0
        %4709 = vmatpush1.msra.mxu0 0.0
        %4710 = vmatprep.subr.mxu0 0.0
        %4711 = vmatpush1.msra.mxu0 0.0
        %4712 = vmatprep.subr.mxu0 0.0
        %4713 = vmatpush1.msra.mxu0 0.0
        %4714 = vmatprep.subr.mxu0 0.0
        %4715 = vmatpush1.msra.mxu0 0.0
        %4716 = vmatprep.subr.mxu0 0.0
        %4717 = vmatpush1.msra.mxu0 0.0
        %4718 = vmatprep.subr.mxu0 0.0
        %4719 = vmatpush1.msra.mxu0 0.0
        %4720 = vmatprep.subr.mxu0 0.0
        %4721 = vmatpush1.msra.mxu0 0.0
        %4722 = vmatprep.mubr.f32.mxu0 0.0
        %4723 = vmatmul.mubr.f32.gmra.mrb[0].mxu0 %v651
        %v4724 = vpop.f32.mrb[0].mxu0
        %v4725 = vadd.f32 %v534, %v4724
        %v4726 = vpop.f32.mrb[0].mxu0
        %4727 = vmatprep.mubr.f32.mxu0 0.0
        %4728 = vmatmul.mubr.f32.gmra.mrb[0].mxu0 %v654
        %v4729 = vpop.f32.mrb[0].mxu0
        %v4730 = vadd.f32 %v539, %v4729
        %v4731 = vpop.f32.mrb[0].mxu0
        %4732 = vdwg.mxu0
        %v4733 = vmax.f32 %v4725, 0.0
        %v4734 = vmax.f32 %v4730, 0.0
        %v4735 = vadd.f32 %v4561, %v4733
        %v4736 = vadd.f32 %v4562, %v4734
        %v4737 = vld [vmem:[%s5] sm:$0xff]
        %v4738 = vld [vmem:[%s5 + $0x8] sm:$0x3]
        %v4739 = vld [vmem:[%s6] sm:$0xff]
        %v4740 = vld [vmem:[%s6 + $0x8] sm:$0x3]
        %4742 = vset.pattern.permute.xlu0 0
        %4743 = vperm.xlu0 %4742, %v4739
        %v4744 = vpop.permute.xlu0 %4743
        %4747 = vset.pattern.permute.xlu0 0
        %4748 = vperm.xlu0 %4747, %v4740
        %v4749 = vpop.permute.xlu0 %4748
        %vm4751 = vcmask 130048
        %v4753 = vsel %vm4751, %v4737, 0
        %v4756 = vsel %vm4751, %v4738, 0
        %4758 = vmatprep.subr.mxu0 0.0
        %4759 = vmatpush1.msra.mxu0 %v4735
        %4760 = vmatprep.subr.mxu0 0.0
        %4761 = vmatpush1.msra.mxu0 %v4736
        %4762 = vmatprep.subr.mxu0 0.0
        %4763 = vmatpush1.msra.mxu0 0.0
        %4764 = vmatprep.subr.mxu0 0.0
        %4765 = vmatpush1.msra.mxu0 0.0
        %4766 = vmatprep.subr.mxu0 0.0
        %4767 = vmatpush1.msra.mxu0 0.0
        %4768 = vmatprep.subr.mxu0 0.0
        %4769 = vmatpush1.msra.mxu0 0.0
        %4770 = vmatprep.subr.mxu0 0.0
        %4771 = vmatpush1.msra.mxu0 0.0
        %4772 = vmatprep.subr.mxu0 0.0
        %4773 = vmatpush1.msra.mxu0 0.0
        %4774 = vmatprep.subr.mxu0 0.0
        %4775 = vmatpush1.msra.mxu0 0.0
        %4776 = vmatprep.subr.mxu0 0.0
        %4777 = vmatpush1.msra.mxu0 0.0
        %4778 = vmatprep.subr.mxu0 0.0
        %4779 = vmatpush1.msra.mxu0 0.0
        %4780 = vmatprep.subr.mxu0 0.0
        %4781 = vmatpush1.msra.mxu0 0.0
        %4782 = vmatprep.subr.mxu0 0.0
        %4783 = vmatpush1.msra.mxu0 0.0
        %4784 = vmatprep.subr.mxu0 0.0
        %4785 = vmatpush1.msra.mxu0 0.0
        %4786 = vmatprep.subr.mxu0 0.0
        %4787 = vmatpush1.msra.mxu0 0.0
        %4788 = vmatprep.subr.mxu0 0.0
        %4789 = vmatpush1.msra.mxu0 0.0
        %4790 = vmatprep.subr.mxu0 0.0
        %4791 = vmatpush1.msra.mxu0 0.0
        %4792 = vmatprep.subr.mxu0 0.0
        %4793 = vmatpush1.msra.mxu0 0.0
        %4794 = vmatprep.subr.mxu0 0.0
        %4795 = vmatpush1.msra.mxu0 0.0
        %4796 = vmatprep.subr.mxu0 0.0
        %4797 = vmatpush1.msra.mxu0 0.0
        %4798 = vmatprep.subr.mxu0 0.0
        %4799 = vmatpush1.msra.mxu0 0.0
        %4800 = vmatprep.subr.mxu0 0.0
        %4801 = vmatpush1.msra.mxu0 0.0
        %4802 = vmatprep.subr.mxu0 0.0
        %4803 = vmatpush1.msra.mxu0 0.0
        %4804 = vmatprep.subr.mxu0 0.0
        %4805 = vmatpush1.msra.mxu0 0.0
        %4806 = vmatprep.subr.mxu0 0.0
        %4807 = vmatpush1.msra.mxu0 0.0
        %4808 = vmatprep.subr.mxu0 0.0
        %4809 = vmatpush1.msra.mxu0 0.0
        %4810 = vmatprep.subr.mxu0 0.0
        %4811 = vmatpush1.msra.mxu0 0.0
        %4812 = vmatprep.subr.mxu0 0.0
        %4813 = vmatpush1.msra.mxu0 0.0
        %4814 = vmatprep.subr.mxu0 0.0
        %4815 = vmatpush1.msra.mxu0 0.0
        %4816 = vmatprep.subr.mxu0 0.0
        %4817 = vmatpush1.msra.mxu0 0.0
        %4818 = vmatprep.subr.mxu0 0.0
        %4819 = vmatpush1.msra.mxu0 0.0
        %4820 = vmatprep.subr.mxu0 0.0
        %4821 = vmatpush1.msra.mxu0 0.0
        %4822 = vmatprep.mubr.f32.mxu0 0.0
        %4823 = vmatmul.mubr.f32.gmra.mrb[0].mxu0 %v4753
        %v4824 = vpop.f32.mrb[0].mxu0
        %v4825 = vadd.f32 %v4744, %v4824
        %v4826 = vpop.f32.mrb[0].mxu0
        %4827 = vmatprep.mubr.f32.mxu0 0.0
        %4828 = vmatmul.mubr.f32.gmra.mrb[0].mxu0 %v4756
        %v4829 = vpop.f32.mrb[0].mxu0
        %v4830 = vadd.f32 %v4749, %v4829
        %v4831 = vpop.f32.mrb[0].mxu0
        %4832 = vdwg.mxu0
        %4833 = vst [vmem:[%s498] sm:$0xff] %v4825
        %4834 = vst [vmem:[%s498 + $0x8] sm:$0x3] %v4830
        %s4835 = sand.u32 %s181, 1
        %s4836 = scalar_lea.sflag [#allocation4], %s4835
        %s4837 = sand.u32 %s181, 1
        %s4838 = smul.addr %s4837, 16
        %s4839 = scalar_lea.vmem [#allocation3], %s4838
        // Predicated region
        $region87: #{tpu_custom_call.1} parent=81 // pred_check
          %p4840 = pneg %p191
        $region88: #{tpu_custom_call.1} parent=81 // pred_check_branch
          %4842 = sbr.rel (%p4840) target = $region90
        $region89: #{tpu_custom_call.1} parent=81 // pred_region
          %s4844 = ssub.s32 256, 256
          %4845 = vsyncadd %s4836, %s4844
          %s4846 = smul.addr %s21, 128
          %s4847 = scalar_lea.hbm %s7, %s4846
          %s4848 = sshll.u32 %s4839, 4
          %s4849 = int_to_ptr.vmem [resolvable:$true] %s4848
          %4854 = dma.vmem_to_hbm [thread:$0]  %s4849, 256, %s4847, %s4836, 128, 256, 8
        $region90: #{tpu_custom_call.1} parent=81 // pred_fallthru
          _
      $region82: #{tpu_custom_call.1} parent=5 // pred_fallthru
        _
      %p4855 = scmp.le.s32.totalorder 2, %s16
      // Predicated region
      $region91: #{tpu_custom_call.1} parent=5 // pred_check
        %p4856 = pneg %p4855
      $region92: #{tpu_custom_call.1} parent=5 // pred_check_branch
        %4858 = sbr.rel (%p4856) target = $region94
      $region93: #{tpu_custom_call.1} parent=5 // pred_region
        %s4859 = ssub.s32 %s16, 2
        // Predicated region
        $region95: #{tpu_custom_call.1} parent=93 // pred_check
          %p4860 = pneg %p197
        $region96: #{tpu_custom_call.1} parent=93 // pred_check_branch
          %4862 = sbr.rel (%p4860) target = $region98
        $region97: #{tpu_custom_call.1} parent=93 // pred_region
          %s4863 = sand.u32 %s182, 1
          %s4864 = scalar_lea.sflag [#allocation4], %s4863
          %s4865 = sand.u32 %s182, 1
          %s4866 = smul.addr %s4865, 16
          %s4867 = scalar_lea.vmem [#allocation3], %s4866
          %4868 = dma.done %s4864, 256
        $region98: #{tpu_custom_call.1} parent=93 // pred_fallthru
          _
      $region94: #{tpu_custom_call.1} parent=5 // pred_fallthru
        _
    $region6: #{tpu_custom_call.1} parent=1 // loop_footer
      %s20 = sadd.s32 1, %s16
    $region7: #{tpu_custom_call.1} parent=1 // loop_footer_branch
      %15 = sbr.rel target = $region3
    $region8: #{tpu_custom_call.1} parent=1 // loop_exit
      _
    %4869 = vsyncpa [#allocation4], 1
    %s4870 = scalar_lea.sflag [#allocation4], 1
    %4871 = vsyncpa %s4870, 1

</llo_original>
